<compile_context>
chip_gen: v5e
topology: v5e:2x2
jax: 0.10.0
libtpu: 0.0.40
codegen_flags: <defaults>
</compile_context>

<pallas_src>
import functools

import numpy as np
import jax
import jax.numpy as jnp
from jax.experimental import pallas as pl
from jax.experimental.pallas import tpu as pltpu


_IN_NAMES = (
    "x", "emb", "seg_avg", "seg_hd", "seg_hd_t", "lane_sel", "bexp", "cmask",
    "fc1_wt", "fc1_b", "fc2_wt", "fc2_b", "conv1_w", "conv1_b", "cvo_w", "cvo_b",
    "w_pre", "b_pre", "ln1_g", "ln1_b", "w_sc", "b_sc",
    "lnA_g", "lnA_b", "w_qkv", "w_in_bd", "b_in_t", "w_out_bd", "b_fold",
    "w_to", "w_post", "b_post", "ln2_g", "ln2_b", "w_res", "b_res",
)


def block_kernel(*refs, L, num_heads, hidden_dim, eps):
    r = dict(zip(_IN_NAMES, refs))
    o_ref = refs[len(_IN_NAMES)]
    f32, bf16 = jnp.float32, jnp.bfloat16

    x0 = r["x"][...]                         # (n_in, N) original input block
    N = x0.shape[1]
    Bt = N // L
    H = hidden_dim
    hd = L // num_heads
    seg_avg = r["seg_avg"][...]              # (N, N) bf16 per-segment mean matrix

    def matmul(a, b):                        # bf16 MXU matmul, f32 accumulation
        return jnp.dot(a.astype(bf16), b.astype(bf16),
                       preferred_element_type=f32)

    def mish(v):
        # x * tanh(softplus(x)), with tanh(softplus(x)) = 1 - 2/((1+e^x)^2+1):
        # one exp + one approx reciprocal (both EUP); clamp keeps (1+e)^2 finite.
        e = jnp.exp(jnp.minimum(v, 25.0))
        t = 1.0 - 2.0 * pl.reciprocal((1.0 + e) * (1.0 + e) + 1.0, approx=True)
        return v * t

    def layernorm(v, g_ref, b_ref):
        # LayerNorm over L per (batch, channel) in the fused lane layout:
        # segment means / variances via bf16 selector matmuls (f32 accumulate).
        mean = matmul(v, seg_avg)
        vc = v - mean
        var = matmul(vc * vc, seg_avg)
        return vc * jax.lax.rsqrt(var + eps) * g_ref[...] + b_ref[...]

    def conv5(vin, w_ref, b_ref):
        # k=5 'same' Conv1d along L inside every batch segment: XLU lane rolls
        # + precomputed edge masks (VPU) replace the dense shift-matrix matmuls.
        cm = r["cmask"][...]                         # (5, N) f32 edge masks
        acc = matmul(w_ref[2], vin)                  # centre tap: no roll/mask
        for k in (0, 1, 3, 4):
            d = k - 2
            vs = pltpu.roll(vin, shift=(-d) % N, axis=1) * cm[k:k + 1]
            acc = acc + matmul(w_ref[k], vs)
        return acc + b_ref[...]

    # ---------------- TimeEmbedding ----------------
    emb = r["emb"][...]                                         # (Bt, De)
    h = mish(matmul(emb, r["fc1_wt"][...]) + r["fc1_b"][...])   # (Bt, Dl)
    out0b = matmul(h, r["fc2_wt"][...]) + r["fc2_b"][...]       # (Bt, L)
    # scatter (Bt, L) -> fused (1, Bt*L) row with constant selector matrices
    out0 = jnp.sum(matmul(out0b, r["lane_sel"][...]) * r["bexp"][...],
                   axis=0, keepdims=True)                       # (1, N)
    c1 = r["conv1_w"][...] * mish(out0) + r["conv1_b"][...]     # (n_in, N)
    te = matmul(r["cvo_w"][...], mish(c1) + out0) + r["cvo_b"][...]

    x1 = x0 + te

    # ---- pre_shortcut conv5 -> LayerNorm1 -> mish -> 1x1 shortcut conv ----
    sc = conv5(x1, r["w_pre"], r["b_pre"])
    sc = mish(layernorm(sc, r["ln1_g"], r["ln1_b"]))
    sc = matmul(r["w_sc"][...], sc) + r["b_sc"][...]            # (n_sc, N)

    # ---------------- SelfAttention ----------------
    xn = layernorm(sc, r["lnA_g"], r["lnA_b"])
    qkv = matmul(r["w_qkv"][...], xn)                           # (3H, N)
    q, k, v = qkv[:H], qkv[H:2 * H], qkv[2 * H:]
    b_in = r["b_in_t"][...]                                     # (3, N)
    # block-diagonal (pre-transposed) in-projections; scale folded into q once.
    qp = (matmul(q, r["w_in_bd"][0]) + b_in[0:1]) * (hd ** -0.5)
    kp = matmul(k, r["w_in_bd"][1]) + b_in[1:2]
    vp = matmul(v, r["w_in_bd"][2]) + b_in[2:3]

    # per-(batch, head) scores via one bf16 segment-sum matmul: the (H,H,N)
    # intermediates are kept in bf16 to halve live vreg footprint.
    G = Bt * num_heads
    qb = qp.astype(bf16)
    kb = kp.astype(bf16)
    prod = (qb[:, None, :] * kb[None, :, :]).reshape(H * H, N)  # bf16
    s = jnp.dot(prod, r["seg_hd"][...],
                preferred_element_type=f32).reshape(H, H, G)    # (query, key, group)
    s = s - jnp.max(s, axis=1, keepdims=True)
    p = jnp.exp(s)
    p = p * pl.reciprocal(jnp.sum(p, axis=1, keepdims=True), approx=True)
    p_full = matmul(p.reshape(H * H, G),
                    r["seg_hd_t"][...]).astype(bf16).reshape(H, H, N)
    attn = jnp.sum(p_full * vp[None, :, :], axis=1)             # (H, N), f32

    # channel projection (to_out) first, then block-diag lane projection
    # (MHA out_proj); they commute, biases folded into b_fold on the host.
    attn = matmul(r["w_to"][...], attn)                         # (n_sc, N)
    attn = matmul(attn, r["w_out_bd"][...]) + r["b_fold"][...] + sc

    # ---- post_shortcut conv5 -> LayerNorm2 -> mish -> residual 1x1 conv ----
    out = conv5(attn, r["w_post"], r["b_post"])
    out = mish(layernorm(out, r["ln2_g"], r["ln2_b"]))
    out = out + matmul(r["w_res"][...], x0) + r["b_res"][...]
    o_ref[...] = out.astype(o_ref.dtype)                        # lane-dense store


def _const_spec(a):
    zeros = (0,) * a.ndim

    def idx(i):
        return zeros

    return pl.BlockSpec(a.shape, idx)


@functools.lru_cache(maxsize=None)
def _selectors(L, bt, num_heads):
    """Grid-invariant numpy selector/mask constants, built once per shape."""
    N = bt * L
    hd = L // num_heads
    col = np.arange(N)
    seg_avg = (col[:, None] // L == col[None, :] // L).astype(np.float32) / np.float32(L)
    seg_hd = (col[:, None] // hd == np.arange(bt * num_heads)[None, :]).astype(np.float32)
    lane_sel = (np.arange(L)[:, None] == (col[None, :] % L)).astype(np.float32)
    bexp = (np.arange(bt)[:, None] == (col[None, :] // L)).astype(np.float32)
    cmask = np.zeros((5, N), np.float32)
    pos = col % L
    for k in range(5):
        d = k - 2
        cmask[k] = ((pos + d >= 0) & (pos + d < L)).astype(np.float32)
    return seg_avg, seg_hd, lane_sel, bexp, cmask


def _block_forward_impl(x, t, params, *, num_heads, bt, eps):
    B, n_in, L = x.shape
    H = params["w_to"].shape[1]           # attention hidden_dim
    n_sc = params["w_sc"].shape[0]        # n_shortcut
    n_out = params["w_post"].shape[0]
    assert B % bt == 0 and L % num_heads == 0
    N = bt * L
    nb = B // bt
    f32, bf16 = jnp.float32, jnp.bfloat16

    seg_avg, seg_hd, lane_sel, bexp, cmask = _selectors(L, bt, num_heads)

    # TODO(synk): the embedding-table row gather (embeddings[t]) stays in the
    # wrapper as plain jnp indexing; all compute runs inside the kernel.
    emb = params["embed_table"][t]                                 # (B, De)
    x_f = jnp.transpose(x, (1, 0, 2)).reshape(n_in, B * L)         # fused layout

    def tile_l(v):                                                 # (L,) -> (1, bt*L)
        return jnp.tile(jnp.reshape(v, (1, L)), (1, bt)).astype(f32)

    eye_bt = jnp.eye(bt, dtype=f32)
    in_w = params["in_w"].reshape(3, L, L)
    in_b = params["in_b"].reshape(3, L)
    w_to2 = params["w_to"][:, :, 0]
    # fold MHA out_proj bias + to_out bias into one (n_sc, N) term (w_to and
    # the block-diag lane projection commute).
    b_fold = (jnp.sum(w_to2, axis=1, keepdims=True)
              * jnp.tile(params["out_b"].reshape(1, L), (1, bt))
              + params["b_to"].reshape(-1, 1)).astype(f32)

    ops = {
        "x": x_f.astype(f32),
        "emb": emb.astype(f32),
        "seg_avg": jnp.asarray(seg_avg, bf16),       # selectors exact in bf16
        "seg_hd": jnp.asarray(seg_hd, bf16),
        "seg_hd_t": jnp.asarray(seg_hd.T, bf16),
        "lane_sel": jnp.asarray(lane_sel, bf16),
        "bexp": jnp.asarray(bexp, f32),              # VPU-only use: keep f32
        "cmask": jnp.asarray(cmask, f32),
        "fc1_wt": params["fc1_w"].T.astype(bf16),
        "fc1_b": params["fc1_b"].reshape(1, -1).astype(f32),
        "fc2_wt": params["fc2_w"].T.astype(bf16),
        "fc2_b": params["fc2_b"].reshape(1, -1).astype(f32),
        "conv1_w": params["conv1_w"].reshape(n_in, 1).astype(f32),
        "conv1_b": params["conv1_b"].reshape(n_in, 1).astype(f32),
        "cvo_w": params["convout_w"].reshape(n_in, n_in).astype(bf16),
        "cvo_b": params["convout_b"].reshape(n_in, 1).astype(f32),
        "w_pre": jnp.transpose(params["w_pre"], (2, 0, 1)).astype(bf16),
        "b_pre": params["b_pre"].reshape(n_sc, 1).astype(f32),
        "ln1_g": tile_l(params["ln1_g"]),
        "ln1_b": tile_l(params["ln1_b"]),
        "w_sc": params["w_sc"][:, :, 0].astype(bf16),
        "b_sc": params["b_sc"].reshape(n_sc, 1).astype(f32),
        "lnA_g": tile_l(params["attn_ln_g"]),
        "lnA_b": tile_l(params["attn_ln_b"]),
        "w_qkv": params["w_qkv"][:, :, 0].astype(bf16),
        "w_in_bd": jnp.stack([jnp.kron(eye_bt, in_w[i].T) for i in range(3)]).astype(bf16),
        "b_in_t": jnp.tile(in_b, (1, bt)).astype(f32),
        "w_out_bd": jnp.kron(eye_bt, params["out_w"].T).astype(bf16),
        "b_fold": b_fold,
        "w_to": w_to2.astype(bf16),
        "w_post": jnp.transpose(params["w_post"], (2, 0, 1)).astype(bf16),
        "b_post": params["b_post"].reshape(n_out, 1).astype(f32),
        "ln2_g": tile_l(params["ln2_g"]),
        "ln2_b": tile_l(params["ln2_b"]),
        "w_res": params["w_res"][:, :, 0].astype(bf16),
        "b_res": params["b_res"].reshape(n_out, 1).astype(f32),
    }

    in_specs, operands = [], []
    for name in _IN_NAMES:
        a = ops[name]
        if name == "x":
            spec = pl.BlockSpec((n_in, N), lambda i: (0, i))
        elif name == "emb":
            spec = pl.BlockSpec((bt, a.shape[1]), lambda i: (i, 0))
        else:
            # Grid-invariant operand: constant index_map, never re-fetched.
            # Resident constant/weight footprint is well under 1 MiB after
            # dropping the (5,N,N) shift matrices, so single-buffering
            # (pl.Buffered(1)) is unnecessary on every generation.
            spec = _const_spec(a)
        in_specs.append(spec)
        operands.append(a)

    kernel = functools.partial(block_kernel, L=L, num_heads=num_heads,
                               hidden_dim=H, eps=eps)
    out_f = pl.pallas_call(
        kernel,
        out_shape=jax.ShapeDtypeStruct((n_out, B * L), f32),
        grid=(nb,),
        in_specs=in_specs,
        out_specs=pl.BlockSpec((n_out, N), lambda i: (0, i)),
        compiler_params=pltpu.CompilerParams(
            dimension_semantics=("parallel",),
            vmem_limit_bytes=32 * 1024 * 1024,
        ),
    )(*operands)
    return jnp.transpose(out_f.reshape(n_out, B, L), (1, 0, 2))


_block_forward_jit = jax.jit(_block_forward_impl,
                             static_argnames=("num_heads", "bt", "eps"))


def _auto_bt(B, L):
    """Per-device batch tile: single step on 1-TC chips, >=2 steps on v7x."""
    try:
        kind = jax.devices()[0].device_kind.lower()
    except Exception:
        kind = ""
    if "v7" in kind and B % 2 == 0 and ((B // 2) * L) % 128 == 0:
        return B // 2          # two 'parallel' grid steps -> both TCs busy
    return B                   # v5e / v6e: one step, max lane density


def block_forward(x, t, params, *, num_heads=4, bt=None, eps=1e-5):
    """Pallas forward of Block(x, t, condition); `condition` is unused by the module."""
    B, _, L = x.shape
    if bt is None:
        bt = _auto_bt(B, L)
    return _block_forward_jit(x, t, params, num_heads=num_heads, bt=bt, eps=eps)


# --------------------------- pure-JAX reference ---------------------------

def _mish_ref(v):
    return v * jnp.tanh(jax.nn.softplus(v))


def _layernorm_ref(v, g, b, eps):
    mu = jnp.mean(v, axis=-1, keepdims=True)
    var = jnp.mean((v - mu) ** 2, axis=-1, keepdims=True)
    return (v - mu) / jnp.sqrt(var + eps) * g + b


def _conv1d_same_ref(v, w, b):
    K = w.shape[-1]
    pad = K // 2
    L = v.shape[-1]
    vp = jnp.pad(v, ((0, 0), (0, 0), (pad, pad)))
    out = sum(jnp.einsum("oc,bcl->bol", w[:, :, k], vp[:, :, k:k + L]) for k in range(K))
    return out + b.reshape(1, -1, 1)


def block_ref(x, t, params, *, num_heads=4, eps=1e-5):
    B, n_in, L = x.shape
    E = L
    H = params["w_to"].shape[1]
    hd = E // num_heads

    # TimeEmbedding
    emb = params["embed_table"][t]
    h = _mish_ref(emb @ params["fc1_w"].T + params["fc1_b"])
    out0 = (h @ params["fc2_w"].T + params["fc2_b"])[:, None, :]        # (B,1,L)
    a = _mish_ref(out0)
    c1 = params["conv1_w"].reshape(1, n_in, 1) * a + params["conv1_b"].reshape(1, n_in, 1)
    te = jnp.einsum("oc,bcl->bol", params["convout_w"][:, :, 0],
                    _mish_ref(c1) + jnp.broadcast_to(out0, (B, n_in, L)))
    te = te + params["convout_b"].reshape(1, n_in, 1)

    x1 = x + te
    sc = _conv1d_same_ref(x1, params["w_pre"], params["b_pre"])
    sc = _mish_ref(_layernorm_ref(sc, params["ln1_g"], params["ln1_b"], eps))
    sc = jnp.einsum("oc,bcl->bol", params["w_sc"][:, :, 0], sc) + params["b_sc"].reshape(1, -1, 1)

    # SelfAttention
    xa = _layernorm_ref(sc, params["attn_ln_g"], params["attn_ln_b"], eps)
    qkv = jnp.einsum("oc,bcl->bol", params["w_qkv"][:, :, 0], xa)       # (B, 3H, E)
    q, k, v = qkv[:, :H], qkv[:, H:2 * H], qkv[:, 2 * H:]
    in_w = params["in_w"].reshape(3, E, E)
    in_b = params["in_b"].reshape(3, E)
    qp = jnp.einsum("bse,fe->bsf", q, in_w[0]) + in_b[0]
    kp = jnp.einsum("bse,fe->bsf", k, in_w[1]) + in_b[1]
    vp = jnp.einsum("bse,fe->bsf", v, in_w[2]) + in_b[2]
    qh = qp.reshape(B, H, num_heads, hd)
    kh = kp.reshape(B, H, num_heads, hd)
    vh = vp.reshape(B, H, num_heads, hd)
    s = jnp.einsum("bqnd,bknd->bnqk", qh, kh) * (hd ** -0.5)
    p = jax.nn.softmax(s, axis=-1)
    o = jnp.einsum("bnqk,bknd->bqnd", p, vh).reshape(B, H, E)
    o = jnp.einsum("bse,fe->bsf", o, params["out_w"]) + params["out_b"]
    att = (jnp.einsum("oc,bcl->bol", params["w_to"][:, :, 0], o)
           + params["b_to"].reshape(1, -1, 1) + sc)

    out = _conv1d_same_ref(att, params["w_post"], params["b_post"])
    out = _mish_ref(_layernorm_ref(out, params["ln2_g"], params["ln2_b"], eps))
    res = (jnp.einsum("oc,bcl->bol", params["w_res"][:, :, 0], x)
           + params["b_res"].reshape(1, -1, 1))
    return out + res


if __name__ == "__main__":
    B = 16
    n_in, n_out = 4, 6
    L = 16                                   # vector_size == dim (embed / LN axis)
    n_sc = (n_in + n_out) // 2 + 1           # n_shortcut = 6
    hidden_dim, num_heads = 16, 4
    dim_embed, dim_latent = 64, 128
    n_diff = 50

    key = jax.random.PRNGKey(0)
    ks = iter(jax.random.split(key, 40))

    def rnd(shape, scale=0.1):
        return scale * jax.random.normal(next(ks), shape, jnp.float32)

    # sinusoidal table matching TimeEmbedding.embed_table
    tt = jnp.arange(1, n_diff + 1, dtype=jnp.float32)
    half = dim_embed // 2
    freq = jnp.exp(jnp.arange(half, dtype=jnp.float32) * -(10.0 / (half - 1)))
    ang = tt[:, None] * freq[None, :]
    embed_table = jnp.concatenate([jnp.sin(ang), jnp.cos(ang)], axis=-1)

    params = {
        "embed_table": embed_table,
        "fc1_w": rnd((dim_latent, dim_embed)), "fc1_b": rnd((dim_latent,)),
        "fc2_w": rnd((L, dim_latent)), "fc2_b": rnd((L,)),
        "conv1_w": rnd((n_in, 1, 1)), "conv1_b": rnd((n_in,)),
        "convout_w": rnd((n_in, n_in, 1)), "convout_b": rnd((n_in,)),
        "w_pre": rnd((n_sc, n_in, 5)), "b_pre": rnd((n_sc,)),
        "ln1_g": 1.0 + rnd((L,)), "ln1_b": rnd((L,)),
        "w_sc": rnd((n_sc, n_sc, 1)), "b_sc": rnd((n_sc,)),
        "attn_ln_g": 1.0 + rnd((L,)), "attn_ln_b": rnd((L,)),
        "w_qkv": rnd((3 * hidden_dim, n_sc, 1)),
        "in_w": rnd((3 * L, L)), "in_b": rnd((3 * L,)),
        "out_w": rnd((L, L)), "out_b": rnd((L,)),
        "w_to": rnd((n_sc, hidden_dim, 1)), "b_to": rnd((n_sc,)),
        "w_post": rnd((n_out, n_sc, 5)), "b_post": rnd((n_out,)),
        "ln2_g": 1.0 + rnd((L,)), "ln2_b": rnd((L,)),
        "w_res": rnd((n_out, n_in, 1)), "b_res": rnd((n_out,)),
    }

    x = jax.random.normal(next(ks), (B, n_in, L), jnp.float32)
    t = jax.random.randint(next(ks), (B,), 0, n_diff)

    out = block_forward(x, t, params, num_heads=num_heads)
    out = jax.block_until_ready(out)

    ref = block_ref(x, t, params, num_heads=num_heads)
    assert out.shape == (B, n_out, L)
    err = float(jnp.max(jnp.abs(out - ref)))
    assert jnp.allclose(out, ref, atol=5e-2, rtol=5e-2), err

    print("KERNEL_OK")
</pallas_src>

<mosaic_0001>
module attributes {stable_mosaic.version = 11 : i64} {
  func.func @block_kernel(%arg0: i32, %arg1: memref<4x256xf32, #tpu.memory_space<vmem>>, %arg2: memref<16x64xf32, #tpu.memory_space<vmem>>, %arg3: memref<256x256xbf16, #tpu.memory_space<vmem>>, %arg4: memref<256x64xbf16, #tpu.memory_space<vmem>>, %arg5: memref<64x256xbf16, #tpu.memory_space<vmem>>, %arg6: memref<16x256xbf16, #tpu.memory_space<vmem>>, %arg7: memref<16x256xf32, #tpu.memory_space<vmem>>, %arg8: memref<5x256xf32, #tpu.memory_space<vmem>>, %arg9: memref<64x128xbf16, #tpu.memory_space<vmem>>, %arg10: memref<1x128xf32, #tpu.memory_space<vmem>>, %arg11: memref<128x16xbf16, #tpu.memory_space<vmem>>, %arg12: memref<1x16xf32, #tpu.memory_space<vmem>>, %arg13: memref<4x1xf32, #tpu.memory_space<vmem>>, %arg14: memref<4x1xf32, #tpu.memory_space<vmem>>, %arg15: memref<4x4xbf16, #tpu.memory_space<vmem>>, %arg16: memref<4x1xf32, #tpu.memory_space<vmem>>, %arg17: memref<5x6x4xbf16, #tpu.memory_space<vmem>>, %arg18: memref<6x1xf32, #tpu.memory_space<vmem>>, %arg19: memref<1x256xf32, #tpu.memory_space<vmem>>, %arg20: memref<1x256xf32, #tpu.memory_space<vmem>>, %arg21: memref<6x6xbf16, #tpu.memory_space<vmem>>, %arg22: memref<6x1xf32, #tpu.memory_space<vmem>>, %arg23: memref<1x256xf32, #tpu.memory_space<vmem>>, %arg24: memref<1x256xf32, #tpu.memory_space<vmem>>, %arg25: memref<48x6xbf16, #tpu.memory_space<vmem>>, %arg26: memref<3x256x256xbf16, #tpu.memory_space<vmem>>, %arg27: memref<3x256xf32, #tpu.memory_space<vmem>>, %arg28: memref<256x256xbf16, #tpu.memory_space<vmem>>, %arg29: memref<6x256xf32, #tpu.memory_space<vmem>>, %arg30: memref<6x16xbf16, #tpu.memory_space<vmem>>, %arg31: memref<5x6x6xbf16, #tpu.memory_space<vmem>>, %arg32: memref<6x1xf32, #tpu.memory_space<vmem>>, %arg33: memref<1x256xf32, #tpu.memory_space<vmem>>, %arg34: memref<1x256xf32, #tpu.memory_space<vmem>>, %arg35: memref<6x4xbf16, #tpu.memory_space<vmem>>, %arg36: memref<6x1xf32, #tpu.memory_space<vmem>>, %arg37: memref<6x256xf32, #tpu.memory_space<vmem>>) attributes {dimension_semantics = [#tpu.dimension_semantics<parallel>], iteration_bounds = array<i64: 1>, scalar_prefetch = 0 : i64, scratch_operands = 0 : i64, tpu.core_type = #tpu.core_type<tc>, window_params = [{transform_indices = @transform_0, window_bounds = array<i64: 4, 256>}, {transform_indices = @transform_1, window_bounds = array<i64: 16, 64>}, {pipeline_mode = #tpu.pipeline_mode<synchronous>, transform_indices = @transform_2, window_bounds = array<i64: 256, 256>}, {pipeline_mode = #tpu.pipeline_mode<synchronous>, transform_indices = @transform_3, window_bounds = array<i64: 256, 64>}, {pipeline_mode = #tpu.pipeline_mode<synchronous>, transform_indices = @transform_4, window_bounds = array<i64: 64, 256>}, {pipeline_mode = #tpu.pipeline_mode<synchronous>, transform_indices = @transform_5, window_bounds = array<i64: 16, 256>}, {pipeline_mode = #tpu.pipeline_mode<synchronous>, transform_indices = @transform_6, window_bounds = array<i64: 16, 256>}, {pipeline_mode = #tpu.pipeline_mode<synchronous>, transform_indices = @transform_7, window_bounds = array<i64: 5, 256>}, {pipeline_mode = #tpu.pipeline_mode<synchronous>, transform_indices = @transform_8, window_bounds = array<i64: 64, 128>}, {pipeline_mode = #tpu.pipeline_mode<synchronous>, transform_indices = @transform_9, window_bounds = array<i64: 1, 128>}, {pipeline_mode = #tpu.pipeline_mode<synchronous>, transform_indices = @transform_10, window_bounds = array<i64: 128, 16>}, {pipeline_mode = #tpu.pipeline_mode<synchronous>, transform_indices = @transform_11, window_bounds = array<i64: 1, 16>}, {pipeline_mode = #tpu.pipeline_mode<synchronous>, transform_indices = @transform_12, window_bounds = array<i64: 4, 1>}, {pipeline_mode = #tpu.pipeline_mode<synchronous>, transform_indices = @transform_13, window_bounds = array<i64: 4, 1>}, {pipeline_mode = #tpu.pipeline_mode<synchronous>, transform_indices = @transform_14, window_bounds = array<i64: 4, 4>}, {pipeline_mode = #tpu.pipeline_mode<synchronous>, transform_indices = @transform_15, window_bounds = array<i64: 4, 1>}, {pipeline_mode = #tpu.pipeline_mode<synchronous>, transform_indices = @transform_16, window_bounds = array<i64: 5, 6, 4>}, {pipeline_mode = #tpu.pipeline_mode<synchronous>, transform_indices = @transform_17, window_bounds = array<i64: 6, 1>}, {pipeline_mode = #tpu.pipeline_mode<synchronous>, transform_indices = @transform_18, window_bounds = array<i64: 1, 256>}, {pipeline_mode = #tpu.pipeline_mode<synchronous>, transform_indices = @transform_19, window_bounds = array<i64: 1, 256>}, {pipeline_mode = #tpu.pipeline_mode<synchronous>, transform_indices = @transform_20, window_bounds = array<i64: 6, 6>}, {pipeline_mode = #tpu.pipeline_mode<synchronous>, transform_indices = @transform_21, window_bounds = array<i64: 6, 1>}, {pipeline_mode = #tpu.pipeline_mode<synchronous>, transform_indices = @transform_22, window_bounds = array<i64: 1, 256>}, {pipeline_mode = #tpu.pipeline_mode<synchronous>, transform_indices = @transform_23, window_bounds = array<i64: 1, 256>}, {pipeline_mode = #tpu.pipeline_mode<synchronous>, transform_indices = @transform_24, window_bounds = array<i64: 48, 6>}, {pipeline_mode = #tpu.pipeline_mode<synchronous>, transform_indices = @transform_25, window_bounds = array<i64: 3, 256, 256>}, {pipeline_mode = #tpu.pipeline_mode<synchronous>, transform_indices = @transform_26, window_bounds = array<i64: 3, 256>}, {pipeline_mode = #tpu.pipeline_mode<synchronous>, transform_indices = @transform_27, window_bounds = array<i64: 256, 256>}, {pipeline_mode = #tpu.pipeline_mode<synchronous>, transform_indices = @transform_28, window_bounds = array<i64: 6, 256>}, {pipeline_mode = #tpu.pipeline_mode<synchronous>, transform_indices = @transform_29, window_bounds = array<i64: 6, 16>}, {pipeline_mode = #tpu.pipeline_mode<synchronous>, transform_indices = @transform_30, window_bounds = array<i64: 5, 6, 6>}, {pipeline_mode = #tpu.pipeline_mode<synchronous>, transform_indices = @transform_31, window_bounds = array<i64: 6, 1>}, {pipeline_mode = #tpu.pipeline_mode<synchronous>, transform_indices = @transform_32, window_bounds = array<i64: 1, 256>}, {pipeline_mode = #tpu.pipeline_mode<synchronous>, transform_indices = @transform_33, window_bounds = array<i64: 1, 256>}, {pipeline_mode = #tpu.pipeline_mode<synchronous>, transform_indices = @transform_34, window_bounds = array<i64: 6, 4>}, {pipeline_mode = #tpu.pipeline_mode<synchronous>, transform_indices = @transform_35, window_bounds = array<i64: 6, 1>}, {transform_indices = @transform_36, window_bounds = array<i64: 6, 256>}]} {
    %c0 = arith.constant 0 : index
    %c0_0 = arith.constant 0 : index
    %0 = vector.load %arg1[%c0, %c0_0] : memref<4x256xf32, #tpu.memory_space<vmem>>, vector<4x256xf32>
    %c0_1 = arith.constant 0 : index
    %c0_2 = arith.constant 0 : index
    %1 = vector.load %arg3[%c0_1, %c0_2] : memref<256x256xbf16, #tpu.memory_space<vmem>>, vector<256x256xbf16>
    %c0_3 = arith.constant 0 : index
    %c0_4 = arith.constant 0 : index
    %2 = vector.load %arg2[%c0_3, %c0_4] : memref<16x64xf32, #tpu.memory_space<vmem>>, vector<16x64xf32>
    %c0_5 = arith.constant 0 : index
    %c0_6 = arith.constant 0 : index
    %3 = vector.load %arg9[%c0_5, %c0_6] : memref<64x128xbf16, #tpu.memory_space<vmem>>, vector<64x128xbf16>
    %4 = arith.truncf %2 : vector<16x64xf32> to vector<16x64xbf16>
    %cst = arith.constant dense<0.000000e+00> : vector<16x128xf32>
    %5 = tpu.matmul %4, %3, %cst {dimension_numbers = #tpu.dot_dimension_numbers<[1], [0], [0], [1], [0, 0, 1, 1], [], []>} : vector<16x64xbf16>, vector<64x128xbf16>, vector<16x128xf32> -> vector<16x128xf32>
    %c0_7 = arith.constant 0 : index
    %c0_8 = arith.constant 0 : index
    %6 = vector.load %arg10[%c0_7, %c0_8] : memref<1x128xf32, #tpu.memory_space<vmem>>, vector<1x128xf32>
    %7 = vector.broadcast %6 : vector<1x128xf32> to vector<16x128xf32>
    %8 = arith.addf %5, %7 : vector<16x128xf32>
    %cst_9 = arith.constant 2.500000e+01 : f32
    %9 = vector.broadcast %cst_9 : f32 to vector<16x128xf32>
    %10 = arith.minimumf %8, %9 : vector<16x128xf32>
    %11 = math.exp %10 : vector<16x128xf32>
    %cst_10 = arith.constant 1.000000e+00 : f32
    %12 = vector.broadcast %cst_10 : f32 to vector<16x128xf32>
    %13 = arith.addf %12, %11 : vector<16x128xf32>
    %cst_11 = arith.constant 1.000000e+00 : f32
    %14 = vector.broadcast %cst_11 : f32 to vector<16x128xf32>
    %15 = arith.addf %14, %11 : vector<16x128xf32>
    %16 = arith.mulf %13, %15 : vector<16x128xf32>
    %cst_12 = arith.constant 1.000000e+00 : f32
    %17 = vector.broadcast %cst_12 : f32 to vector<16x128xf32>
    %18 = arith.addf %16, %17 : vector<16x128xf32>
    %19 = tpu.reciprocal %18 {approx = true} : vector<16x128xf32> -> vector<16x128xf32>
    %cst_13 = arith.constant 2.000000e+00 : f32
    %20 = vector.broadcast %cst_13 : f32 to vector<16x128xf32>
    %21 = arith.mulf %20, %19 : vector<16x128xf32>
    %cst_14 = arith.constant 1.000000e+00 : f32
    %22 = vector.broadcast %cst_14 : f32 to vector<16x128xf32>
    %23 = arith.subf %22, %21 : vector<16x128xf32>
    %24 = arith.mulf %8, %23 : vector<16x128xf32>
    %c0_15 = arith.constant 0 : index
    %c0_16 = arith.constant 0 : index
    %25 = vector.load %arg11[%c0_15, %c0_16] : memref<128x16xbf16, #tpu.memory_space<vmem>>, vector<128x16xbf16>
    %26 = arith.truncf %24 : vector<16x128xf32> to vector<16x128xbf16>
    %cst_17 = arith.constant dense<0.000000e+00> : vector<16x16xf32>
    %27 = tpu.matmul %26, %25, %cst_17 {dimension_numbers = #tpu.dot_dimension_numbers<[1], [0], [0], [1], [0, 0, 1, 1], [], []>} : vector<16x128xbf16>, vector<128x16xbf16>, vector<16x16xf32> -> vector<16x16xf32>
    %c0_18 = arith.constant 0 : index
    %c0_19 = arith.constant 0 : index
    %28 = vector.load %arg12[%c0_18, %c0_19] : memref<1x16xf32, #tpu.memory_space<vmem>>, vector<1x16xf32>
    %29 = vector.broadcast %28 : vector<1x16xf32> to vector<16x16xf32>
    %30 = arith.addf %27, %29 : vector<16x16xf32>
    %c0_20 = arith.constant 0 : index
    %c0_21 = arith.constant 0 : index
    %31 = vector.load %arg6[%c0_20, %c0_21] : memref<16x256xbf16, #tpu.memory_space<vmem>>, vector<16x256xbf16>
    %32 = arith.truncf %30 : vector<16x16xf32> to vector<16x16xbf16>
    %cst_22 = arith.constant dense<0.000000e+00> : vector<16x256xf32>
    %33 = tpu.matmul %32, %31, %cst_22 {dimension_numbers = #tpu.dot_dimension_numbers<[1], [0], [0], [1], [0, 0, 1, 1], [], []>} : vector<16x16xbf16>, vector<16x256xbf16>, vector<16x256xf32> -> vector<16x256xf32>
    %c0_23 = arith.constant 0 : index
    %c0_24 = arith.constant 0 : index
    %34 = vector.load %arg7[%c0_23, %c0_24] : memref<16x256xf32, #tpu.memory_space<vmem>>, vector<16x256xf32>
    %35 = arith.mulf %33, %34 : vector<16x256xf32>
    %cst_25 = arith.constant dense<0.000000e+00> : vector<256xf32>
    %36 = vector.multi_reduction <add>, %35, %cst_25 [0] : vector<16x256xf32> to vector<256xf32>
    %37 = vector.shape_cast %36 : vector<256xf32> to vector<1x256xf32>
    %c0_26 = arith.constant 0 : index
    %c0_27 = arith.constant 0 : index
    %38 = vector.load %arg13[%c0_26, %c0_27] : memref<4x1xf32, #tpu.memory_space<vmem>>, vector<4x1xf32>
    %cst_28 = arith.constant 2.500000e+01 : f32
    %39 = vector.broadcast %cst_28 : f32 to vector<1x256xf32>
    %40 = arith.minimumf %37, %39 : vector<1x256xf32>
    %41 = math.exp %40 : vector<1x256xf32>
    %cst_29 = arith.constant 1.000000e+00 : f32
    %42 = vector.broadcast %cst_29 : f32 to vector<1x256xf32>
    %43 = arith.addf %42, %41 : vector<1x256xf32>
    %cst_30 = arith.constant 1.000000e+00 : f32
    %44 = vector.broadcast %cst_30 : f32 to vector<1x256xf32>
    %45 = arith.addf %44, %41 : vector<1x256xf32>
    %46 = arith.mulf %43, %45 : vector<1x256xf32>
    %cst_31 = arith.constant 1.000000e+00 : f32
    %47 = vector.broadcast %cst_31 : f32 to vector<1x256xf32>
    %48 = arith.addf %46, %47 : vector<1x256xf32>
    %49 = tpu.reciprocal %48 {approx = true} : vector<1x256xf32> -> vector<1x256xf32>
    %cst_32 = arith.constant 2.000000e+00 : f32
    %50 = vector.broadcast %cst_32 : f32 to vector<1x256xf32>
    %51 = arith.mulf %50, %49 : vector<1x256xf32>
    %cst_33 = arith.constant 1.000000e+00 : f32
    %52 = vector.broadcast %cst_33 : f32 to vector<1x256xf32>
    %53 = arith.subf %52, %51 : vector<1x256xf32>
    %54 = arith.mulf %37, %53 : vector<1x256xf32>
    %55 = vector.broadcast %38 : vector<4x1xf32> to vector<4x256xf32>
    %56 = vector.broadcast %54 : vector<1x256xf32> to vector<4x256xf32>
    %57 = arith.mulf %55, %56 : vector<4x256xf32>
    %c0_34 = arith.constant 0 : index
    %c0_35 = arith.constant 0 : index
    %58 = vector.load %arg14[%c0_34, %c0_35] : memref<4x1xf32, #tpu.memory_space<vmem>>, vector<4x1xf32>
    %59 = vector.broadcast %58 : vector<4x1xf32> to vector<4x256xf32>
    %60 = arith.addf %57, %59 : vector<4x256xf32>
    %c0_36 = arith.constant 0 : index
    %c0_37 = arith.constant 0 : index
    %61 = vector.load %arg15[%c0_36, %c0_37] : memref<4x4xbf16, #tpu.memory_space<vmem>>, vector<4x4xbf16>
    %cst_38 = arith.constant 2.500000e+01 : f32
    %62 = vector.broadcast %cst_38 : f32 to vector<4x256xf32>
    %63 = arith.minimumf %60, %62 : vector<4x256xf32>
    %64 = math.exp %63 : vector<4x256xf32>
    %cst_39 = arith.constant 1.000000e+00 : f32
    %65 = vector.broadcast %cst_39 : f32 to vector<4x256xf32>
    %66 = arith.addf %65, %64 : vector<4x256xf32>
    %cst_40 = arith.constant 1.000000e+00 : f32
    %67 = vector.broadcast %cst_40 : f32 to vector<4x256xf32>
    %68 = arith.addf %67, %64 : vector<4x256xf32>
    %69 = arith.mulf %66, %68 : vector<4x256xf32>
    %cst_41 = arith.constant 1.000000e+00 : f32
    %70 = vector.broadcast %cst_41 : f32 to vector<4x256xf32>
    %71 = arith.addf %69, %70 : vector<4x256xf32>
    %72 = tpu.reciprocal %71 {approx = true} : vector<4x256xf32> -> vector<4x256xf32>
    %cst_42 = arith.constant 2.000000e+00 : f32
    %73 = vector.broadcast %cst_42 : f32 to vector<4x256xf32>
    %74 = arith.mulf %73, %72 : vector<4x256xf32>
    %cst_43 = arith.constant 1.000000e+00 : f32
    %75 = vector.broadcast %cst_43 : f32 to vector<4x256xf32>
    %76 = arith.subf %75, %74 : vector<4x256xf32>
    %77 = arith.mulf %60, %76 : vector<4x256xf32>
    %78 = vector.broadcast %37 : vector<1x256xf32> to vector<4x256xf32>
    %79 = arith.addf %77, %78 : vector<4x256xf32>
    %80 = arith.truncf %79 : vector<4x256xf32> to vector<4x256xbf16>
    %cst_44 = arith.constant dense<0.000000e+00> : vector<4x256xf32>
    %81 = tpu.matmul %61, %80, %cst_44 {dimension_numbers = #tpu.dot_dimension_numbers<[1], [0], [0], [1], [0, 0, 1, 1], [], []>} : vector<4x4xbf16>, vector<4x256xbf16>, vector<4x256xf32> -> vector<4x256xf32>
    %c0_45 = arith.constant 0 : index
    %c0_46 = arith.constant 0 : index
    %82 = vector.load %arg16[%c0_45, %c0_46] : memref<4x1xf32, #tpu.memory_space<vmem>>, vector<4x1xf32>
    %83 = vector.broadcast %82 : vector<4x1xf32> to vector<4x256xf32>
    %84 = arith.addf %81, %83 : vector<4x256xf32>
    %85 = arith.addf %0, %84 : vector<4x256xf32>
    %c0_47 = arith.constant 0 : index
    %c0_48 = arith.constant 0 : index
    %86 = vector.load %arg8[%c0_47, %c0_48] : memref<5x256xf32, #tpu.memory_space<vmem>>, vector<5x256xf32>
    %c2 = arith.constant 2 : index
    %c0_49 = arith.constant 0 : index
    %c0_50 = arith.constant 0 : index
    %87 = vector.load %arg17[%c2, %c0_49, %c0_50] : memref<5x6x4xbf16, #tpu.memory_space<vmem>>, vector<1x6x4xbf16>
    %88 = vector.shape_cast %87 : vector<1x6x4xbf16> to vector<6x4xbf16>
    %89 = arith.truncf %85 : vector<4x256xf32> to vector<4x256xbf16>
    %cst_51 = arith.constant dense<0.000000e+00> : vector<6x256xf32>
    %90 = tpu.matmul %88, %89, %cst_51 {dimension_numbers = #tpu.dot_dimension_numbers<[1], [0], [0], [1], [0, 0, 1, 1], [], []>} : vector<6x4xbf16>, vector<4x256xbf16>, vector<6x256xf32> -> vector<6x256xf32>
    %c2_i32 = arith.constant 2 : i32
    %91 = tpu.dynamic_rotate %85 by %c2_i32 dim 1 : vector<4x256xf32>, i32 -> vector<4x256xf32>
    %92 = vector.extract_strided_slice %86 {offsets = [0, 0], sizes = [1, 256], strides = [1, 1]} : vector<5x256xf32> to vector<1x256xf32>
    %93 = vector.broadcast %92 : vector<1x256xf32> to vector<4x256xf32>
    %94 = arith.mulf %91, %93 : vector<4x256xf32>
    %c0_52 = arith.constant 0 : index
    %c0_53 = arith.constant 0 : index
    %c0_54 = arith.constant 0 : index
    %95 = vector.load %arg17[%c0_52, %c0_53, %c0_54] : memref<5x6x4xbf16, #tpu.memory_space<vmem>>, vector<1x6x4xbf16>
    %96 = vector.shape_cast %95 : vector<1x6x4xbf16> to vector<6x4xbf16>
    %97 = arith.truncf %94 : vector<4x256xf32> to vector<4x256xbf16>
    %cst_55 = arith.constant dense<0.000000e+00> : vector<6x256xf32>
    %98 = tpu.matmul %96, %97, %cst_55 {dimension_numbers = #tpu.dot_dimension_numbers<[1], [0], [0], [1], [0, 0, 1, 1], [], []>} : vector<6x4xbf16>, vector<4x256xbf16>, vector<6x256xf32> -> vector<6x256xf32>
    %99 = arith.addf %90, %98 : vector<6x256xf32>
    %c1_i32 = arith.constant 1 : i32
    %100 = tpu.dynamic_rotate %85 by %c1_i32 dim 1 : vector<4x256xf32>, i32 -> vector<4x256xf32>
    %101 = vector.extract_strided_slice %86 {offsets = [1, 0], sizes = [1, 256], strides = [1, 1]} : vector<5x256xf32> to vector<1x256xf32>
    %102 = vector.broadcast %101 : vector<1x256xf32> to vector<4x256xf32>
    %103 = arith.mulf %100, %102 : vector<4x256xf32>
    %c1 = arith.constant 1 : index
    %c0_56 = arith.constant 0 : index
    %c0_57 = arith.constant 0 : index
    %104 = vector.load %arg17[%c1, %c0_56, %c0_57] : memref<5x6x4xbf16, #tpu.memory_space<vmem>>, vector<1x6x4xbf16>
    %105 = vector.shape_cast %104 : vector<1x6x4xbf16> to vector<6x4xbf16>
    %106 = arith.truncf %103 : vector<4x256xf32> to vector<4x256xbf16>
    %cst_58 = arith.constant dense<0.000000e+00> : vector<6x256xf32>
    %107 = tpu.matmul %105, %106, %cst_58 {dimension_numbers = #tpu.dot_dimension_numbers<[1], [0], [0], [1], [0, 0, 1, 1], [], []>} : vector<6x4xbf16>, vector<4x256xbf16>, vector<6x256xf32> -> vector<6x256xf32>
    %108 = arith.addf %99, %107 : vector<6x256xf32>
    %c255_i32 = arith.constant 255 : i32
    %109 = tpu.dynamic_rotate %85 by %c255_i32 dim 1 : vector<4x256xf32>, i32 -> vector<4x256xf32>
    %110 = vector.extract_strided_slice %86 {offsets = [3, 0], sizes = [1, 256], strides = [1, 1]} : vector<5x256xf32> to vector<1x256xf32>
    %111 = vector.broadcast %110 : vector<1x256xf32> to vector<4x256xf32>
    %112 = arith.mulf %109, %111 : vector<4x256xf32>
    %c3 = arith.constant 3 : index
    %c0_59 = arith.constant 0 : index
    %c0_60 = arith.constant 0 : index
    %113 = vector.load %arg17[%c3, %c0_59, %c0_60] : memref<5x6x4xbf16, #tpu.memory_space<vmem>>, vector<1x6x4xbf16>
    %114 = vector.shape_cast %113 : vector<1x6x4xbf16> to vector<6x4xbf16>
    %115 = arith.truncf %112 : vector<4x256xf32> to vector<4x256xbf16>
    %cst_61 = arith.constant dense<0.000000e+00> : vector<6x256xf32>
    %116 = tpu.matmul %114, %115, %cst_61 {dimension_numbers = #tpu.dot_dimension_numbers<[1], [0], [0], [1], [0, 0, 1, 1], [], []>} : vector<6x4xbf16>, vector<4x256xbf16>, vector<6x256xf32> -> vector<6x256xf32>
    %117 = arith.addf %108, %116 : vector<6x256xf32>
    %c254_i32 = arith.constant 254 : i32
    %118 = tpu.dynamic_rotate %85 by %c254_i32 dim 1 : vector<4x256xf32>, i32 -> vector<4x256xf32>
    %119 = vector.extract_strided_slice %86 {offsets = [4, 0], sizes = [1, 256], strides = [1, 1]} : vector<5x256xf32> to vector<1x256xf32>
    %120 = vector.broadcast %119 : vector<1x256xf32> to vector<4x256xf32>
    %121 = arith.mulf %118, %120 : vector<4x256xf32>
    %c4 = arith.constant 4 : index
    %c0_62 = arith.constant 0 : index
    %c0_63 = arith.constant 0 : index
    %122 = vector.load %arg17[%c4, %c0_62, %c0_63] : memref<5x6x4xbf16, #tpu.memory_space<vmem>>, vector<1x6x4xbf16>
    %123 = vector.shape_cast %122 : vector<1x6x4xbf16> to vector<6x4xbf16>
    %124 = arith.truncf %121 : vector<4x256xf32> to vector<4x256xbf16>
    %cst_64 = arith.constant dense<0.000000e+00> : vector<6x256xf32>
    %125 = tpu.matmul %123, %124, %cst_64 {dimension_numbers = #tpu.dot_dimension_numbers<[1], [0], [0], [1], [0, 0, 1, 1], [], []>} : vector<6x4xbf16>, vector<4x256xbf16>, vector<6x256xf32> -> vector<6x256xf32>
    %126 = arith.addf %117, %125 : vector<6x256xf32>
    %c0_65 = arith.constant 0 : index
    %c0_66 = arith.constant 0 : index
    %127 = vector.load %arg18[%c0_65, %c0_66] : memref<6x1xf32, #tpu.memory_space<vmem>>, vector<6x1xf32>
    %128 = vector.broadcast %127 : vector<6x1xf32> to vector<6x256xf32>
    %129 = arith.addf %126, %128 : vector<6x256xf32>
    %130 = arith.truncf %129 : vector<6x256xf32> to vector<6x256xbf16>
    %cst_67 = arith.constant dense<0.000000e+00> : vector<6x256xf32>
    %131 = tpu.matmul %130, %1, %cst_67 {dimension_numbers = #tpu.dot_dimension_numbers<[1], [0], [0], [1], [0, 0, 1, 1], [], []>} : vector<6x256xbf16>, vector<256x256xbf16>, vector<6x256xf32> -> vector<6x256xf32>
    %132 = arith.subf %129, %131 : vector<6x256xf32>
    %133 = arith.mulf %132, %132 : vector<6x256xf32>
    %134 = arith.truncf %133 : vector<6x256xf32> to vector<6x256xbf16>
    %cst_68 = arith.constant dense<0.000000e+00> : vector<6x256xf32>
    %135 = tpu.matmul %134, %1, %cst_68 {dimension_numbers = #tpu.dot_dimension_numbers<[1], [0], [0], [1], [0, 0, 1, 1], [], []>} : vector<6x256xbf16>, vector<256x256xbf16>, vector<6x256xf32> -> vector<6x256xf32>
    %cst_69 = arith.constant 9.99999974E-6 : f32
    %136 = vector.broadcast %cst_69 : f32 to vector<6x256xf32>
    %137 = arith.addf %135, %136 : vector<6x256xf32>
    %138 = math.rsqrt %137 : vector<6x256xf32>
    %139 = arith.mulf %132, %138 : vector<6x256xf32>
    %c0_70 = arith.constant 0 : index
    %c0_71 = arith.constant 0 : index
    %140 = vector.load %arg19[%c0_70, %c0_71] : memref<1x256xf32, #tpu.memory_space<vmem>>, vector<1x256xf32>
    %141 = vector.broadcast %140 : vector<1x256xf32> to vector<6x256xf32>
    %142 = arith.mulf %139, %141 : vector<6x256xf32>
    %c0_72 = arith.constant 0 : index
    %c0_73 = arith.constant 0 : index
    %143 = vector.load %arg20[%c0_72, %c0_73] : memref<1x256xf32, #tpu.memory_space<vmem>>, vector<1x256xf32>
    %144 = vector.broadcast %143 : vector<1x256xf32> to vector<6x256xf32>
    %145 = arith.addf %142, %144 : vector<6x256xf32>
    %cst_74 = arith.constant 2.500000e+01 : f32
    %146 = vector.broadcast %cst_74 : f32 to vector<6x256xf32>
    %147 = arith.minimumf %145, %146 : vector<6x256xf32>
    %148 = math.exp %147 : vector<6x256xf32>
    %cst_75 = arith.constant 1.000000e+00 : f32
    %149 = vector.broadcast %cst_75 : f32 to vector<6x256xf32>
    %150 = arith.addf %149, %148 : vector<6x256xf32>
    %cst_76 = arith.constant 1.000000e+00 : f32
    %151 = vector.broadcast %cst_76 : f32 to vector<6x256xf32>
    %152 = arith.addf %151, %148 : vector<6x256xf32>
    %153 = arith.mulf %150, %152 : vector<6x256xf32>
    %cst_77 = arith.constant 1.000000e+00 : f32
    %154 = vector.broadcast %cst_77 : f32 to vector<6x256xf32>
    %155 = arith.addf %153, %154 : vector<6x256xf32>
    %156 = tpu.reciprocal %155 {approx = true} : vector<6x256xf32> -> vector<6x256xf32>
    %cst_78 = arith.constant 2.000000e+00 : f32
    %157 = vector.broadcast %cst_78 : f32 to vector<6x256xf32>
    %158 = arith.mulf %157, %156 : vector<6x256xf32>
    %cst_79 = arith.constant 1.000000e+00 : f32
    %159 = vector.broadcast %cst_79 : f32 to vector<6x256xf32>
    %160 = arith.subf %159, %158 : vector<6x256xf32>
    %161 = arith.mulf %145, %160 : vector<6x256xf32>
    %c0_80 = arith.constant 0 : index
    %c0_81 = arith.constant 0 : index
    %162 = vector.load %arg21[%c0_80, %c0_81] : memref<6x6xbf16, #tpu.memory_space<vmem>>, vector<6x6xbf16>
    %163 = arith.truncf %161 : vector<6x256xf32> to vector<6x256xbf16>
    %cst_82 = arith.constant dense<0.000000e+00> : vector<6x256xf32>
    %164 = tpu.matmul %162, %163, %cst_82 {dimension_numbers = #tpu.dot_dimension_numbers<[1], [0], [0], [1], [0, 0, 1, 1], [], []>} : vector<6x6xbf16>, vector<6x256xbf16>, vector<6x256xf32> -> vector<6x256xf32>
    %c0_83 = arith.constant 0 : index
    %c0_84 = arith.constant 0 : index
    %165 = vector.load %arg22[%c0_83, %c0_84] : memref<6x1xf32, #tpu.memory_space<vmem>>, vector<6x1xf32>
    %166 = vector.broadcast %165 : vector<6x1xf32> to vector<6x256xf32>
    %167 = arith.addf %164, %166 : vector<6x256xf32>
    %168 = arith.truncf %167 : vector<6x256xf32> to vector<6x256xbf16>
    %cst_85 = arith.constant dense<0.000000e+00> : vector<6x256xf32>
    %169 = tpu.matmul %168, %1, %cst_85 {dimension_numbers = #tpu.dot_dimension_numbers<[1], [0], [0], [1], [0, 0, 1, 1], [], []>} : vector<6x256xbf16>, vector<256x256xbf16>, vector<6x256xf32> -> vector<6x256xf32>
    %170 = arith.subf %167, %169 : vector<6x256xf32>
    %171 = arith.mulf %170, %170 : vector<6x256xf32>
    %172 = arith.truncf %171 : vector<6x256xf32> to vector<6x256xbf16>
    %cst_86 = arith.constant dense<0.000000e+00> : vector<6x256xf32>
    %173 = tpu.matmul %172, %1, %cst_86 {dimension_numbers = #tpu.dot_dimension_numbers<[1], [0], [0], [1], [0, 0, 1, 1], [], []>} : vector<6x256xbf16>, vector<256x256xbf16>, vector<6x256xf32> -> vector<6x256xf32>
    %cst_87 = arith.constant 9.99999974E-6 : f32
    %174 = vector.broadcast %cst_87 : f32 to vector<6x256xf32>
    %175 = arith.addf %173, %174 : vector<6x256xf32>
    %176 = math.rsqrt %175 : vector<6x256xf32>
    %177 = arith.mulf %170, %176 : vector<6x256xf32>
    %c0_88 = arith.constant 0 : index
    %c0_89 = arith.constant 0 : index
    %178 = vector.load %arg23[%c0_88, %c0_89] : memref<1x256xf32, #tpu.memory_space<vmem>>, vector<1x256xf32>
    %179 = vector.broadcast %178 : vector<1x256xf32> to vector<6x256xf32>
    %180 = arith.mulf %177, %179 : vector<6x256xf32>
    %c0_90 = arith.constant 0 : index
    %c0_91 = arith.constant 0 : index
    %181 = vector.load %arg24[%c0_90, %c0_91] : memref<1x256xf32, #tpu.memory_space<vmem>>, vector<1x256xf32>
    %182 = vector.broadcast %181 : vector<1x256xf32> to vector<6x256xf32>
    %183 = arith.addf %180, %182 : vector<6x256xf32>
    %c0_92 = arith.constant 0 : index
    %c0_93 = arith.constant 0 : index
    %184 = vector.load %arg25[%c0_92, %c0_93] : memref<48x6xbf16, #tpu.memory_space<vmem>>, vector<48x6xbf16>
    %185 = arith.truncf %183 : vector<6x256xf32> to vector<6x256xbf16>
    %cst_94 = arith.constant dense<0.000000e+00> : vector<48x256xf32>
    %186 = tpu.matmul %184, %185, %cst_94 {dimension_numbers = #tpu.dot_dimension_numbers<[1], [0], [0], [1], [0, 0, 1, 1], [], []>} : vector<48x6xbf16>, vector<6x256xbf16>, vector<48x256xf32> -> vector<48x256xf32>
    %187 = vector.extract_strided_slice %186 {offsets = [0, 0], sizes = [16, 256], strides = [1, 1]} : vector<48x256xf32> to vector<16x256xf32>
    %188 = vector.extract_strided_slice %186 {offsets = [16, 0], sizes = [16, 256], strides = [1, 1]} : vector<48x256xf32> to vector<16x256xf32>
    %189 = vector.extract_strided_slice %186 {offsets = [32, 0], sizes = [16, 256], strides = [1, 1]} : vector<48x256xf32> to vector<16x256xf32>
    %c0_95 = arith.constant 0 : index
    %c0_96 = arith.constant 0 : index
    %190 = vector.load %arg27[%c0_95, %c0_96] : memref<3x256xf32, #tpu.memory_space<vmem>>, vector<3x256xf32>
    %c0_97 = arith.constant 0 : index
    %c0_98 = arith.constant 0 : index
    %c0_99 = arith.constant 0 : index
    %191 = vector.load %arg26[%c0_97, %c0_98, %c0_99] : memref<3x256x256xbf16, #tpu.memory_space<vmem>>, vector<1x256x256xbf16>
    %192 = vector.shape_cast %191 : vector<1x256x256xbf16> to vector<256x256xbf16>
    %193 = arith.truncf %187 : vector<16x256xf32> to vector<16x256xbf16>
    %cst_100 = arith.constant dense<0.000000e+00> : vector<16x256xf32>
    %194 = tpu.matmul %193, %192, %cst_100 {dimension_numbers = #tpu.dot_dimension_numbers<[1], [0], [0], [1], [0, 0, 1, 1], [], []>} : vector<16x256xbf16>, vector<256x256xbf16>, vector<16x256xf32> -> vector<16x256xf32>
    %195 = vector.extract_strided_slice %190 {offsets = [0, 0], sizes = [1, 256], strides = [1, 1]} : vector<3x256xf32> to vector<1x256xf32>
    %196 = vector.broadcast %195 : vector<1x256xf32> to vector<16x256xf32>
    %197 = arith.addf %194, %196 : vector<16x256xf32>
    %cst_101 = arith.constant 5.000000e-01 : f32
    %198 = vector.broadcast %cst_101 : f32 to vector<16x256xf32>
    %199 = arith.mulf %197, %198 : vector<16x256xf32>
    %c1_102 = arith.constant 1 : index
    %c0_103 = arith.constant 0 : index
    %c0_104 = arith.constant 0 : index
    %200 = vector.load %arg26[%c1_102, %c0_103, %c0_104] : memref<3x256x256xbf16, #tpu.memory_space<vmem>>, vector<1x256x256xbf16>
    %201 = vector.shape_cast %200 : vector<1x256x256xbf16> to vector<256x256xbf16>
    %202 = arith.truncf %188 : vector<16x256xf32> to vector<16x256xbf16>
    %cst_105 = arith.constant dense<0.000000e+00> : vector<16x256xf32>
    %203 = tpu.matmul %202, %201, %cst_105 {dimension_numbers = #tpu.dot_dimension_numbers<[1], [0], [0], [1], [0, 0, 1, 1], [], []>} : vector<16x256xbf16>, vector<256x256xbf16>, vector<16x256xf32> -> vector<16x256xf32>
    %204 = vector.extract_strided_slice %190 {offsets = [1, 0], sizes = [1, 256], strides = [1, 1]} : vector<3x256xf32> to vector<1x256xf32>
    %205 = vector.broadcast %204 : vector<1x256xf32> to vector<16x256xf32>
    %206 = arith.addf %203, %205 : vector<16x256xf32>
    %c2_106 = arith.constant 2 : index
    %c0_107 = arith.constant 0 : index
    %c0_108 = arith.constant 0 : index
    %207 = vector.load %arg26[%c2_106, %c0_107, %c0_108] : memref<3x256x256xbf16, #tpu.memory_space<vmem>>, vector<1x256x256xbf16>
    %208 = vector.shape_cast %207 : vector<1x256x256xbf16> to vector<256x256xbf16>
    %209 = arith.truncf %189 : vector<16x256xf32> to vector<16x256xbf16>
    %cst_109 = arith.constant dense<0.000000e+00> : vector<16x256xf32>
    %210 = tpu.matmul %209, %208, %cst_109 {dimension_numbers = #tpu.dot_dimension_numbers<[1], [0], [0], [1], [0, 0, 1, 1], [], []>} : vector<16x256xbf16>, vector<256x256xbf16>, vector<16x256xf32> -> vector<16x256xf32>
    %211 = vector.extract_strided_slice %190 {offsets = [2, 0], sizes = [1, 256], strides = [1, 1]} : vector<3x256xf32> to vector<1x256xf32>
    %212 = vector.broadcast %211 : vector<1x256xf32> to vector<16x256xf32>
    %213 = arith.addf %210, %212 : vector<16x256xf32>
    %214 = arith.truncf %199 : vector<16x256xf32> to vector<16x256xbf16>
    %215 = arith.truncf %206 : vector<16x256xf32> to vector<16x256xbf16>
    %216 = vector.shape_cast %214 : vector<16x256xbf16> to vector<16x1x256xbf16>
    %217 = vector.shape_cast %215 : vector<16x256xbf16> to vector<1x16x256xbf16>
    %218 = vector.broadcast %216 : vector<16x1x256xbf16> to vector<16x16x256xbf16>
    %219 = vector.broadcast %217 : vector<1x16x256xbf16> to vector<16x16x256xbf16>
    %220 = arith.mulf %218, %219 : vector<16x16x256xbf16>
    %221 = vector.shape_cast %220 : vector<16x16x256xbf16> to vector<256x256xbf16>
    %c0_110 = arith.constant 0 : index
    %c0_111 = arith.constant 0 : index
    %222 = vector.load %arg4[%c0_110, %c0_111] : memref<256x64xbf16, #tpu.memory_space<vmem>>, vector<256x64xbf16>
    %cst_112 = arith.constant dense<0.000000e+00> : vector<256x64xf32>
    %223 = tpu.matmul %221, %222, %cst_112 {dimension_numbers = #tpu.dot_dimension_numbers<[1], [0], [0], [1], [0, 0, 1, 1], [], []>} : vector<256x256xbf16>, vector<256x64xbf16>, vector<256x64xf32> -> vector<256x64xf32>
    %224 = vector.shape_cast %223 : vector<256x64xf32> to vector<16x16x64xf32>
    %cst_113 = arith.constant dense<0xFF800000> : vector<16x64xf32>
    %225 = vector.multi_reduction <maximumf>, %224, %cst_113 [1] : vector<16x16x64xf32> to vector<16x64xf32>
    %226 = vector.shape_cast %225 : vector<16x64xf32> to vector<16x1x64xf32>
    %227 = vector.broadcast %226 : vector<16x1x64xf32> to vector<16x16x64xf32>
    %228 = arith.subf %224, %227 : vector<16x16x64xf32>
    %229 = math.exp %228 : vector<16x16x64xf32>
    %cst_114 = arith.constant dense<0.000000e+00> : vector<16x64xf32>
    %230 = vector.multi_reduction <add>, %229, %cst_114 [1] : vector<16x16x64xf32> to vector<16x64xf32>
    %231 = vector.shape_cast %230 : vector<16x64xf32> to vector<16x1x64xf32>
    %232 = tpu.reciprocal %231 {approx = true} : vector<16x1x64xf32> -> vector<16x1x64xf32>
    %233 = vector.broadcast %232 : vector<16x1x64xf32> to vector<16x16x64xf32>
    %234 = arith.mulf %229, %233 : vector<16x16x64xf32>
    %235 = vector.shape_cast %234 : vector<16x16x64xf32> to vector<256x64xf32>
    %c0_115 = arith.constant 0 : index
    %c0_116 = arith.constant 0 : index
    %236 = vector.load %arg5[%c0_115, %c0_116] : memref<64x256xbf16, #tpu.memory_space<vmem>>, vector<64x256xbf16>
    %237 = arith.truncf %235 : vector<256x64xf32> to vector<256x64xbf16>
    %cst_117 = arith.constant dense<0.000000e+00> : vector<256x256xf32>
    %238 = tpu.matmul %237, %236, %cst_117 {dimension_numbers = #tpu.dot_dimension_numbers<[1], [0], [0], [1], [0, 0, 1, 1], [], []>} : vector<256x64xbf16>, vector<64x256xbf16>, vector<256x256xf32> -> vector<256x256xf32>
    %239 = arith.truncf %238 : vector<256x256xf32> to vector<256x256xbf16>
    %240 = vector.shape_cast %239 : vector<256x256xbf16> to vector<16x16x256xbf16>
    %241 = vector.shape_cast %213 : vector<16x256xf32> to vector<1x16x256xf32>
    %242 = arith.extf %240 : vector<16x16x256xbf16> to vector<16x16x256xf32>
    %243 = vector.broadcast %241 : vector<1x16x256xf32> to vector<16x16x256xf32>
    %244 = arith.mulf %242, %243 : vector<16x16x256xf32>
    %cst_118 = arith.constant dense<0.000000e+00> : vector<16x256xf32>
    %245 = vector.multi_reduction <add>, %244, %cst_118 [1] : vector<16x16x256xf32> to vector<16x256xf32>
    %c0_119 = arith.constant 0 : index
    %c0_120 = arith.constant 0 : index
    %246 = vector.load %arg30[%c0_119, %c0_120] : memref<6x16xbf16, #tpu.memory_space<vmem>>, vector<6x16xbf16>
    %247 = arith.truncf %245 : vector<16x256xf32> to vector<16x256xbf16>
    %cst_121 = arith.constant dense<0.000000e+00> : vector<6x256xf32>
    %248 = tpu.matmul %246, %247, %cst_121 {dimension_numbers = #tpu.dot_dimension_numbers<[1], [0], [0], [1], [0, 0, 1, 1], [], []>} : vector<6x16xbf16>, vector<16x256xbf16>, vector<6x256xf32> -> vector<6x256xf32>
    %c0_122 = arith.constant 0 : index
    %c0_123 = arith.constant 0 : index
    %249 = vector.load %arg28[%c0_122, %c0_123] : memref<256x256xbf16, #tpu.memory_space<vmem>>, vector<256x256xbf16>
    %250 = arith.truncf %248 : vector<6x256xf32> to vector<6x256xbf16>
    %cst_124 = arith.constant dense<0.000000e+00> : vector<6x256xf32>
    %251 = tpu.matmul %250, %249, %cst_124 {dimension_numbers = #tpu.dot_dimension_numbers<[1], [0], [0], [1], [0, 0, 1, 1], [], []>} : vector<6x256xbf16>, vector<256x256xbf16>, vector<6x256xf32> -> vector<6x256xf32>
    %c0_125 = arith.constant 0 : index
    %c0_126 = arith.constant 0 : index
    %252 = vector.load %arg29[%c0_125, %c0_126] : memref<6x256xf32, #tpu.memory_space<vmem>>, vector<6x256xf32>
    %253 = arith.addf %251, %252 : vector<6x256xf32>
    %254 = arith.addf %253, %167 : vector<6x256xf32>
    %c0_127 = arith.constant 0 : index
    %c0_128 = arith.constant 0 : index
    %255 = vector.load %arg8[%c0_127, %c0_128] : memref<5x256xf32, #tpu.memory_space<vmem>>, vector<5x256xf32>
    %c2_129 = arith.constant 2 : index
    %c0_130 = arith.constant 0 : index
    %c0_131 = arith.constant 0 : index
    %256 = vector.load %arg31[%c2_129, %c0_130, %c0_131] : memref<5x6x6xbf16, #tpu.memory_space<vmem>>, vector<1x6x6xbf16>
    %257 = vector.shape_cast %256 : vector<1x6x6xbf16> to vector<6x6xbf16>
    %258 = arith.truncf %254 : vector<6x256xf32> to vector<6x256xbf16>
    %cst_132 = arith.constant dense<0.000000e+00> : vector<6x256xf32>
    %259 = tpu.matmul %257, %258, %cst_132 {dimension_numbers = #tpu.dot_dimension_numbers<[1], [0], [0], [1], [0, 0, 1, 1], [], []>} : vector<6x6xbf16>, vector<6x256xbf16>, vector<6x256xf32> -> vector<6x256xf32>
    %c2_i32_133 = arith.constant 2 : i32
    %260 = tpu.dynamic_rotate %254 by %c2_i32_133 dim 1 : vector<6x256xf32>, i32 -> vector<6x256xf32>
    %261 = vector.extract_strided_slice %255 {offsets = [0, 0], sizes = [1, 256], strides = [1, 1]} : vector<5x256xf32> to vector<1x256xf32>
    %262 = vector.broadcast %261 : vector<1x256xf32> to vector<6x256xf32>
    %263 = arith.mulf %260, %262 : vector<6x256xf32>
    %c0_134 = arith.constant 0 : index
    %c0_135 = arith.constant 0 : index
    %c0_136 = arith.constant 0 : index
    %264 = vector.load %arg31[%c0_134, %c0_135, %c0_136] : memref<5x6x6xbf16, #tpu.memory_space<vmem>>, vector<1x6x6xbf16>
    %265 = vector.shape_cast %264 : vector<1x6x6xbf16> to vector<6x6xbf16>
    %266 = arith.truncf %263 : vector<6x256xf32> to vector<6x256xbf16>
    %cst_137 = arith.constant dense<0.000000e+00> : vector<6x256xf32>
    %267 = tpu.matmul %265, %266, %cst_137 {dimension_numbers = #tpu.dot_dimension_numbers<[1], [0], [0], [1], [0, 0, 1, 1], [], []>} : vector<6x6xbf16>, vector<6x256xbf16>, vector<6x256xf32> -> vector<6x256xf32>
    %268 = arith.addf %259, %267 : vector<6x256xf32>
    %c1_i32_138 = arith.constant 1 : i32
    %269 = tpu.dynamic_rotate %254 by %c1_i32_138 dim 1 : vector<6x256xf32>, i32 -> vector<6x256xf32>
    %270 = vector.extract_strided_slice %255 {offsets = [1, 0], sizes = [1, 256], strides = [1, 1]} : vector<5x256xf32> to vector<1x256xf32>
    %271 = vector.broadcast %270 : vector<1x256xf32> to vector<6x256xf32>
    %272 = arith.mulf %269, %271 : vector<6x256xf32>
    %c1_139 = arith.constant 1 : index
    %c0_140 = arith.constant 0 : index
    %c0_141 = arith.constant 0 : index
    %273 = vector.load %arg31[%c1_139, %c0_140, %c0_141] : memref<5x6x6xbf16, #tpu.memory_space<vmem>>, vector<1x6x6xbf16>
    %274 = vector.shape_cast %273 : vector<1x6x6xbf16> to vector<6x6xbf16>
    %275 = arith.truncf %272 : vector<6x256xf32> to vector<6x256xbf16>
    %cst_142 = arith.constant dense<0.000000e+00> : vector<6x256xf32>
    %276 = tpu.matmul %274, %275, %cst_142 {dimension_numbers = #tpu.dot_dimension_numbers<[1], [0], [0], [1], [0, 0, 1, 1], [], []>} : vector<6x6xbf16>, vector<6x256xbf16>, vector<6x256xf32> -> vector<6x256xf32>
    %277 = arith.addf %268, %276 : vector<6x256xf32>
    %c255_i32_143 = arith.constant 255 : i32
    %278 = tpu.dynamic_rotate %254 by %c255_i32_143 dim 1 : vector<6x256xf32>, i32 -> vector<6x256xf32>
    %279 = vector.extract_strided_slice %255 {offsets = [3, 0], sizes = [1, 256], strides = [1, 1]} : vector<5x256xf32> to vector<1x256xf32>
    %280 = vector.broadcast %279 : vector<1x256xf32> to vector<6x256xf32>
    %281 = arith.mulf %278, %280 : vector<6x256xf32>
    %c3_144 = arith.constant 3 : index
    %c0_145 = arith.constant 0 : index
    %c0_146 = arith.constant 0 : index
    %282 = vector.load %arg31[%c3_144, %c0_145, %c0_146] : memref<5x6x6xbf16, #tpu.memory_space<vmem>>, vector<1x6x6xbf16>
    %283 = vector.shape_cast %282 : vector<1x6x6xbf16> to vector<6x6xbf16>
    %284 = arith.truncf %281 : vector<6x256xf32> to vector<6x256xbf16>
    %cst_147 = arith.constant dense<0.000000e+00> : vector<6x256xf32>
    %285 = tpu.matmul %283, %284, %cst_147 {dimension_numbers = #tpu.dot_dimension_numbers<[1], [0], [0], [1], [0, 0, 1, 1], [], []>} : vector<6x6xbf16>, vector<6x256xbf16>, vector<6x256xf32> -> vector<6x256xf32>
    %286 = arith.addf %277, %285 : vector<6x256xf32>
    %c254_i32_148 = arith.constant 254 : i32
    %287 = tpu.dynamic_rotate %254 by %c254_i32_148 dim 1 : vector<6x256xf32>, i32 -> vector<6x256xf32>
    %288 = vector.extract_strided_slice %255 {offsets = [4, 0], sizes = [1, 256], strides = [1, 1]} : vector<5x256xf32> to vector<1x256xf32>
    %289 = vector.broadcast %288 : vector<1x256xf32> to vector<6x256xf32>
    %290 = arith.mulf %287, %289 : vector<6x256xf32>
    %c4_149 = arith.constant 4 : index
    %c0_150 = arith.constant 0 : index
    %c0_151 = arith.constant 0 : index
    %291 = vector.load %arg31[%c4_149, %c0_150, %c0_151] : memref<5x6x6xbf16, #tpu.memory_space<vmem>>, vector<1x6x6xbf16>
    %292 = vector.shape_cast %291 : vector<1x6x6xbf16> to vector<6x6xbf16>
    %293 = arith.truncf %290 : vector<6x256xf32> to vector<6x256xbf16>
    %cst_152 = arith.constant dense<0.000000e+00> : vector<6x256xf32>
    %294 = tpu.matmul %292, %293, %cst_152 {dimension_numbers = #tpu.dot_dimension_numbers<[1], [0], [0], [1], [0, 0, 1, 1], [], []>} : vector<6x6xbf16>, vector<6x256xbf16>, vector<6x256xf32> -> vector<6x256xf32>
    %295 = arith.addf %286, %294 : vector<6x256xf32>
    %c0_153 = arith.constant 0 : index
    %c0_154 = arith.constant 0 : index
    %296 = vector.load %arg32[%c0_153, %c0_154] : memref<6x1xf32, #tpu.memory_space<vmem>>, vector<6x1xf32>
    %297 = vector.broadcast %296 : vector<6x1xf32> to vector<6x256xf32>
    %298 = arith.addf %295, %297 : vector<6x256xf32>
    %299 = arith.truncf %298 : vector<6x256xf32> to vector<6x256xbf16>
    %cst_155 = arith.constant dense<0.000000e+00> : vector<6x256xf32>
    %300 = tpu.matmul %299, %1, %cst_155 {dimension_numbers = #tpu.dot_dimension_numbers<[1], [0], [0], [1], [0, 0, 1, 1], [], []>} : vector<6x256xbf16>, vector<256x256xbf16>, vector<6x256xf32> -> vector<6x256xf32>
    %301 = arith.subf %298, %300 : vector<6x256xf32>
    %302 = arith.mulf %301, %301 : vector<6x256xf32>
    %303 = arith.truncf %302 : vector<6x256xf32> to vector<6x256xbf16>
    %cst_156 = arith.constant dense<0.000000e+00> : vector<6x256xf32>
    %304 = tpu.matmul %303, %1, %cst_156 {dimension_numbers = #tpu.dot_dimension_numbers<[1], [0], [0], [1], [0, 0, 1, 1], [], []>} : vector<6x256xbf16>, vector<256x256xbf16>, vector<6x256xf32> -> vector<6x256xf32>
    %cst_157 = arith.constant 9.99999974E-6 : f32
    %305 = vector.broadcast %cst_157 : f32 to vector<6x256xf32>
    %306 = arith.addf %304, %305 : vector<6x256xf32>
    %307 = math.rsqrt %306 : vector<6x256xf32>
    %308 = arith.mulf %301, %307 : vector<6x256xf32>
    %c0_158 = arith.constant 0 : index
    %c0_159 = arith.constant 0 : index
    %309 = vector.load %arg33[%c0_158, %c0_159] : memref<1x256xf32, #tpu.memory_space<vmem>>, vector<1x256xf32>
    %310 = vector.broadcast %309 : vector<1x256xf32> to vector<6x256xf32>
    %311 = arith.mulf %308, %310 : vector<6x256xf32>
    %c0_160 = arith.constant 0 : index
    %c0_161 = arith.constant 0 : index
    %312 = vector.load %arg34[%c0_160, %c0_161] : memref<1x256xf32, #tpu.memory_space<vmem>>, vector<1x256xf32>
    %313 = vector.broadcast %312 : vector<1x256xf32> to vector<6x256xf32>
    %314 = arith.addf %311, %313 : vector<6x256xf32>
    %cst_162 = arith.constant 2.500000e+01 : f32
    %315 = vector.broadcast %cst_162 : f32 to vector<6x256xf32>
    %316 = arith.minimumf %314, %315 : vector<6x256xf32>
    %317 = math.exp %316 : vector<6x256xf32>
    %cst_163 = arith.constant 1.000000e+00 : f32
    %318 = vector.broadcast %cst_163 : f32 to vector<6x256xf32>
    %319 = arith.addf %318, %317 : vector<6x256xf32>
    %cst_164 = arith.constant 1.000000e+00 : f32
    %320 = vector.broadcast %cst_164 : f32 to vector<6x256xf32>
    %321 = arith.addf %320, %317 : vector<6x256xf32>
    %322 = arith.mulf %319, %321 : vector<6x256xf32>
    %cst_165 = arith.constant 1.000000e+00 : f32
    %323 = vector.broadcast %cst_165 : f32 to vector<6x256xf32>
    %324 = arith.addf %322, %323 : vector<6x256xf32>
    %325 = tpu.reciprocal %324 {approx = true} : vector<6x256xf32> -> vector<6x256xf32>
    %cst_166 = arith.constant 2.000000e+00 : f32
    %326 = vector.broadcast %cst_166 : f32 to vector<6x256xf32>
    %327 = arith.mulf %326, %325 : vector<6x256xf32>
    %cst_167 = arith.constant 1.000000e+00 : f32
    %328 = vector.broadcast %cst_167 : f32 to vector<6x256xf32>
    %329 = arith.subf %328, %327 : vector<6x256xf32>
    %330 = arith.mulf %314, %329 : vector<6x256xf32>
    %c0_168 = arith.constant 0 : index
    %c0_169 = arith.constant 0 : index
    %331 = vector.load %arg35[%c0_168, %c0_169] : memref<6x4xbf16, #tpu.memory_space<vmem>>, vector<6x4xbf16>
    %332 = arith.truncf %0 : vector<4x256xf32> to vector<4x256xbf16>
    %cst_170 = arith.constant dense<0.000000e+00> : vector<6x256xf32>
    %333 = tpu.matmul %331, %332, %cst_170 {dimension_numbers = #tpu.dot_dimension_numbers<[1], [0], [0], [1], [0, 0, 1, 1], [], []>} : vector<6x4xbf16>, vector<4x256xbf16>, vector<6x256xf32> -> vector<6x256xf32>
    %334 = arith.addf %330, %333 : vector<6x256xf32>
    %c0_171 = arith.constant 0 : index
    %c0_172 = arith.constant 0 : index
    %335 = vector.load %arg36[%c0_171, %c0_172] : memref<6x1xf32, #tpu.memory_space<vmem>>, vector<6x1xf32>
    %336 = vector.broadcast %335 : vector<6x1xf32> to vector<6x256xf32>
    %337 = arith.addf %334, %336 : vector<6x256xf32>
    %c0_173 = arith.constant 0 : index
    %c0_174 = arith.constant 0 : index
    %338 = vector.load %arg37[%c0_173, %c0_174] : memref<6x256xf32, #tpu.memory_space<vmem>>, vector<6x256xf32>
    tpu.vector_store %arg37[%c0_173, %c0_174], %337 {strides = array<i32>} : memref<6x256xf32, #tpu.memory_space<vmem>>, vector<6x256xf32>,
    return
  }
  func.func @transform_0(%arg0: i32) -> (i32, i32) {
    %c0_i32 = arith.constant 0 : i32
    %c0_i32_0 = arith.constant 0 : i32
    return %c0_i32, %arg0 : i32, i32
  }
  func.func @transform_1(%arg0: i32) -> (i32, i32) {
    %c0_i32 = arith.constant 0 : i32
    %c0_i32_0 = arith.constant 0 : i32
    return %arg0, %c0_i32 : i32, i32
  }
  func.func @transform_2(%arg0: i32) -> (i32, i32) {
    %c0_i32 = arith.constant 0 : i32
    %c0_i32_0 = arith.constant 0 : i32
    %c0_i32_1 = arith.constant 0 : i32
    return %c0_i32, %c0_i32_0 : i32, i32
  }
  func.func @transform_3(%arg0: i32) -> (i32, i32) {
    %c0_i32 = arith.constant 0 : i32
    %c0_i32_0 = arith.constant 0 : i32
    %c0_i32_1 = arith.constant 0 : i32
    return %c0_i32, %c0_i32_0 : i32, i32
  }
  func.func @transform_4(%arg0: i32) -> (i32, i32) {
    %c0_i32 = arith.constant 0 : i32
    %c0_i32_0 = arith.constant 0 : i32
    %c0_i32_1 = arith.constant 0 : i32
    return %c0_i32, %c0_i32_0 : i32, i32
  }
  func.func @transform_5(%arg0: i32) -> (i32, i32) {
    %c0_i32 = arith.constant 0 : i32
    %c0_i32_0 = arith.constant 0 : i32
    %c0_i32_1 = arith.constant 0 : i32
    return %c0_i32, %c0_i32_0 : i32, i32
  }
  func.func @transform_6(%arg0: i32) -> (i32, i32) {
    %c0_i32 = arith.constant 0 : i32
    %c0_i32_0 = arith.constant 0 : i32
    %c0_i32_1 = arith.constant 0 : i32
    return %c0_i32, %c0_i32_0 : i32, i32
  }
  func.func @transform_7(%arg0: i32) -> (i32, i32) {
    %c0_i32 = arith.constant 0 : i32
    %c0_i32_0 = arith.constant 0 : i32
    %c0_i32_1 = arith.constant 0 : i32
    return %c0_i32, %c0_i32_0 : i32, i32
  }
  func.func @transform_8(%arg0: i32) -> (i32, i32) {
    %c0_i32 = arith.constant 0 : i32
    %c0_i32_0 = arith.constant 0 : i32
    %c0_i32_1 = arith.constant 0 : i32
    return %c0_i32, %c0_i32_0 : i32, i32
  }
  func.func @transform_9(%arg0: i32) -> (i32, i32) {
    %c0_i32 = arith.constant 0 : i32
    %c0_i32_0 = arith.constant 0 : i32
    %c0_i32_1 = arith.constant 0 : i32
    return %c0_i32, %c0_i32_0 : i32, i32
  }
  func.func @transform_10(%arg0: i32) -> (i32, i32) {
    %c0_i32 = arith.constant 0 : i32
    %c0_i32_0 = arith.constant 0 : i32
    %c0_i32_1 = arith.constant 0 : i32
    return %c0_i32, %c0_i32_0 : i32, i32
  }
  func.func @transform_11(%arg0: i32) -> (i32, i32) {
    %c0_i32 = arith.constant 0 : i32
    %c0_i32_0 = arith.constant 0 : i32
    %c0_i32_1 = arith.constant 0 : i32
    return %c0_i32, %c0_i32_0 : i32, i32
  }
  func.func @transform_12(%arg0: i32) -> (i32, i32) {
    %c0_i32 = arith.constant 0 : i32
    %c0_i32_0 = arith.constant 0 : i32
    %c0_i32_1 = arith.constant 0 : i32
    return %c0_i32, %c0_i32_0 : i32, i32
  }
  func.func @transform_13(%arg0: i32) -> (i32, i32) {
    %c0_i32 = arith.constant 0 : i32
    %c0_i32_0 = arith.constant 0 : i32
    %c0_i32_1 = arith.constant 0 : i32
    return %c0_i32, %c0_i32_0 : i32, i32
  }
  func.func @transform_14(%arg0: i32) -> (i32, i32) {
    %c0_i32 = arith.constant 0 : i32
    %c0_i32_0 = arith.constant 0 : i32
    %c0_i32_1 = arith.constant 0 : i32
    return %c0_i32, %c0_i32_0 : i32, i32
  }
  func.func @transform_15(%arg0: i32) -> (i32, i32) {
    %c0_i32 = arith.constant 0 : i32
    %c0_i32_0 = arith.constant 0 : i32
    %c0_i32_1 = arith.constant 0 : i32
    return %c0_i32, %c0_i32_0 : i32, i32
  }
  func.func @transform_16(%arg0: i32) -> (i32, i32, i32) {
    %c0_i32 = arith.constant 0 : i32
    %c0_i32_0 = arith.constant 0 : i32
    %c0_i32_1 = arith.constant 0 : i32
    %c0_i32_2 = arith.constant 0 : i32
    return %c0_i32, %c0_i32_0, %c0_i32_1 : i32, i32, i32
  }
  func.func @transform_17(%arg0: i32) -> (i32, i32) {
    %c0_i32 = arith.constant 0 : i32
    %c0_i32_0 = arith.constant 0 : i32
    %c0_i32_1 = arith.constant 0 : i32
    return %c0_i32, %c0_i32_0 : i32, i32
  }
  func.func @transform_18(%arg0: i32) -> (i32, i32) {
    %c0_i32 = arith.constant 0 : i32
    %c0_i32_0 = arith.constant 0 : i32
    %c0_i32_1 = arith.constant 0 : i32
    return %c0_i32, %c0_i32_0 : i32, i32
  }
  func.func @transform_19(%arg0: i32) -> (i32, i32) {
    %c0_i32 = arith.constant 0 : i32
    %c0_i32_0 = arith.constant 0 : i32
    %c0_i32_1 = arith.constant 0 : i32
    return %c0_i32, %c0_i32_0 : i32, i32
  }
  func.func @transform_20(%arg0: i32) -> (i32, i32) {
    %c0_i32 = arith.constant 0 : i32
    %c0_i32_0 = arith.constant 0 : i32
    %c0_i32_1 = arith.constant 0 : i32
    return %c0_i32, %c0_i32_0 : i32, i32
  }
  func.func @transform_21(%arg0: i32) -> (i32, i32) {
    %c0_i32 = arith.constant 0 : i32
    %c0_i32_0 = arith.constant 0 : i32
    %c0_i32_1 = arith.constant 0 : i32
    return %c0_i32, %c0_i32_0 : i32, i32
  }
  func.func @transform_22(%arg0: i32) -> (i32, i32) {
    %c0_i32 = arith.constant 0 : i32
    %c0_i32_0 = arith.constant 0 : i32
    %c0_i32_1 = arith.constant 0 : i32
    return %c0_i32, %c0_i32_0 : i32, i32
  }
  func.func @transform_23(%arg0: i32) -> (i32, i32) {
    %c0_i32 = arith.constant 0 : i32
    %c0_i32_0 = arith.constant 0 : i32
    %c0_i32_1 = arith.constant 0 : i32
    return %c0_i32, %c0_i32_0 : i32, i32
  }
  func.func @transform_24(%arg0: i32) -> (i32, i32) {
    %c0_i32 = arith.constant 0 : i32
    %c0_i32_0 = arith.constant 0 : i32
    %c0_i32_1 = arith.constant 0 : i32
    return %c0_i32, %c0_i32_0 : i32, i32
  }
  func.func @transform_25(%arg0: i32) -> (i32, i32, i32) {
    %c0_i32 = arith.constant 0 : i32
    %c0_i32_0 = arith.constant 0 : i32
    %c0_i32_1 = arith.constant 0 : i32
    %c0_i32_2 = arith.constant 0 : i32
    return %c0_i32, %c0_i32_0, %c0_i32_1 : i32, i32, i32
  }
  func.func @transform_26(%arg0: i32) -> (i32, i32) {
    %c0_i32 = arith.constant 0 : i32
    %c0_i32_0 = arith.constant 0 : i32
    %c0_i32_1 = arith.constant 0 : i32
    return %c0_i32, %c0_i32_0 : i32, i32
  }
  func.func @transform_27(%arg0: i32) -> (i32, i32) {
    %c0_i32 = arith.constant 0 : i32
    %c0_i32_0 = arith.constant 0 : i32
    %c0_i32_1 = arith.constant 0 : i32
    return %c0_i32, %c0_i32_0 : i32, i32
  }
  func.func @transform_28(%arg0: i32) -> (i32, i32) {
    %c0_i32 = arith.constant 0 : i32
    %c0_i32_0 = arith.constant 0 : i32
    %c0_i32_1 = arith.constant 0 : i32
    return %c0_i32, %c0_i32_0 : i32, i32
  }
  func.func @transform_29(%arg0: i32) -> (i32, i32) {
    %c0_i32 = arith.constant 0 : i32
    %c0_i32_0 = arith.constant 0 : i32
    %c0_i32_1 = arith.constant 0 : i32
    return %c0_i32, %c0_i32_0 : i32, i32
  }
  func.func @transform_30(%arg0: i32) -> (i32, i32, i32) {
    %c0_i32 = arith.constant 0 : i32
    %c0_i32_0 = arith.constant 0 : i32
    %c0_i32_1 = arith.constant 0 : i32
    %c0_i32_2 = arith.constant 0 : i32
    return %c0_i32, %c0_i32_0, %c0_i32_1 : i32, i32, i32
  }
  func.func @transform_31(%arg0: i32) -> (i32, i32) {
    %c0_i32 = arith.constant 0 : i32
    %c0_i32_0 = arith.constant 0 : i32
    %c0_i32_1 = arith.constant 0 : i32
    return %c0_i32, %c0_i32_0 : i32, i32
  }
  func.func @transform_32(%arg0: i32) -> (i32, i32) {
    %c0_i32 = arith.constant 0 : i32
    %c0_i32_0 = arith.constant 0 : i32
    %c0_i32_1 = arith.constant 0 : i32
    return %c0_i32, %c0_i32_0 : i32, i32
  }
  func.func @transform_33(%arg0: i32) -> (i32, i32) {
    %c0_i32 = arith.constant 0 : i32
    %c0_i32_0 = arith.constant 0 : i32
    %c0_i32_1 = arith.constant 0 : i32
    return %c0_i32, %c0_i32_0 : i32, i32
  }
  func.func @transform_34(%arg0: i32) -> (i32, i32) {
    %c0_i32 = arith.constant 0 : i32
    %c0_i32_0 = arith.constant 0 : i32
    %c0_i32_1 = arith.constant 0 : i32
    return %c0_i32, %c0_i32_0 : i32, i32
  }
  func.func @transform_35(%arg0: i32) -> (i32, i32) {
    %c0_i32 = arith.constant 0 : i32
    %c0_i32_0 = arith.constant 0 : i32
    %c0_i32_1 = arith.constant 0 : i32
    return %c0_i32, %c0_i32_0 : i32, i32
  }
  func.func @transform_36(%arg0: i32) -> (i32, i32) {
    %c0_i32 = arith.constant 0 : i32
    %c0_i32_0 = arith.constant 0 : i32
    return %c0_i32, %arg0 : i32, i32
  }
}

</mosaic_0001>

<llo_original>
// kernel: tile.55
$region0: #{tile.55}
  %s0 = inlined_call_operand.vmem [shape: f32[3,16,16], index: 0, kind: input, shape index: {}]
  %s1 = inlined_call_operand.vmem [shape: f32[3,256], index: 1, kind: output, shape index: {}]
  $region1: #{tile.55} parent=0
    #allocation0 [shape = 'u8[8192]{0}', space=vmem, size = 0x2000, scoped, tag = 'scoped mem for output reshape']
    %v2 = vld [vmem:[%s0] ss:$8 sm:$0xf]
    %s3 = smov 48
    %v4 = vld [vmem:[%s0] ss:$8 sm:%s3]
    %vm5 = vcmask 1045508
    %v6 = vsel %vm5, %v4, %v2
    %vm7 = vcmask 130048
    %8 = vst.msk [vmem:[#allocation0] ss:$8 sm:$0x3] %vm7, %v6
    %s9 = scalar_lea.vmem [#allocation0], 4294967281
    %10 = vst.msk [vmem:[%s9] ss:$8 sm:$0xc] %vm7, %v6
    %s11 = scalar_lea.vmem [#allocation0], 4294967266
    %12 = vst.msk [vmem:[%s11] ss:$8 sm:$0x30] %vm7, %v6
    %s13 = scalar_lea.vmem %s0, 7
    %s14 = smov 3
    %v15 = vld [vmem:[%s13] ss:$16 sm:%s14]
    %s16 = scalar_lea.vmem %s0, 87
    %s17 = smov 12
    %v18 = vld [vmem:[%s16] ss:$-24 sm:%s17]
    %vm19 = vcmask 1043458
    %v20 = vsel %vm19, %v18, %v15
    %s21 = scalar_lea.vmem %s0, 4294967263
    %s22 = smov 48
    %v23 = vld [vmem:[%s21] ss:$16 sm:%s22]
    %vm24 = vcmask 1045508
    %v25 = vsel %vm24, %v23, %v20
    %26 = vrot.lane.b32.xlu0 %v25, 112
    %v27 = vpop.permute.xlu0 %26
    %vm28 = vcmask 1048448
    %29 = vst.msk [vmem:[#allocation0] sm:$0x7] %vm28, %v27
    %s30 = scalar_lea.vmem [#allocation0], 5
    %31 = vst.msk [vmem:[%s30] sm:$0x38] %vm28, %v27
    %s32 = scalar_lea.vmem %s0, 6
    %s33 = smov 3
    %v34 = vld [vmem:[%s32] ss:$16 sm:%s33]
    %s35 = scalar_lea.vmem %s0, 86
    %s36 = smov 12
    %v37 = vld [vmem:[%s35] ss:$-24 sm:%s36]
    %vm38 = vcmask 1043458
    %v39 = vsel %vm38, %v37, %v34
    %s40 = scalar_lea.vmem %s0, 4294967262
    %s41 = smov 48
    %v42 = vld [vmem:[%s40] ss:$16 sm:%s41]
    %vm43 = vcmask 1045508
    %v44 = vsel %vm43, %v42, %v39
    %45 = vrot.lane.b32.xlu0 %v44, 96
    %v46 = vpop.permute.xlu0 %45
    %vm47 = vcmask 917248
    %48 = vst.msk [vmem:[#allocation0] sm:$0x7] %vm47, %v46
    %s49 = scalar_lea.vmem [#allocation0], 5
    %50 = vst.msk [vmem:[%s49] sm:$0x38] %vm47, %v46
    %s51 = scalar_lea.vmem %s0, 5
    %s52 = smov 3
    %v53 = vld [vmem:[%s51] ss:$16 sm:%s52]
    %s54 = scalar_lea.vmem %s0, 85
    %s55 = smov 12
    %v56 = vld [vmem:[%s54] ss:$-24 sm:%s55]
    %vm57 = vcmask 1043458
    %v58 = vsel %vm57, %v56, %v53
    %s59 = scalar_lea.vmem %s0, 4294967261
    %s60 = smov 48
    %v61 = vld [vmem:[%s59] ss:$16 sm:%s60]
    %vm62 = vcmask 1045508
    %v63 = vsel %vm62, %v61, %v58
    %64 = vrot.lane.b32.xlu0 %v63, 80
    %v65 = vpop.permute.xlu0 %64
    %vm66 = vcmask 786048
    %67 = vst.msk [vmem:[#allocation0] sm:$0x7] %vm66, %v65
    %s68 = scalar_lea.vmem [#allocation0], 5
    %69 = vst.msk [vmem:[%s68] sm:$0x38] %vm66, %v65
    %s70 = scalar_lea.vmem %s0, 4
    %s71 = smov 3
    %v72 = vld [vmem:[%s70] ss:$16 sm:%s71]
    %s73 = scalar_lea.vmem %s0, 84
    %s74 = smov 12
    %v75 = vld [vmem:[%s73] ss:$-24 sm:%s74]
    %vm76 = vcmask 1043458
    %v77 = vsel %vm76, %v75, %v72
    %s78 = scalar_lea.vmem %s0, 4294967260
    %s79 = smov 48
    %v80 = vld [vmem:[%s78] ss:$16 sm:%s79]
    %vm81 = vcmask 1045508
    %v82 = vsel %vm81, %v80, %v77
    %83 = vrot.lane.b32.xlu0 %v82, 64
    %v84 = vpop.permute.xlu0 %83
    %vm85 = vcmask 654848
    %86 = vst.msk [vmem:[#allocation0] sm:$0x7] %vm85, %v84
    %s87 = scalar_lea.vmem [#allocation0], 5
    %88 = vst.msk [vmem:[%s87] sm:$0x38] %vm85, %v84
    %s89 = scalar_lea.vmem %s0, 3
    %s90 = smov 3
    %v91 = vld [vmem:[%s89] ss:$16 sm:%s90]
    %s92 = scalar_lea.vmem %s0, 83
    %s93 = smov 12
    %v94 = vld [vmem:[%s92] ss:$-24 sm:%s93]
    %vm95 = vcmask 1043458
    %v96 = vsel %vm95, %v94, %v91
    %s97 = scalar_lea.vmem %s0, 4294967259
    %s98 = smov 48
    %v99 = vld [vmem:[%s97] ss:$16 sm:%s98]
    %vm100 = vcmask 1045508
    %v101 = vsel %vm100, %v99, %v96
    %102 = vrot.lane.b32.xlu0 %v101, 48
    %v103 = vpop.permute.xlu0 %102
    %vm104 = vcmask 523648
    %105 = vst.msk [vmem:[#allocation0] sm:$0x7] %vm104, %v103
    %s106 = scalar_lea.vmem [#allocation0], 5
    %107 = vst.msk [vmem:[%s106] sm:$0x38] %vm104, %v103
    %s108 = scalar_lea.vmem %s0, 2
    %s109 = smov 3
    %v110 = vld [vmem:[%s108] ss:$16 sm:%s109]
    %s111 = scalar_lea.vmem %s0, 82
    %s112 = smov 12
    %v113 = vld [vmem:[%s111] ss:$-24 sm:%s112]
    %vm114 = vcmask 1043458
    %v115 = vsel %vm114, %v113, %v110
    %s116 = scalar_lea.vmem %s0, 4294967258
    %s117 = smov 48
    %v118 = vld [vmem:[%s116] ss:$16 sm:%s117]
    %vm119 = vcmask 1045508
    %v120 = vsel %vm119, %v118, %v115
    %121 = vrot.lane.b32.xlu0 %v120, 32
    %v122 = vpop.permute.xlu0 %121
    %vm123 = vcmask 392448
    %124 = vst.msk [vmem:[#allocation0] sm:$0x7] %vm123, %v122
    %s125 = scalar_lea.vmem [#allocation0], 5
    %126 = vst.msk [vmem:[%s125] sm:$0x38] %vm123, %v122
    %s127 = scalar_lea.vmem %s0, 1
    %s128 = smov 3
    %v129 = vld [vmem:[%s127] ss:$16 sm:%s128]
    %s130 = scalar_lea.vmem %s0, 81
    %s131 = smov 12
    %v132 = vld [vmem:[%s130] ss:$-24 sm:%s131]
    %vm133 = vcmask 1043458
    %v134 = vsel %vm133, %v132, %v129
    %s135 = scalar_lea.vmem %s0, 4294967257
    %s136 = smov 48
    %v137 = vld [vmem:[%s135] ss:$16 sm:%s136]
    %vm138 = vcmask 1045508
    %v139 = vsel %vm138, %v137, %v134
    %140 = vrot.lane.b32.xlu0 %v139, 16
    %v141 = vpop.permute.xlu0 %140
    %vm142 = vcmask 261248
    %143 = vst.msk [vmem:[#allocation0] sm:$0x7] %vm142, %v141
    %s144 = scalar_lea.vmem [#allocation0], 5
    %145 = vst.msk [vmem:[%s144] sm:$0x38] %vm142, %v141
    %s147 = ssub.s32 16, 1
    %v148 = vld [vmem:[#allocation0] sm:%s147]
    %s150 = ssub.s32 16, 1
    %151 = vst [vmem:[%s1] sm:%s150] %v148
    %s152 = scalar_lea.vmem [#allocation0], 8
    %v153 = vld [vmem:[%s152] sm:%s147]
    %s155 = ssub.s32 16, 1
    %s156 = scalar_lea.vmem %s1, 4
    %157 = vst [vmem:[%s156] sm:%s155] %v153

// kernel: _block_forward_impl.1
$region0: #{_block_forward_impl.1}
  #allocation0 [shape = 'u32[]', space=smem, size = 0x4, offset = 0x4, fixed_abs, tag = 'smem constant byte address 0x4 - core index']
  #allocation1 [shape = 'u32[72,128]{1,0:T(1,128)}', space=vmem, size = 0x9000, scoped, tag = 'internal scratch']
  %s0 = inlined_call_operand.smem [shape: u32[37], index: -1, kind: input, shape index: {}]
  %s1 = sld [smem:[%s0]]
  %s2 = scalar_lea.smem %s0, 1
  %s3 = sld [smem:[%s2]]
  %s4 = scalar_lea.smem %s0, 2
  %s5 = sld [smem:[%s4]]
  %s6 = scalar_lea.smem %s0, 3
  %s7 = sld [smem:[%s6]]
  %s8 = scalar_lea.smem %s0, 4
  %s9 = sld [smem:[%s8]]
  %s10 = scalar_lea.smem %s0, 5
  %s11 = sld [smem:[%s10]]
  %s12 = scalar_lea.smem %s0, 6
  %s13 = sld [smem:[%s12]]
  %s14 = scalar_lea.smem %s0, 7
  %s15 = sld [smem:[%s14]]
  %s16 = scalar_lea.smem %s0, 8
  %s17 = sld [smem:[%s16]]
  %s18 = scalar_lea.smem %s0, 9
  %s19 = sld [smem:[%s18]]
  %s20 = scalar_lea.smem %s0, 10
  %s21 = sld [smem:[%s20]]
  %s22 = scalar_lea.smem %s0, 11
  %s23 = sld [smem:[%s22]]
  %s24 = scalar_lea.smem %s0, 12
  %s25 = sld [smem:[%s24]]
  %s26 = scalar_lea.smem %s0, 13
  %s27 = sld [smem:[%s26]]
  %s28 = scalar_lea.smem %s0, 14
  %s29 = sld [smem:[%s28]]
  %s30 = scalar_lea.smem %s0, 15
  %s31 = sld [smem:[%s30]]
  %s32 = scalar_lea.smem %s0, 16
  %s33 = sld [smem:[%s32]]
  %s34 = scalar_lea.smem %s0, 17
  %s35 = sld [smem:[%s34]]
  %s36 = scalar_lea.smem %s0, 18
  %s37 = sld [smem:[%s36]]
  %s38 = scalar_lea.smem %s0, 19
  %s39 = sld [smem:[%s38]]
  %s40 = scalar_lea.smem %s0, 20
  %s41 = sld [smem:[%s40]]
  %s42 = scalar_lea.smem %s0, 21
  %s43 = sld [smem:[%s42]]
  %s44 = scalar_lea.smem %s0, 22
  %s45 = sld [smem:[%s44]]
  %s46 = scalar_lea.smem %s0, 23
  %s47 = sld [smem:[%s46]]
  %s48 = scalar_lea.smem %s0, 24
  %s49 = sld [smem:[%s48]]
  %s50 = scalar_lea.smem %s0, 25
  %s51 = sld [smem:[%s50]]
  %s52 = scalar_lea.smem %s0, 26
  %s53 = sld [smem:[%s52]]
  %s54 = scalar_lea.smem %s0, 27
  %s55 = sld [smem:[%s54]]
  %s56 = scalar_lea.smem %s0, 28
  %s57 = sld [smem:[%s56]]
  %s58 = scalar_lea.smem %s0, 29
  %s59 = sld [smem:[%s58]]
  %s60 = scalar_lea.smem %s0, 30
  %s61 = sld [smem:[%s60]]
  %s62 = scalar_lea.smem %s0, 31
  %s63 = sld [smem:[%s62]]
  %s64 = scalar_lea.smem %s0, 32
  %s65 = sld [smem:[%s64]]
  %s66 = scalar_lea.smem %s0, 33
  %s67 = sld [smem:[%s66]]
  %s68 = scalar_lea.smem %s0, 34
  %s69 = sld [smem:[%s68]]
  %s70 = scalar_lea.smem %s0, 35
  %s71 = sld [smem:[%s70]]
  %s72 = scalar_lea.smem %s0, 36
  %s73 = sld [smem:[%s72]]
  %s74 = sld [smem:[#allocation0]]
  $region154: #{_block_forward_impl.1} parent=0
    _
  %s76 = ssub.s32 1, %s74
  %s77 = scalar_select 0, %s76, %s74
  // Predicated region
  $region2: #{_block_forward_impl.1} parent=0 // pred_check
    _
  $region3: #{_block_forward_impl.1} parent=0 // pred_check_branch
    %79 = sbr.rel (0) target = $region5
  $region4: #{_block_forward_impl.1} parent=0 // pred_region
    _
  $region5: #{_block_forward_impl.1} parent=0 // pred_fallthru
    _
  // Predicated region
  $region6: #{_block_forward_impl.1} parent=0 // pred_check
    _
  $region7: #{_block_forward_impl.1} parent=0 // pred_check_branch
    %81 = sbr.rel (0) target = $region9
  $region8: #{_block_forward_impl.1} parent=0 // pred_region
    _
  $region9: #{_block_forward_impl.1} parent=0 // pred_fallthru
    _
  // Predicated region
  $region10: #{_block_forward_impl.1} parent=0 // pred_check
    _
  $region11: #{_block_forward_impl.1} parent=0 // pred_check_branch
    %83 = sbr.rel (0) target = $region13
  $region12: #{_block_forward_impl.1} parent=0 // pred_region
    _
  $region13: #{_block_forward_impl.1} parent=0 // pred_fallthru
    _
  // Predicated region
  $region14: #{_block_forward_impl.1} parent=0 // pred_check
    _
  $region15: #{_block_forward_impl.1} parent=0 // pred_check_branch
    %85 = sbr.rel (0) target = $region17
  $region16: #{_block_forward_impl.1} parent=0 // pred_region
    _
  $region17: #{_block_forward_impl.1} parent=0 // pred_fallthru
    _
  // Predicated region
  $region18: #{_block_forward_impl.1} parent=0 // pred_check
    _
  $region19: #{_block_forward_impl.1} parent=0 // pred_check_branch
    %87 = sbr.rel (0) target = $region21
  $region20: #{_block_forward_impl.1} parent=0 // pred_region
    _
  $region21: #{_block_forward_impl.1} parent=0 // pred_fallthru
    _
  // Predicated region
  $region22: #{_block_forward_impl.1} parent=0 // pred_check
    _
  $region23: #{_block_forward_impl.1} parent=0 // pred_check_branch
    %89 = sbr.rel (0) target = $region25
  $region24: #{_block_forward_impl.1} parent=0 // pred_region
    _
  $region25: #{_block_forward_impl.1} parent=0 // pred_fallthru
    _
  // Predicated region
  $region26: #{_block_forward_impl.1} parent=0 // pred_check
    _
  $region27: #{_block_forward_impl.1} parent=0 // pred_check_branch
    %91 = sbr.rel (0) target = $region29
  $region28: #{_block_forward_impl.1} parent=0 // pred_region
    _
  $region29: #{_block_forward_impl.1} parent=0 // pred_fallthru
    _
  // Predicated region
  $region30: #{_block_forward_impl.1} parent=0 // pred_check
    _
  $region31: #{_block_forward_impl.1} parent=0 // pred_check_branch
    %93 = sbr.rel (0) target = $region33
  $region32: #{_block_forward_impl.1} parent=0 // pred_region
    _
  $region33: #{_block_forward_impl.1} parent=0 // pred_fallthru
    _
  // Predicated region
  $region34: #{_block_forward_impl.1} parent=0 // pred_check
    _
  $region35: #{_block_forward_impl.1} parent=0 // pred_check_branch
    %95 = sbr.rel (0) target = $region37
  $region36: #{_block_forward_impl.1} parent=0 // pred_region
    _
  $region37: #{_block_forward_impl.1} parent=0 // pred_fallthru
    _
  // Predicated region
  $region38: #{_block_forward_impl.1} parent=0 // pred_check
    _
  $region39: #{_block_forward_impl.1} parent=0 // pred_check_branch
    %97 = sbr.rel (0) target = $region41
  $region40: #{_block_forward_impl.1} parent=0 // pred_region
    _
  $region41: #{_block_forward_impl.1} parent=0 // pred_fallthru
    _
  // Predicated region
  $region42: #{_block_forward_impl.1} parent=0 // pred_check
    _
  $region43: #{_block_forward_impl.1} parent=0 // pred_check_branch
    %99 = sbr.rel (0) target = $region45
  $region44: #{_block_forward_impl.1} parent=0 // pred_region
    _
  $region45: #{_block_forward_impl.1} parent=0 // pred_fallthru
    _
  // Predicated region
  $region46: #{_block_forward_impl.1} parent=0 // pred_check
    _
  $region47: #{_block_forward_impl.1} parent=0 // pred_check_branch
    %101 = sbr.rel (0) target = $region49
  $region48: #{_block_forward_impl.1} parent=0 // pred_region
    _
  $region49: #{_block_forward_impl.1} parent=0 // pred_fallthru
    _
  // Predicated region
  $region50: #{_block_forward_impl.1} parent=0 // pred_check
    _
  $region51: #{_block_forward_impl.1} parent=0 // pred_check_branch
    %103 = sbr.rel (0) target = $region53
  $region52: #{_block_forward_impl.1} parent=0 // pred_region
    _
  $region53: #{_block_forward_impl.1} parent=0 // pred_fallthru
    _
  // Predicated region
  $region54: #{_block_forward_impl.1} parent=0 // pred_check
    _
  $region55: #{_block_forward_impl.1} parent=0 // pred_check_branch
    %105 = sbr.rel (0) target = $region57
  $region56: #{_block_forward_impl.1} parent=0 // pred_region
    _
  $region57: #{_block_forward_impl.1} parent=0 // pred_fallthru
    _
  // Predicated region
  $region58: #{_block_forward_impl.1} parent=0 // pred_check
    _
  $region59: #{_block_forward_impl.1} parent=0 // pred_check_branch
    %107 = sbr.rel (0) target = $region61
  $region60: #{_block_forward_impl.1} parent=0 // pred_region
    _
  $region61: #{_block_forward_impl.1} parent=0 // pred_fallthru
    _
  // Predicated region
  $region62: #{_block_forward_impl.1} parent=0 // pred_check
    _
  $region63: #{_block_forward_impl.1} parent=0 // pred_check_branch
    %109 = sbr.rel (0) target = $region65
  $region64: #{_block_forward_impl.1} parent=0 // pred_region
    _
  $region65: #{_block_forward_impl.1} parent=0 // pred_fallthru
    _
  // Predicated region
  $region66: #{_block_forward_impl.1} parent=0 // pred_check
    _
  $region67: #{_block_forward_impl.1} parent=0 // pred_check_branch
    %111 = sbr.rel (0) target = $region69
  $region68: #{_block_forward_impl.1} parent=0 // pred_region
    _
  $region69: #{_block_forward_impl.1} parent=0 // pred_fallthru
    _
  // Predicated region
  $region70: #{_block_forward_impl.1} parent=0 // pred_check
    _
  $region71: #{_block_forward_impl.1} parent=0 // pred_check_branch
    %113 = sbr.rel (0) target = $region73
  $region72: #{_block_forward_impl.1} parent=0 // pred_region
    _
  $region73: #{_block_forward_impl.1} parent=0 // pred_fallthru
    _
  // Predicated region
  $region74: #{_block_forward_impl.1} parent=0 // pred_check
    _
  $region75: #{_block_forward_impl.1} parent=0 // pred_check_branch
    %115 = sbr.rel (0) target = $region77
  $region76: #{_block_forward_impl.1} parent=0 // pred_region
    _
  $region77: #{_block_forward_impl.1} parent=0 // pred_fallthru
    _
  // Predicated region
  $region78: #{_block_forward_impl.1} parent=0 // pred_check
    _
  $region79: #{_block_forward_impl.1} parent=0 // pred_check_branch
    %117 = sbr.rel (0) target = $region81
  $region80: #{_block_forward_impl.1} parent=0 // pred_region
    _
  $region81: #{_block_forward_impl.1} parent=0 // pred_fallthru
    _
  // Predicated region
  $region82: #{_block_forward_impl.1} parent=0 // pred_check
    _
  $region83: #{_block_forward_impl.1} parent=0 // pred_check_branch
    %119 = sbr.rel (0) target = $region85
  $region84: #{_block_forward_impl.1} parent=0 // pred_region
    _
  $region85: #{_block_forward_impl.1} parent=0 // pred_fallthru
    _
  // Predicated region
  $region86: #{_block_forward_impl.1} parent=0 // pred_check
    _
  $region87: #{_block_forward_impl.1} parent=0 // pred_check_branch
    %121 = sbr.rel (0) target = $region89
  $region88: #{_block_forward_impl.1} parent=0 // pred_region
    _
  $region89: #{_block_forward_impl.1} parent=0 // pred_fallthru
    _
  // Predicated region
  $region90: #{_block_forward_impl.1} parent=0 // pred_check
    _
  $region91: #{_block_forward_impl.1} parent=0 // pred_check_branch
    %123 = sbr.rel (0) target = $region93
  $region92: #{_block_forward_impl.1} parent=0 // pred_region
    _
  $region93: #{_block_forward_impl.1} parent=0 // pred_fallthru
    _
  // Predicated region
  $region94: #{_block_forward_impl.1} parent=0 // pred_check
    _
  $region95: #{_block_forward_impl.1} parent=0 // pred_check_branch
    %125 = sbr.rel (0) target = $region97
  $region96: #{_block_forward_impl.1} parent=0 // pred_region
    _
  $region97: #{_block_forward_impl.1} parent=0 // pred_fallthru
    _
  // Predicated region
  $region98: #{_block_forward_impl.1} parent=0 // pred_check
    _
  $region99: #{_block_forward_impl.1} parent=0 // pred_check_branch
    %127 = sbr.rel (0) target = $region101
  $region100: #{_block_forward_impl.1} parent=0 // pred_region
    _
  $region101: #{_block_forward_impl.1} parent=0 // pred_fallthru
    _
  // Predicated region
  $region102: #{_block_forward_impl.1} parent=0 // pred_check
    _
  $region103: #{_block_forward_impl.1} parent=0 // pred_check_branch
    %129 = sbr.rel (0) target = $region105
  $region104: #{_block_forward_impl.1} parent=0 // pred_region
    _
  $region105: #{_block_forward_impl.1} parent=0 // pred_fallthru
    _
  // Predicated region
  $region106: #{_block_forward_impl.1} parent=0 // pred_check
    _
  $region107: #{_block_forward_impl.1} parent=0 // pred_check_branch
    %131 = sbr.rel (0) target = $region109
  $region108: #{_block_forward_impl.1} parent=0 // pred_region
    _
  $region109: #{_block_forward_impl.1} parent=0 // pred_fallthru
    _
  // Predicated region
  $region110: #{_block_forward_impl.1} parent=0 // pred_check
    _
  $region111: #{_block_forward_impl.1} parent=0 // pred_check_branch
    %133 = sbr.rel (0) target = $region113
  $region112: #{_block_forward_impl.1} parent=0 // pred_region
    _
  $region113: #{_block_forward_impl.1} parent=0 // pred_fallthru
    _
  // Predicated region
  $region114: #{_block_forward_impl.1} parent=0 // pred_check
    _
  $region115: #{_block_forward_impl.1} parent=0 // pred_check_branch
    %135 = sbr.rel (0) target = $region117
  $region116: #{_block_forward_impl.1} parent=0 // pred_region
    _
  $region117: #{_block_forward_impl.1} parent=0 // pred_fallthru
    _
  // Predicated region
  $region118: #{_block_forward_impl.1} parent=0 // pred_check
    _
  $region119: #{_block_forward_impl.1} parent=0 // pred_check_branch
    %137 = sbr.rel (0) target = $region121
  $region120: #{_block_forward_impl.1} parent=0 // pred_region
    _
  $region121: #{_block_forward_impl.1} parent=0 // pred_fallthru
    _
  // Predicated region
  $region122: #{_block_forward_impl.1} parent=0 // pred_check
    _
  $region123: #{_block_forward_impl.1} parent=0 // pred_check_branch
    %139 = sbr.rel (0) target = $region125
  $region124: #{_block_forward_impl.1} parent=0 // pred_region
    _
  $region125: #{_block_forward_impl.1} parent=0 // pred_fallthru
    _
  // Predicated region
  $region126: #{_block_forward_impl.1} parent=0 // pred_check
    _
  $region127: #{_block_forward_impl.1} parent=0 // pred_check_branch
    %141 = sbr.rel (0) target = $region129
  $region128: #{_block_forward_impl.1} parent=0 // pred_region
    _
  $region129: #{_block_forward_impl.1} parent=0 // pred_fallthru
    _
  // Predicated region
  $region130: #{_block_forward_impl.1} parent=0 // pred_check
    _
  $region131: #{_block_forward_impl.1} parent=0 // pred_check_branch
    %143 = sbr.rel (0) target = $region133
  $region132: #{_block_forward_impl.1} parent=0 // pred_region
    _
  $region133: #{_block_forward_impl.1} parent=0 // pred_fallthru
    _
  // Predicated region
  $region134: #{_block_forward_impl.1} parent=0 // pred_check
    _
  $region135: #{_block_forward_impl.1} parent=0 // pred_check_branch
    %145 = sbr.rel (0) target = $region137
  $region136: #{_block_forward_impl.1} parent=0 // pred_region
    _
  $region137: #{_block_forward_impl.1} parent=0 // pred_fallthru
    _
  // Predicated region
  $region138: #{_block_forward_impl.1} parent=0 // pred_check
    _
  $region139: #{_block_forward_impl.1} parent=0 // pred_check_branch
    %147 = sbr.rel (0) target = $region141
  $region140: #{_block_forward_impl.1} parent=0 // pred_region
    _
  $region141: #{_block_forward_impl.1} parent=0 // pred_fallthru
    _
  // Predicated region
  $region142: #{_block_forward_impl.1} parent=0 // pred_check
    _
  $region143: #{_block_forward_impl.1} parent=0 // pred_check_branch
    %149 = sbr.rel (0) target = $region145
  $region144: #{_block_forward_impl.1} parent=0 // pred_region
    _
  $region145: #{_block_forward_impl.1} parent=0 // pred_fallthru
    _
  %v151 = vld [vmem:[%s1] sm:$0xff]
  %v152 = vld [vmem:[%s5] sm:$0xff]
  %v153 = vld [vmem:[%s5 + $0x8] sm:$0xff]
  %v154 = vld [vmem:[%s5 + $0x10] sm:$0xff]
  %v155 = vld [vmem:[%s5 + $0x18] sm:$0xff]
  %v156 = vld [vmem:[%s5 + $0x20] sm:$0xff]
  %v157 = vld [vmem:[%s5 + $0x28] sm:$0xff]
  %v158 = vld [vmem:[%s5 + $0x30] sm:$0xff]
  %v159 = vld [vmem:[%s5 + $0x38] sm:$0xff]
  %v160 = vld [vmem:[%s5 + $0x40] sm:$0xff]
  %v161 = vld [vmem:[%s5 + $0x48] sm:$0xff]
  %v162 = vld [vmem:[%s5 + $0x50] sm:$0xff]
  %v163 = vld [vmem:[%s5 + $0x58] sm:$0xff]
  %v164 = vld [vmem:[%s5 + $0x60] sm:$0xff]
  %v165 = vld [vmem:[%s5 + $0x68] sm:$0xff]
  %v166 = vld [vmem:[%s5 + $0x70] sm:$0xff]
  %v167 = vld [vmem:[%s5 + $0x78] sm:$0xff]
  %v168 = vld [vmem:[%s5 + $0x80] sm:$0xff]
  %v169 = vld [vmem:[%s5 + $0x88] sm:$0xff]
  %v170 = vld [vmem:[%s5 + $0x90] sm:$0xff]
  %v171 = vld [vmem:[%s5 + $0x98] sm:$0xff]
  %v172 = vld [vmem:[%s5 + $0xa0] sm:$0xff]
  %v173 = vld [vmem:[%s5 + $0xa8] sm:$0xff]
  %v174 = vld [vmem:[%s5 + $0xb0] sm:$0xff]
  %v175 = vld [vmem:[%s5 + $0xb8] sm:$0xff]
  %v176 = vld [vmem:[%s5 + $0xc0] sm:$0xff]
  %v177 = vld [vmem:[%s5 + $0xc8] sm:$0xff]
  %v178 = vld [vmem:[%s5 + $0xd0] sm:$0xff]
  %v179 = vld [vmem:[%s5 + $0xd8] sm:$0xff]
  %v180 = vld [vmem:[%s5 + $0xe0] sm:$0xff]
  %v181 = vld [vmem:[%s5 + $0xe8] sm:$0xff]
  %v182 = vld [vmem:[%s5 + $0xf0] sm:$0xff]
  %v183 = vld [vmem:[%s5 + $0xf8] sm:$0xff]
  %v184 = vld [vmem:[%s3] sm:$0xff]
  %v185 = vld [vmem:[%s3 + $0x8] sm:$0xff]
  %v186 = vld [vmem:[%s17] sm:$0xf]
  %v187 = vld [vmem:[%s17 + $0x4] sm:$0xf]
  %v188 = vld [vmem:[%s17 + $0x8] sm:$0xf]
  %v189 = vld [vmem:[%s17 + $0xc] sm:$0xf]
  %v190 = vld [vmem:[%s17 + $0x10] sm:$0xf]
  %v191 = vld [vmem:[%s17 + $0x14] sm:$0xf]
  %v192 = vld [vmem:[%s17 + $0x18] sm:$0xf]
  %v193 = vld [vmem:[%s17 + $0x1c] sm:$0xf]
  %v194 = vpack.c.bf16 %v185, %v184
  %v195 = vld [vmem:[%s19] sm:$0x1]
  %v197 = vperm.slane %v195, 0
  %v207 = vunpack.c.l.b16 %v186
  %v208 = vunpack.c.l.b16 %v187
  %v209 = vunpack.c.l.b16 %v188
  %v210 = vunpack.c.l.b16 %v189
  %v211 = vunpack.c.l.b16 %v190
  %v212 = vunpack.c.l.b16 %v191
  %v213 = vunpack.c.l.b16 %v192
  %v214 = vunpack.c.l.b16 %v193
  %v215 = vpack.c.b16 %v208, %v207
  %v216 = vpack.c.b16 %v210, %v209
  %v217 = vpack.c.b16 %v212, %v211
  %v218 = vpack.c.b16 %v214, %v213
  %vm223 = vcmask 523264
  %v225 = vsel %vm223, %v194, 0
  %227 = vmatpush.bf16.msra.mxu0 0
  %228 = vmatpush.bf16.msra.mxu0 0
  %229 = vmatpush.bf16.msra.mxu0 0
  %230 = vmatpush.bf16.msra.mxu0 0
  %231 = vmatpush.bf16.msra.mxu0 %v218
  %232 = vmatpush.bf16.msra.mxu0 %v217
  %233 = vmatpush.bf16.msra.mxu0 %v216
  %234 = vmatpush.bf16.msra.mxu0 %v215
  %235 = vmatmul.bf16.gmra.mxu0 %v225
  %v236 = vpop.f32.mrf.mxu0
  %v237 = vadd.f32 %v197, %v236
  %v238 = vpop.f32.mrf.mxu0
  %v239 = vadd.f32 %v197, %v238
  %240 = vdwg.mxu0
  %v241 = vmin.f32 %v237, 25.0
  %v242 = vmin.f32 %v239, 25.0
  %v243 = vmul.f32 %v241, 1.442695
  %v244 = vpow.pop %v243
  %v245 = vmul.f32 %v242, 1.442695
  %v246 = vpow.pop %v245
  %v247 = vadd.f32 %v244, 1.0
  %v248 = vadd.f32 %v246, 1.0
  %v249 = vmul.f32 %v247, %v247
  %v250 = vmul.f32 %v248, %v248
  %v251 = vadd.f32 %v249, 1.0
  %v252 = vadd.f32 %v250, 1.0
  %v253 = vrcp.pop %v251
  %v254 = vrcp.pop %v252
  %v255 = vmul.f32 %v253, 2.0
  %v256 = vmul.f32 %v254, 2.0
  %v257 = vsub.f32 1.0, %v255
  %v258 = vsub.f32 1.0, %v256
  %v259 = vmul.f32 %v237, %v257
  %v260 = vmul.f32 %v239, %v258
  %v261 = vld [vmem:[%s21] sm:$0xf]
  %v262 = vld [vmem:[%s21 + $0x4] sm:$0xf]
  %v263 = vld [vmem:[%s21 + $0x8] sm:$0xf]
  %v264 = vld [vmem:[%s21 + $0xc] sm:$0xf]
  %v265 = vld [vmem:[%s21 + $0x10] sm:$0xf]
  %v266 = vld [vmem:[%s21 + $0x14] sm:$0xf]
  %v267 = vld [vmem:[%s21 + $0x18] sm:$0xf]
  %v268 = vld [vmem:[%s21 + $0x1c] sm:$0xf]
  %v269 = vld [vmem:[%s21 + $0x20] sm:$0xf]
  %v270 = vld [vmem:[%s21 + $0x24] sm:$0xf]
  %v271 = vld [vmem:[%s21 + $0x28] sm:$0xf]
  %v272 = vld [vmem:[%s21 + $0x2c] sm:$0xf]
  %v273 = vld [vmem:[%s21 + $0x30] sm:$0xf]
  %v274 = vld [vmem:[%s21 + $0x34] sm:$0xf]
  %v275 = vld [vmem:[%s21 + $0x38] sm:$0xf]
  %v276 = vld [vmem:[%s21 + $0x3c] sm:$0xf]
  %v277 = vpack.c.bf16 %v260, %v259
  %v278 = vld [vmem:[%s23] sm:$0x1]
  %v280 = vperm.slane %v278, 0
  %v298 = vunpack.c.l.b16 %v261
  %v299 = vunpack.c.l.b16 %v262
  %v300 = vunpack.c.l.b16 %v263
  %v301 = vunpack.c.l.b16 %v264
  %v302 = vunpack.c.l.b16 %v265
  %v303 = vunpack.c.l.b16 %v266
  %v304 = vunpack.c.l.b16 %v267
  %v305 = vunpack.c.l.b16 %v268
  %v306 = vunpack.c.l.b16 %v269
  %v307 = vunpack.c.l.b16 %v270
  %v308 = vunpack.c.l.b16 %v271
  %v309 = vunpack.c.l.b16 %v272
  %v310 = vunpack.c.l.b16 %v273
  %v311 = vunpack.c.l.b16 %v274
  %v312 = vunpack.c.l.b16 %v275
  %v313 = vunpack.c.l.b16 %v276
  %v314 = vpack.c.b16 %v299, %v298
  %v315 = vpack.c.b16 %v301, %v300
  %v316 = vpack.c.b16 %v303, %v302
  %v317 = vpack.c.b16 %v305, %v304
  %v318 = vpack.c.b16 %v307, %v306
  %v319 = vpack.c.b16 %v309, %v308
  %v320 = vpack.c.b16 %v311, %v310
  %v321 = vpack.c.b16 %v313, %v312
  %330 = vmatpush.bf16.msra.mxu0 %v321
  %331 = vmatpush.bf16.msra.mxu0 %v320
  %332 = vmatpush.bf16.msra.mxu0 %v319
  %333 = vmatpush.bf16.msra.mxu0 %v318
  %334 = vmatpush.bf16.msra.mxu0 %v317
  %335 = vmatpush.bf16.msra.mxu0 %v316
  %336 = vmatpush.bf16.msra.mxu0 %v315
  %337 = vmatpush.bf16.msra.mxu0 %v314
  %338 = vmatmul.bf16.gmra.mxu0 %v277
  %v339 = vpop.f32.mrf.mxu0
  %v340 = vadd.f32 %v280, %v339
  %v341 = vpop.f32.mrf.mxu0
  %v342 = vadd.f32 %v280, %v341
  %343 = vdwg.mxu0
  %v344 = vld [vmem:[%s11] sm:$0xff]
  %v345 = vld [vmem:[%s11 + $0x8] sm:$0xff]
  %v346 = vpack.c.bf16 %v342, %v340
  %v349 = vunpack.c.l.b16 %v344
  %v350 = vunpack.c.h.b16 %v344
  %v351 = vunpack.c.l.b16 %v345
  %v352 = vunpack.c.h.b16 %v345
  %v353 = vpack.c.b16 %v351, %v349
  %v354 = vpack.c.b16 %v352, %v350
  %vm357 = vcmask 130048
  %v359 = vsel %vm357, %v346, 0
  %361 = vmatpush.bf16.msra.mxu0 0
  %362 = vmatpush.bf16.msra.mxu0 0
  %363 = vmatpush.bf16.msra.mxu0 0
  %364 = vmatpush.bf16.msra.mxu0 0
  %365 = vmatpush.bf16.msra.mxu0 0
  %366 = vmatpush.bf16.msra.mxu0 0
  %367 = vmatpush.bf16.msra.mxu0 0
  %368 = vmatpush.bf16.msra.mxu0 %v353
  %369 = vmatmul.bf16.gmra.mxu0 %v359
  %v370 = vpop.f32.mrf.mxu0
  %v371 = vadd.f32 0.0, %v370
  %v372 = vpop.f32.mrf.mxu0
  %v373 = vadd.f32 0.0, %v372
  %374 = vdwg.mxu0
  %375 = vmatpush.bf16.msra.mxu0 0
  %376 = vmatpush.bf16.msra.mxu0 0
  %377 = vmatpush.bf16.msra.mxu0 0
  %378 = vmatpush.bf16.msra.mxu0 0
  %379 = vmatpush.bf16.msra.mxu0 0
  %380 = vmatpush.bf16.msra.mxu0 0
  %381 = vmatpush.bf16.msra.mxu0 0
  %382 = vmatpush.bf16.msra.mxu0 %v354
  %383 = vmatmul.bf16.gmra.mxu0 %v359
  %v384 = vpop.f32.mrf.mxu0
  %v385 = vadd.f32 0.0, %v384
  %v386 = vpop.f32.mrf.mxu0
  %v387 = vadd.f32 0.0, %v386
  %388 = vdwg.mxu0
  %v389 = vld [vmem:[%s13] sm:$0xff]
  %v390 = vld [vmem:[%s13 + $0x8] sm:$0xff]
  %v391 = vld [vmem:[%s13 + $0x10] sm:$0xff]
  %v392 = vld [vmem:[%s13 + $0x18] sm:$0xff]
  %v393 = vmul.f32 %v371, %v389
  %v394 = vmul.f32 %v385, %v390
  %v395 = vmul.f32 %v373, %v391
  %v396 = vmul.f32 %v387, %v392
  %v397 = vadd.f32 %v393, %v395
  %v398 = vrot.slane %v397, 4
  %v399 = vadd.f32 %v397, %v398
  %v400 = vrot.slane %v399, 2
  %v401 = vadd.f32 %v399, %v400
  %v402 = vrot.slane %v401, 1
  %v403 = vadd.f32 %v401, %v402
  %v404 = vadd.f32 %v394, %v396
  %v405 = vrot.slane %v404, 4
  %v406 = vadd.f32 %v404, %v405
  %v407 = vrot.slane %v406, 2
  %v408 = vadd.f32 %v406, %v407
  %v409 = vrot.slane %v408, 1
  %v410 = vadd.f32 %v408, %v409
  %v411 = vld [vmem:[%s25] sm:$0xf]
  %v412 = vmin.f32 %v403, 25.0
  %v413 = vmin.f32 %v410, 25.0
  %v414 = vmul.f32 %v412, 1.442695
  %v415 = vpow.pop %v414
  %v416 = vmul.f32 %v413, 1.442695
  %v417 = vpow.pop %v416
  %v418 = vadd.f32 %v415, 1.0
  %v419 = vadd.f32 %v417, 1.0
  %v420 = vmul.f32 %v418, %v418
  %v421 = vmul.f32 %v419, %v419
  %v422 = vadd.f32 %v420, 1.0
  %v423 = vadd.f32 %v421, 1.0
  %v424 = vrcp.pop %v422
  %v425 = vrcp.pop %v423
  %v426 = vmul.f32 %v424, 2.0
  %v427 = vmul.f32 %v425, 2.0
  %v428 = vsub.f32 1.0, %v426
  %v429 = vsub.f32 1.0, %v427
  %v430 = vmul.f32 %v403, %v428
  %v431 = vmul.f32 %v410, %v429
  %433 = vset.pattern.permute.xlu0 0
  %434 = vperm.xlu0 %433, %v411
  %v435 = vpop.permute.xlu0 %434
  %v437 = vmul.f32 %v435, %v430
  %v438 = vmul.f32 %v435, %v431
  %v439 = vld [vmem:[%s27] sm:$0xf]
  %441 = vset.pattern.permute.xlu0 0
  %442 = vperm.xlu0 %441, %v439
  %v443 = vpop.permute.xlu0 %442
  %v445 = vadd.f32 %v437, %v443
  %v446 = vadd.f32 %v438, %v443
  %v447 = vld [vmem:[%s29] sm:$0x3]
  %v448 = vmin.f32 %v445, 25.0
  %v449 = vmin.f32 %v446, 25.0
  %v450 = vmul.f32 %v448, 1.442695
  %v451 = vpow.pop %v450
  %v452 = vmul.f32 %v449, 1.442695
  %v453 = vpow.pop %v452
  %v454 = vadd.f32 %v451, 1.0
  %v455 = vadd.f32 %v453, 1.0
  %v456 = vmul.f32 %v454, %v454
  %v457 = vmul.f32 %v455, %v455
  %v458 = vadd.f32 %v456, 1.0
  %v459 = vadd.f32 %v457, 1.0
  %v460 = vrcp.pop %v458
  %v461 = vrcp.pop %v459
  %v462 = vmul.f32 %v460, 2.0
  %v463 = vmul.f32 %v461, 2.0
  %v464 = vsub.f32 1.0, %v462
  %v465 = vsub.f32 1.0, %v463
  %v466 = vmul.f32 %v445, %v464
  %v467 = vmul.f32 %v446, %v465
  %v468 = vadd.f32 %v466, %v403
  %v469 = vadd.f32 %v467, %v410
  %v470 = vpack.c.bf16 %v468, %v468
  %v471 = vpack.c.bf16 %v469, %v469
  %v472 = vld [vmem:[%s31] sm:$0xf]
  %474 = vset.pattern.permute.xlu0 0
  %475 = vperm.xlu0 %474, %v472
  %v476 = vpop.permute.xlu0 %475
  %vm478 = vcmask 31744
  %v480 = vsel %vm478, %v447, 0
  %vm482 = vcmask 1041408
  %v484 = vsel %vm482, %v470, 0
  %v487 = vsel %vm482, %v471, 0
  %489 = vmatpush.bf16.msra.mxu0 0
  %490 = vmatpush.bf16.msra.mxu0 0
  %491 = vmatpush.bf16.msra.mxu0 0
  %492 = vmatpush.bf16.msra.mxu0 0
  %493 = vmatpush.bf16.msra.mxu0 0
  %494 = vmatpush.bf16.msra.mxu0 0
  %495 = vmatpush.bf16.msra.mxu0 0
  %496 = vmatpush.bf16.msra.mxu0 %v484
  %497 = vmatmul.bf16.gmra.mxu0 %v480
  %v498 = vpop.f32.mrf.mxu0
  %v499 = vadd.f32 %v476, %v498
  %v500 = vpop.f32.mrf.mxu0
  %501 = vdwg.mxu0
  %502 = vmatpush.bf16.msra.mxu0 0
  %503 = vmatpush.bf16.msra.mxu0 0
  %504 = vmatpush.bf16.msra.mxu0 0
  %505 = vmatpush.bf16.msra.mxu0 0
  %506 = vmatpush.bf16.msra.mxu0 0
  %507 = vmatpush.bf16.msra.mxu0 0
  %508 = vmatpush.bf16.msra.mxu0 0
  %509 = vmatpush.bf16.msra.mxu0 %v487
  %510 = vmatmul.bf16.gmra.mxu0 %v480
  %v511 = vpop.f32.mrf.mxu0
  %v512 = vadd.f32 %v476, %v511
  %v513 = vpop.f32.mrf.mxu0
  %514 = vdwg.mxu0
  %v517 = vrot.slane %v512, 4
  %vm518 = vcmask 1043456
  %v519 = vsel %vm518, %v499, %v517
  %v521 = vadd.f32 %v151, %v519
  %v522 = vld [vmem:[%s15] sm:$0x1f]
  %v523 = vld [vmem:[%s15 + $0x8] sm:$0x1f]
  %s524 = scalar_lea.vmem %s33, 8
  %v525 = vld [vmem:[%s524] sm:$0x7]
  %527 = vst [vmem:[#allocation1] ss:$2 sm:$0xff] %v521
  %v528 = vld.sshfl [vmem:[#allocation1] sm:$0xff pattern:$0x75316420]
  %v529 = vld.sshfl [vmem:[#allocation1 + $0x8] sm:$0xff pattern:$0x75316420]
  %v532 = vpack.c.bf16 %v528, %v528
  %v533 = vpack.c.bf16 %v529, %v529
  %534 = vst [vmem:[#allocation1] ss:$2 sm:$0xff] %v521
  %v535 = vld.sshfl [vmem:[#allocation1] sm:$0xff pattern:$0x75316420]
  %v536 = vld.sshfl [vmem:[#allocation1 + $0x8] sm:$0xff pattern:$0x75316420]
  %539 = vrot.lane.b32.xlu0 %v535, 2
  %v540 = vpop.permute.xlu0 %539
  %541 = vrot.lane.b32.xlu0 %v536, 2
  %v542 = vpop.permute.xlu0 %541
  %v543 = vlaneseq
  %v544 = vand.u32 %v543, 127
  %vm545 = vcmp.lt.s32.totalorder %v544, 2
  %v546 = vsel %vm545, %v540, %v542
  %v547 = vsel %vm545, %v542, %v540
  %v548 = vperm.slane %v522, 0
  %v549 = vperm.slane %v523, 0
  %v550 = vmul.f32 %v547, %v548
  %v551 = vmul.f32 %v546, %v549
  %v552 = vld [vmem:[%s33] sm:$0x7]
  %v553 = vpack.c.bf16 %v550, %v550
  %v554 = vpack.c.bf16 %v551, %v551
  %v556 = vsel %vm478, %v552, 0
  %v559 = vsel %vm482, %v553, 0
  %v562 = vsel %vm482, %v554, 0
  %564 = vmatpush.bf16.msra.mxu0 0
  %565 = vmatpush.bf16.msra.mxu0 0
  %566 = vmatpush.bf16.msra.mxu0 0
  %567 = vmatpush.bf16.msra.mxu0 0
  %568 = vmatpush.bf16.msra.mxu0 0
  %569 = vmatpush.bf16.msra.mxu0 0
  %570 = vmatpush.bf16.msra.mxu0 0
  %571 = vmatpush.bf16.msra.mxu0 %v559
  %572 = vmatmul.bf16.gmra.mxu0 %v556
  %v573 = vpop.f32.mrf.mxu0
  %v574 = vadd.f32 0.0, %v573
  %v575 = vpop.f32.mrf.mxu0
  %576 = vdwg.mxu0
  %577 = vmatpush.bf16.msra.mxu0 0
  %578 = vmatpush.bf16.msra.mxu0 0
  %579 = vmatpush.bf16.msra.mxu0 0
  %580 = vmatpush.bf16.msra.mxu0 0
  %581 = vmatpush.bf16.msra.mxu0 0
  %582 = vmatpush.bf16.msra.mxu0 0
  %583 = vmatpush.bf16.msra.mxu0 0
  %584 = vmatpush.bf16.msra.mxu0 %v562
  %585 = vmatmul.bf16.gmra.mxu0 %v556
  %v586 = vpop.f32.mrf.mxu0
  %v587 = vadd.f32 0.0, %v586
  %v588 = vpop.f32.mrf.mxu0
  %589 = vdwg.mxu0
  %v591 = vsel %vm478, %v525, 0
  %v594 = vsel %vm482, %v532, 0
  %v597 = vsel %vm482, %v533, 0
  %599 = vmatpush.bf16.msra.mxu0 0
  %600 = vmatpush.bf16.msra.mxu0 0
  %601 = vmatpush.bf16.msra.mxu0 0
  %602 = vmatpush.bf16.msra.mxu0 0
  %603 = vmatpush.bf16.msra.mxu0 0
  %604 = vmatpush.bf16.msra.mxu0 0
  %605 = vmatpush.bf16.msra.mxu0 0
  %606 = vmatpush.bf16.msra.mxu0 %v594
  %607 = vmatmul.bf16.gmra.mxu0 %v591
  %v608 = vpop.f32.mrf.mxu0
  %v609 = vadd.f32 %v574, %v608
  %v610 = vpop.f32.mrf.mxu0
  %611 = vdwg.mxu0
  %612 = vmatpush.bf16.msra.mxu0 0
  %613 = vmatpush.bf16.msra.mxu0 0
  %614 = vmatpush.bf16.msra.mxu0 0
  %615 = vmatpush.bf16.msra.mxu0 0
  %616 = vmatpush.bf16.msra.mxu0 0
  %617 = vmatpush.bf16.msra.mxu0 0
  %618 = vmatpush.bf16.msra.mxu0 0
  %619 = vmatpush.bf16.msra.mxu0 %v597
  %620 = vmatmul.bf16.gmra.mxu0 %v591
  %v621 = vpop.f32.mrf.mxu0
  %v622 = vadd.f32 %v587, %v621
  %v623 = vpop.f32.mrf.mxu0
  %624 = vdwg.mxu0
  %625 = vst [vmem:[#allocation1] ss:$2 sm:$0xff] %v521
  %v626 = vld.sshfl [vmem:[#allocation1] sm:$0xff pattern:$0x75316420]
  %v627 = vld.sshfl [vmem:[#allocation1 + $0x8] sm:$0xff pattern:$0x75316420]
  %630 = vrot.lane.b32.xlu0 %v626, 1
  %v631 = vpop.permute.xlu0 %630
  %632 = vrot.lane.b32.xlu0 %v627, 1
  %v633 = vpop.permute.xlu0 %632
  %vm634 = vcmp.lt.s32.totalorder %v544, 1
  %v635 = vsel %vm634, %v631, %v633
  %v636 = vsel %vm634, %v633, %v631
  %v637 = vperm.slane %v522, 1
  %v638 = vperm.slane %v523, 1
  %v639 = vmul.f32 %v636, %v637
  %v640 = vmul.f32 %v635, %v638
  %s641 = scalar_lea.vmem %s33, 4
  %v642 = vld [vmem:[%s641] sm:$0x7]
  %v643 = vpack.c.bf16 %v639, %v639
  %v644 = vpack.c.bf16 %v640, %v640
  %v646 = vsel %vm478, %v642, 0
  %v649 = vsel %vm482, %v643, 0
  %v652 = vsel %vm482, %v644, 0
  %654 = vmatpush.bf16.msra.mxu0 0
  %655 = vmatpush.bf16.msra.mxu0 0
  %656 = vmatpush.bf16.msra.mxu0 0
  %657 = vmatpush.bf16.msra.mxu0 0
  %658 = vmatpush.bf16.msra.mxu0 0
  %659 = vmatpush.bf16.msra.mxu0 0
  %660 = vmatpush.bf16.msra.mxu0 0
  %661 = vmatpush.bf16.msra.mxu0 %v649
  %662 = vmatmul.bf16.gmra.mxu0 %v646
  %v663 = vpop.f32.mrf.mxu0
  %v664 = vadd.f32 0.0, %v663
  %v665 = vpop.f32.mrf.mxu0
  %666 = vdwg.mxu0
  %667 = vmatpush.bf16.msra.mxu0 0
  %668 = vmatpush.bf16.msra.mxu0 0
  %669 = vmatpush.bf16.msra.mxu0 0
  %670 = vmatpush.bf16.msra.mxu0 0
  %671 = vmatpush.bf16.msra.mxu0 0
  %672 = vmatpush.bf16.msra.mxu0 0
  %673 = vmatpush.bf16.msra.mxu0 0
  %674 = vmatpush.bf16.msra.mxu0 %v652
  %675 = vmatmul.bf16.gmra.mxu0 %v646
  %v676 = vpop.f32.mrf.mxu0
  %v677 = vadd.f32 0.0, %v676
  %v678 = vpop.f32.mrf.mxu0
  %679 = vdwg.mxu0
  %v680 = vadd.f32 %v609, %v664
  %v681 = vadd.f32 %v622, %v677
  %682 = vst [vmem:[#allocation1] ss:$2 sm:$0xff] %v521
  %v683 = vld.sshfl [vmem:[#allocation1] sm:$0xff pattern:$0x75316420]
  %v684 = vld.sshfl [vmem:[#allocation1 + $0x8] sm:$0xff pattern:$0x75316420]
  %687 = vrot.lane.b32.xlu0 %v683, 127
  %v688 = vpop.permute.xlu0 %687
  %689 = vrot.lane.b32.xlu0 %v684, 127
  %v690 = vpop.permute.xlu0 %689
  %vm691 = vcmp.lt.s32.totalorder %v544, 127
  %v692 = vsel %vm691, %v688, %v690
  %v693 = vsel %vm691, %v690, %v688
  %v694 = vperm.slane %v522, 3
  %v695 = vperm.slane %v523, 3
  %v696 = vmul.f32 %v692, %v694
  %v697 = vmul.f32 %v693, %v695
  %s698 = scalar_lea.vmem %s33, 12
  %v699 = vld [vmem:[%s698] sm:$0x7]
  %v700 = vpack.c.bf16 %v696, %v696
  %v701 = vpack.c.bf16 %v697, %v697
  %v703 = vsel %vm478, %v699, 0
  %v706 = vsel %vm482, %v700, 0
  %v709 = vsel %vm482, %v701, 0
  %711 = vmatpush.bf16.msra.mxu0 0
  %712 = vmatpush.bf16.msra.mxu0 0
  %713 = vmatpush.bf16.msra.mxu0 0
  %714 = vmatpush.bf16.msra.mxu0 0
  %715 = vmatpush.bf16.msra.mxu0 0
  %716 = vmatpush.bf16.msra.mxu0 0
  %717 = vmatpush.bf16.msra.mxu0 0
  %718 = vmatpush.bf16.msra.mxu0 %v706
  %719 = vmatmul.bf16.gmra.mxu0 %v703
  %v720 = vpop.f32.mrf.mxu0
  %v721 = vadd.f32 0.0, %v720
  %v722 = vpop.f32.mrf.mxu0
  %723 = vdwg.mxu0
  %724 = vmatpush.bf16.msra.mxu0 0
  %725 = vmatpush.bf16.msra.mxu0 0
  %726 = vmatpush.bf16.msra.mxu0 0
  %727 = vmatpush.bf16.msra.mxu0 0
  %728 = vmatpush.bf16.msra.mxu0 0
  %729 = vmatpush.bf16.msra.mxu0 0
  %730 = vmatpush.bf16.msra.mxu0 0
  %731 = vmatpush.bf16.msra.mxu0 %v709
  %732 = vmatmul.bf16.gmra.mxu0 %v703
  %v733 = vpop.f32.mrf.mxu0
  %v734 = vadd.f32 0.0, %v733
  %v735 = vpop.f32.mrf.mxu0
  %736 = vdwg.mxu0
  %v737 = vadd.f32 %v680, %v721
  %v738 = vadd.f32 %v681, %v734
  %739 = vst [vmem:[#allocation1] ss:$2 sm:$0xff] %v521
  %v740 = vld.sshfl [vmem:[#allocation1] sm:$0xff pattern:$0x75316420]
  %v741 = vld.sshfl [vmem:[#allocation1 + $0x8] sm:$0xff pattern:$0x75316420]
  %744 = vrot.lane.b32.xlu0 %v740, 126
  %v745 = vpop.permute.xlu0 %744
  %746 = vrot.lane.b32.xlu0 %v741, 126
  %v747 = vpop.permute.xlu0 %746
  %vm748 = vcmp.lt.s32.totalorder %v544, 126
  %v749 = vsel %vm748, %v745, %v747
  %v750 = vsel %vm748, %v747, %v745
  %v751 = vperm.slane %v522, 4
  %v752 = vperm.slane %v523, 4
  %v753 = vmul.f32 %v749, %v751
  %v754 = vmul.f32 %v750, %v752
  %s755 = scalar_lea.vmem %s33, 16
  %v756 = vld [vmem:[%s755] sm:$0x7]
  %v757 = vpack.c.bf16 %v753, %v753
  %v758 = vpack.c.bf16 %v754, %v754
  %v760 = vsel %vm478, %v756, 0
  %v763 = vsel %vm482, %v757, 0
  %v766 = vsel %vm482, %v758, 0
  %768 = vmatpush.bf16.msra.mxu0 0
  %769 = vmatpush.bf16.msra.mxu0 0
  %770 = vmatpush.bf16.msra.mxu0 0
  %771 = vmatpush.bf16.msra.mxu0 0
  %772 = vmatpush.bf16.msra.mxu0 0
  %773 = vmatpush.bf16.msra.mxu0 0
  %774 = vmatpush.bf16.msra.mxu0 0
  %775 = vmatpush.bf16.msra.mxu0 %v763
  %776 = vmatmul.bf16.gmra.mxu0 %v760
  %v777 = vpop.f32.mrf.mxu0
  %v778 = vadd.f32 0.0, %v777
  %v779 = vpop.f32.mrf.mxu0
  %780 = vdwg.mxu0
  %781 = vmatpush.bf16.msra.mxu0 0
  %782 = vmatpush.bf16.msra.mxu0 0
  %783 = vmatpush.bf16.msra.mxu0 0
  %784 = vmatpush.bf16.msra.mxu0 0
  %785 = vmatpush.bf16.msra.mxu0 0
  %786 = vmatpush.bf16.msra.mxu0 0
  %787 = vmatpush.bf16.msra.mxu0 0
  %788 = vmatpush.bf16.msra.mxu0 %v766
  %789 = vmatmul.bf16.gmra.mxu0 %v760
  %v790 = vpop.f32.mrf.mxu0
  %v791 = vadd.f32 0.0, %v790
  %v792 = vpop.f32.mrf.mxu0
  %793 = vdwg.mxu0
  %v794 = vadd.f32 %v737, %v778
  %v795 = vadd.f32 %v738, %v791
  %v796 = vld [vmem:[%s35] sm:$0x3f]
  %798 = vset.pattern.permute.xlu0 0
  %799 = vperm.xlu0 %798, %v796
  %v800 = vpop.permute.xlu0 %799
  %v802 = vadd.f32 %v794, %v800
  %v803 = vadd.f32 %v795, %v800
  %v804 = vpack.c.bf16 %v802, %v802
  %v805 = vpack.c.bf16 %v803, %v803
  %v838 = vunpack.c.l.b16 %v152
  %v839 = vunpack.c.h.b16 %v152
  %v840 = vunpack.c.l.b16 %v153
  %v841 = vunpack.c.h.b16 %v153
  %v842 = vunpack.c.l.b16 %v154
  %v843 = vunpack.c.h.b16 %v154
  %v844 = vunpack.c.l.b16 %v155
  %v845 = vunpack.c.h.b16 %v155
  %v846 = vunpack.c.l.b16 %v156
  %v847 = vunpack.c.h.b16 %v156
  %v848 = vunpack.c.l.b16 %v157
  %v849 = vunpack.c.h.b16 %v157
  %v850 = vunpack.c.l.b16 %v158
  %v851 = vunpack.c.h.b16 %v158
  %v852 = vunpack.c.l.b16 %v159
  %v853 = vunpack.c.h.b16 %v159
  %v854 = vunpack.c.l.b16 %v160
  %v855 = vunpack.c.h.b16 %v160
  %v856 = vunpack.c.l.b16 %v161
  %v857 = vunpack.c.h.b16 %v161
  %v858 = vunpack.c.l.b16 %v162
  %v859 = vunpack.c.h.b16 %v162
  %v860 = vunpack.c.l.b16 %v163
  %v861 = vunpack.c.h.b16 %v163
  %v862 = vunpack.c.l.b16 %v164
  %v863 = vunpack.c.h.b16 %v164
  %v864 = vunpack.c.l.b16 %v165
  %v865 = vunpack.c.h.b16 %v165
  %v866 = vunpack.c.l.b16 %v166
  %v867 = vunpack.c.h.b16 %v166
  %v868 = vunpack.c.l.b16 %v167
  %v869 = vunpack.c.h.b16 %v167
  %v870 = vunpack.c.l.b16 %v168
  %v871 = vunpack.c.h.b16 %v168
  %v872 = vunpack.c.l.b16 %v169
  %v873 = vunpack.c.h.b16 %v169
  %v874 = vunpack.c.l.b16 %v170
  %v875 = vunpack.c.h.b16 %v170
  %v876 = vunpack.c.l.b16 %v171
  %v877 = vunpack.c.h.b16 %v171
  %v878 = vunpack.c.l.b16 %v172
  %v879 = vunpack.c.h.b16 %v172
  %v880 = vunpack.c.l.b16 %v173
  %v881 = vunpack.c.h.b16 %v173
  %v882 = vunpack.c.l.b16 %v174
  %v883 = vunpack.c.h.b16 %v174
  %v884 = vunpack.c.l.b16 %v175
  %v885 = vunpack.c.h.b16 %v175
  %v886 = vunpack.c.l.b16 %v176
  %v887 = vunpack.c.h.b16 %v176
  %v888 = vunpack.c.l.b16 %v177
  %v889 = vunpack.c.h.b16 %v177
  %v890 = vunpack.c.l.b16 %v178
  %v891 = vunpack.c.h.b16 %v178
  %v892 = vunpack.c.l.b16 %v179
  %v893 = vunpack.c.h.b16 %v179
  %v894 = vunpack.c.l.b16 %v180
  %v895 = vunpack.c.h.b16 %v180
  %v896 = vunpack.c.l.b16 %v181
  %v897 = vunpack.c.h.b16 %v181
  %v898 = vunpack.c.l.b16 %v182
  %v899 = vunpack.c.h.b16 %v182
  %v900 = vunpack.c.l.b16 %v183
  %v901 = vunpack.c.h.b16 %v183
  %v902 = vpack.c.b16 %v840, %v838
  %v903 = vpack.c.b16 %v841, %v839
  %v904 = vpack.c.b16 %v844, %v842
  %v905 = vpack.c.b16 %v845, %v843
  %v906 = vpack.c.b16 %v848, %v846
  %v907 = vpack.c.b16 %v849, %v847
  %v908 = vpack.c.b16 %v852, %v850
  %v909 = vpack.c.b16 %v853, %v851
  %v910 = vpack.c.b16 %v856, %v854
  %v911 = vpack.c.b16 %v857, %v855
  %v912 = vpack.c.b16 %v860, %v858
  %v913 = vpack.c.b16 %v861, %v859
  %v914 = vpack.c.b16 %v864, %v862
  %v915 = vpack.c.b16 %v865, %v863
  %v916 = vpack.c.b16 %v868, %v866
  %v917 = vpack.c.b16 %v869, %v867
  %v918 = vpack.c.b16 %v872, %v870
  %v919 = vpack.c.b16 %v873, %v871
  %v920 = vpack.c.b16 %v876, %v874
  %v921 = vpack.c.b16 %v877, %v875
  %v922 = vpack.c.b16 %v880, %v878
  %v923 = vpack.c.b16 %v881, %v879
  %v924 = vpack.c.b16 %v884, %v882
  %v925 = vpack.c.b16 %v885, %v883
  %v926 = vpack.c.b16 %v888, %v886
  %v927 = vpack.c.b16 %v889, %v887
  %v928 = vpack.c.b16 %v892, %v890
  %v929 = vpack.c.b16 %v893, %v891
  %v930 = vpack.c.b16 %v896, %v894
  %v931 = vpack.c.b16 %v897, %v895
  %v932 = vpack.c.b16 %v900, %v898
  %v933 = vpack.c.b16 %v901, %v899
  %966 = vmatpush.bf16.msra.mxu0 %v916
  %967 = vmatpush.bf16.msra.mxu0 %v914
  %968 = vmatpush.bf16.msra.mxu0 %v912
  %969 = vmatpush.bf16.msra.mxu0 %v910
  %970 = vmatpush.bf16.msra.mxu0 %v908
  %971 = vmatpush.bf16.msra.mxu0 %v906
  %972 = vmatpush.bf16.msra.mxu0 %v904
  %973 = vmatpush.bf16.msra.mxu0 %v902
  %974 = vmatmul.bf16.gmra.mxu0 %v804
  %v975 = vpop.f32.mrf.mxu0
  %v976 = vadd.f32 0.0, %v975
  %v977 = vpop.f32.mrf.mxu0
  %978 = vdwg.mxu0
  %979 = vmatpush.bf16.msra.mxu0 %v932
  %980 = vmatpush.bf16.msra.mxu0 %v930
  %981 = vmatpush.bf16.msra.mxu0 %v928
  %982 = vmatpush.bf16.msra.mxu0 %v926
  %983 = vmatpush.bf16.msra.mxu0 %v924
  %984 = vmatpush.bf16.msra.mxu0 %v922
  %985 = vmatpush.bf16.msra.mxu0 %v920
  %986 = vmatpush.bf16.msra.mxu0 %v918
  %987 = vmatmul.bf16.gmra.mxu0 %v805
  %v988 = vpop.f32.mrf.mxu0
  %v989 = vadd.f32 %v976, %v988
  %v990 = vpop.f32.mrf.mxu0
  %991 = vdwg.mxu0
  %992 = vmatpush.bf16.msra.mxu0 %v917
  %993 = vmatpush.bf16.msra.mxu0 %v915
  %994 = vmatpush.bf16.msra.mxu0 %v913
  %995 = vmatpush.bf16.msra.mxu0 %v911
  %996 = vmatpush.bf16.msra.mxu0 %v909
  %997 = vmatpush.bf16.msra.mxu0 %v907
  %998 = vmatpush.bf16.msra.mxu0 %v905
  %999 = vmatpush.bf16.msra.mxu0 %v903
  %1000 = vmatmul.bf16.gmra.mxu0 %v804
  %v1001 = vpop.f32.mrf.mxu0
  %v1002 = vadd.f32 0.0, %v1001
  %v1003 = vpop.f32.mrf.mxu0
  %1004 = vdwg.mxu0
  %1005 = vmatpush.bf16.msra.mxu0 %v933
  %1006 = vmatpush.bf16.msra.mxu0 %v931
  %1007 = vmatpush.bf16.msra.mxu0 %v929
  %1008 = vmatpush.bf16.msra.mxu0 %v927
  %1009 = vmatpush.bf16.msra.mxu0 %v925
  %1010 = vmatpush.bf16.msra.mxu0 %v923
  %1011 = vmatpush.bf16.msra.mxu0 %v921
  %1012 = vmatpush.bf16.msra.mxu0 %v919
  %1013 = vmatmul.bf16.gmra.mxu0 %v805
  %v1014 = vpop.f32.mrf.mxu0
  %v1015 = vadd.f32 %v1002, %v1014
  %v1016 = vpop.f32.mrf.mxu0
  %1017 = vdwg.mxu0
  %v1018 = vsub.f32 %v802, %v989
  %v1019 = vsub.f32 %v803, %v1015
  %v1020 = vmul.f32 %v1018, %v1018
  %v1021 = vmul.f32 %v1019, %v1019
  %v1022 = vpack.c.bf16 %v1020, %v1020
  %v1023 = vpack.c.bf16 %v1021, %v1021
  %1024 = vmatpush.bf16.msra.mxu0 %v916
  %1025 = vmatpush.bf16.msra.mxu0 %v914
  %1026 = vmatpush.bf16.msra.mxu0 %v912
  %1027 = vmatpush.bf16.msra.mxu0 %v910
  %1028 = vmatpush.bf16.msra.mxu0 %v908
  %1029 = vmatpush.bf16.msra.mxu0 %v906
  %1030 = vmatpush.bf16.msra.mxu0 %v904
  %1031 = vmatpush.bf16.msra.mxu0 %v902
  %1032 = vmatmul.bf16.gmra.mxu0 %v1022
  %v1033 = vpop.f32.mrf.mxu0
  %v1034 = vadd.f32 1e-05, %v1033
  %v1035 = vpop.f32.mrf.mxu0
  %1036 = vdwg.mxu0
  %1037 = vmatpush.bf16.msra.mxu0 %v932
  %1038 = vmatpush.bf16.msra.mxu0 %v930
  %1039 = vmatpush.bf16.msra.mxu0 %v928
  %1040 = vmatpush.bf16.msra.mxu0 %v926
  %1041 = vmatpush.bf16.msra.mxu0 %v924
  %1042 = vmatpush.bf16.msra.mxu0 %v922
  %1043 = vmatpush.bf16.msra.mxu0 %v920
  %1044 = vmatpush.bf16.msra.mxu0 %v918
  %1045 = vmatmul.bf16.gmra.mxu0 %v1023
  %v1046 = vpop.f32.mrf.mxu0
  %v1047 = vadd.f32 %v1034, %v1046
  %v1048 = vpop.f32.mrf.mxu0
  %1049 = vdwg.mxu0
  %1050 = vmatpush.bf16.msra.mxu0 %v917
  %1051 = vmatpush.bf16.msra.mxu0 %v915
  %1052 = vmatpush.bf16.msra.mxu0 %v913
  %1053 = vmatpush.bf16.msra.mxu0 %v911
  %1054 = vmatpush.bf16.msra.mxu0 %v909
  %1055 = vmatpush.bf16.msra.mxu0 %v907
  %1056 = vmatpush.bf16.msra.mxu0 %v905
  %1057 = vmatpush.bf16.msra.mxu0 %v903
  %1058 = vmatmul.bf16.gmra.mxu0 %v1022
  %v1059 = vpop.f32.mrf.mxu0
  %v1060 = vadd.f32 1e-05, %v1059
  %v1061 = vpop.f32.mrf.mxu0
  %1062 = vdwg.mxu0
  %1063 = vmatpush.bf16.msra.mxu0 %v933
  %1064 = vmatpush.bf16.msra.mxu0 %v931
  %1065 = vmatpush.bf16.msra.mxu0 %v929
  %1066 = vmatpush.bf16.msra.mxu0 %v927
  %1067 = vmatpush.bf16.msra.mxu0 %v925
  %1068 = vmatpush.bf16.msra.mxu0 %v923
  %1069 = vmatpush.bf16.msra.mxu0 %v921
  %1070 = vmatpush.bf16.msra.mxu0 %v919
  %1071 = vmatmul.bf16.gmra.mxu0 %v1023
  %v1072 = vpop.f32.mrf.mxu0
  %v1073 = vadd.f32 %v1060, %v1072
  %v1074 = vpop.f32.mrf.mxu0
  %1075 = vdwg.mxu0
  %v1076 = vrsqrt.pop %v1047
  %v1077 = vmul.f32 %v1076, %v1047
  %v1078 = vmul.f32 %v1077, %v1076
  %v1079 = vmul.f32 0.5, %v1078
  %v1080 = vsub.f32 1.5, %v1079
  %v1081 = vmul.f32 %v1076, %v1080
  %vm1082 = vweird.f32 %v1047
  %vm1083 = vweird.f32 %v1076
  %vm1084 = vmor %vm1082, %vm1083
  %v1085 = vsel %vm1084, %v1076, %v1081
  %v1086 = vrsqrt.pop %v1073
  %v1087 = vmul.f32 %v1086, %v1073
  %v1088 = vmul.f32 %v1087, %v1086
  %v1089 = vmul.f32 0.5, %v1088
  %v1090 = vsub.f32 1.5, %v1089
  %v1091 = vmul.f32 %v1086, %v1090
  %vm1092 = vweird.f32 %v1073
  %vm1093 = vweird.f32 %v1086
  %vm1094 = vmor %vm1092, %vm1093
  %v1095 = vsel %vm1094, %v1086, %v1091
  %v1096 = vmul.f32 %v1018, %v1085
  %v1097 = vmul.f32 %v1019, %v1095
  %v1098 = vld [vmem:[%s37] sm:$0x3]
  %v1100 = vperm.slane %v1098, 0
  %v1101 = vperm.slane %v1098, 1
  %v1104 = vmul.f32 %v1096, %v1100
  %v1105 = vmul.f32 %v1097, %v1101
  %v1106 = vld [vmem:[%s39] sm:$0x3]
  %v1108 = vperm.slane %v1106, 0
  %v1109 = vperm.slane %v1106, 1
  %v1112 = vadd.f32 %v1104, %v1108
  %v1113 = vadd.f32 %v1105, %v1109
  %v1114 = vmin.f32 %v1112, 25.0
  %v1115 = vmin.f32 %v1113, 25.0
  %v1116 = vmul.f32 %v1114, 1.442695
  %v1117 = vpow.pop %v1116
  %v1118 = vmul.f32 %v1115, 1.442695
  %v1119 = vpow.pop %v1118
  %v1120 = vadd.f32 %v1117, 1.0
  %v1121 = vadd.f32 %v1119, 1.0
  %v1122 = vmul.f32 %v1120, %v1120
  %v1123 = vmul.f32 %v1121, %v1121
  %v1124 = vadd.f32 %v1122, 1.0
  %v1125 = vadd.f32 %v1123, 1.0
  %v1126 = vrcp.pop %v1124
  %v1127 = vrcp.pop %v1125
  %v1128 = vmul.f32 %v1126, 2.0
  %v1129 = vmul.f32 %v1127, 2.0
  %v1130 = vsub.f32 1.0, %v1128
  %v1131 = vsub.f32 1.0, %v1129
  %v1132 = vmul.f32 %v1112, %v1130
  %v1133 = vmul.f32 %v1113, %v1131
  %v1134 = vld [vmem:[%s41] sm:$0x7]
  %v1135 = vpack.c.bf16 %v1132, %v1132
  %v1136 = vpack.c.bf16 %v1133, %v1133
  %v1137 = vld [vmem:[%s43] sm:$0x3f]
  %1139 = vset.pattern.permute.xlu0 0
  %1140 = vperm.xlu0 %1139, %v1137
  %v1141 = vpop.permute.xlu0 %1140
  %vm1143 = vcmask 48128
  %v1145 = vsel %vm1143, %v1134, 0
  %vm1147 = vcmask 1042432
  %v1149 = vsel %vm1147, %v1135, 0
  %v1152 = vsel %vm1147, %v1136, 0
  %1154 = vmatpush.bf16.msra.mxu0 0
  %1155 = vmatpush.bf16.msra.mxu0 0
  %1156 = vmatpush.bf16.msra.mxu0 0
  %1157 = vmatpush.bf16.msra.mxu0 0
  %1158 = vmatpush.bf16.msra.mxu0 0
  %1159 = vmatpush.bf16.msra.mxu0 0
  %1160 = vmatpush.bf16.msra.mxu0 0
  %1161 = vmatpush.bf16.msra.mxu0 %v1149
  %1162 = vmatmul.bf16.gmra.mxu0 %v1145
  %v1163 = vpop.f32.mrf.mxu0
  %v1164 = vadd.f32 %v1141, %v1163
  %v1165 = vpop.f32.mrf.mxu0
  %1166 = vdwg.mxu0
  %1167 = vmatpush.bf16.msra.mxu0 0
  %1168 = vmatpush.bf16.msra.mxu0 0
  %1169 = vmatpush.bf16.msra.mxu0 0
  %1170 = vmatpush.bf16.msra.mxu0 0
  %1171 = vmatpush.bf16.msra.mxu0 0
  %1172 = vmatpush.bf16.msra.mxu0 0
  %1173 = vmatpush.bf16.msra.mxu0 0
  %1174 = vmatpush.bf16.msra.mxu0 %v1152
  %1175 = vmatmul.bf16.gmra.mxu0 %v1145
  %v1176 = vpop.f32.mrf.mxu0
  %v1177 = vadd.f32 %v1141, %v1176
  %v1178 = vpop.f32.mrf.mxu0
  %1179 = vdwg.mxu0
  %v1180 = vpack.c.bf16 %v1164, %v1164
  %v1181 = vpack.c.bf16 %v1177, %v1177
  %1182 = vmatpush.bf16.msra.mxu0 %v916
  %1183 = vmatpush.bf16.msra.mxu0 %v914
  %1184 = vmatpush.bf16.msra.mxu0 %v912
  %1185 = vmatpush.bf16.msra.mxu0 %v910
  %1186 = vmatpush.bf16.msra.mxu0 %v908
  %1187 = vmatpush.bf16.msra.mxu0 %v906
  %1188 = vmatpush.bf16.msra.mxu0 %v904
  %1189 = vmatpush.bf16.msra.mxu0 %v902
  %1190 = vmatmul.bf16.gmra.mxu0 %v1180
  %v1191 = vpop.f32.mrf.mxu0
  %v1192 = vadd.f32 0.0, %v1191
  %v1193 = vpop.f32.mrf.mxu0
  %1194 = vdwg.mxu0
  %1195 = vmatpush.bf16.msra.mxu0 %v932
  %1196 = vmatpush.bf16.msra.mxu0 %v930
  %1197 = vmatpush.bf16.msra.mxu0 %v928
  %1198 = vmatpush.bf16.msra.mxu0 %v926
  %1199 = vmatpush.bf16.msra.mxu0 %v924
  %1200 = vmatpush.bf16.msra.mxu0 %v922
  %1201 = vmatpush.bf16.msra.mxu0 %v920
  %1202 = vmatpush.bf16.msra.mxu0 %v918
  %1203 = vmatmul.bf16.gmra.mxu0 %v1181
  %v1204 = vpop.f32.mrf.mxu0
  %v1205 = vadd.f32 %v1192, %v1204
  %v1206 = vpop.f32.mrf.mxu0
  %1207 = vdwg.mxu0
  %1208 = vmatpush.bf16.msra.mxu0 %v917
  %1209 = vmatpush.bf16.msra.mxu0 %v915
  %1210 = vmatpush.bf16.msra.mxu0 %v913
  %1211 = vmatpush.bf16.msra.mxu0 %v911
  %1212 = vmatpush.bf16.msra.mxu0 %v909
  %1213 = vmatpush.bf16.msra.mxu0 %v907
  %1214 = vmatpush.bf16.msra.mxu0 %v905
  %1215 = vmatpush.bf16.msra.mxu0 %v903
  %1216 = vmatmul.bf16.gmra.mxu0 %v1180
  %v1217 = vpop.f32.mrf.mxu0
  %v1218 = vadd.f32 0.0, %v1217
  %v1219 = vpop.f32.mrf.mxu0
  %1220 = vdwg.mxu0
  %1221 = vmatpush.bf16.msra.mxu0 %v933
  %1222 = vmatpush.bf16.msra.mxu0 %v931
  %1223 = vmatpush.bf16.msra.mxu0 %v929
  %1224 = vmatpush.bf16.msra.mxu0 %v927
  %1225 = vmatpush.bf16.msra.mxu0 %v925
  %1226 = vmatpush.bf16.msra.mxu0 %v923
  %1227 = vmatpush.bf16.msra.mxu0 %v921
  %1228 = vmatpush.bf16.msra.mxu0 %v919
  %1229 = vmatmul.bf16.gmra.mxu0 %v1181
  %v1230 = vpop.f32.mrf.mxu0
  %v1231 = vadd.f32 %v1218, %v1230
  %v1232 = vpop.f32.mrf.mxu0
  %1233 = vdwg.mxu0
  %v1234 = vsub.f32 %v1164, %v1205
  %v1235 = vsub.f32 %v1177, %v1231
  %v1236 = vmul.f32 %v1234, %v1234
  %v1237 = vmul.f32 %v1235, %v1235
  %v1238 = vpack.c.bf16 %v1236, %v1236
  %v1239 = vpack.c.bf16 %v1237, %v1237
  %1240 = vmatpush.bf16.msra.mxu0 %v916
  %1241 = vmatpush.bf16.msra.mxu0 %v914
  %1242 = vmatpush.bf16.msra.mxu0 %v912
  %1243 = vmatpush.bf16.msra.mxu0 %v910
  %1244 = vmatpush.bf16.msra.mxu0 %v908
  %1245 = vmatpush.bf16.msra.mxu0 %v906
  %1246 = vmatpush.bf16.msra.mxu0 %v904
  %1247 = vmatpush.bf16.msra.mxu0 %v902
  %1248 = vmatmul.bf16.gmra.mxu0 %v1238
  %v1249 = vpop.f32.mrf.mxu0
  %v1250 = vadd.f32 1e-05, %v1249
  %v1251 = vpop.f32.mrf.mxu0
  %1252 = vdwg.mxu0
  %1253 = vmatpush.bf16.msra.mxu0 %v932
  %1254 = vmatpush.bf16.msra.mxu0 %v930
  %1255 = vmatpush.bf16.msra.mxu0 %v928
  %1256 = vmatpush.bf16.msra.mxu0 %v926
  %1257 = vmatpush.bf16.msra.mxu0 %v924
  %1258 = vmatpush.bf16.msra.mxu0 %v922
  %1259 = vmatpush.bf16.msra.mxu0 %v920
  %1260 = vmatpush.bf16.msra.mxu0 %v918
  %1261 = vmatmul.bf16.gmra.mxu0 %v1239
  %v1262 = vpop.f32.mrf.mxu0
  %v1263 = vadd.f32 %v1250, %v1262
  %v1264 = vpop.f32.mrf.mxu0
  %1265 = vdwg.mxu0
  %1266 = vmatpush.bf16.msra.mxu0 %v917
  %1267 = vmatpush.bf16.msra.mxu0 %v915
  %1268 = vmatpush.bf16.msra.mxu0 %v913
  %1269 = vmatpush.bf16.msra.mxu0 %v911
  %1270 = vmatpush.bf16.msra.mxu0 %v909
  %1271 = vmatpush.bf16.msra.mxu0 %v907
  %1272 = vmatpush.bf16.msra.mxu0 %v905
  %1273 = vmatpush.bf16.msra.mxu0 %v903
  %1274 = vmatmul.bf16.gmra.mxu0 %v1238
  %v1275 = vpop.f32.mrf.mxu0
  %v1276 = vadd.f32 1e-05, %v1275
  %v1277 = vpop.f32.mrf.mxu0
  %1278 = vdwg.mxu0
  %1279 = vmatpush.bf16.msra.mxu0 %v933
  %1280 = vmatpush.bf16.msra.mxu0 %v931
  %1281 = vmatpush.bf16.msra.mxu0 %v929
  %1282 = vmatpush.bf16.msra.mxu0 %v927
  %1283 = vmatpush.bf16.msra.mxu0 %v925
  %1284 = vmatpush.bf16.msra.mxu0 %v923
  %1285 = vmatpush.bf16.msra.mxu0 %v921
  %1286 = vmatpush.bf16.msra.mxu0 %v919
  %1287 = vmatmul.bf16.gmra.mxu0 %v1239
  %v1288 = vpop.f32.mrf.mxu0
  %v1289 = vadd.f32 %v1276, %v1288
  %v1290 = vpop.f32.mrf.mxu0
  %1291 = vdwg.mxu0
  %v1292 = vrsqrt.pop %v1263
  %v1293 = vmul.f32 %v1292, %v1263
  %v1294 = vmul.f32 %v1293, %v1292
  %v1295 = vmul.f32 0.5, %v1294
  %v1296 = vsub.f32 1.5, %v1295
  %v1297 = vmul.f32 %v1292, %v1296
  %vm1298 = vweird.f32 %v1263
  %vm1299 = vweird.f32 %v1292
  %vm1300 = vmor %vm1298, %vm1299
  %v1301 = vsel %vm1300, %v1292, %v1297
  %v1302 = vrsqrt.pop %v1289
  %v1303 = vmul.f32 %v1302, %v1289
  %v1304 = vmul.f32 %v1303, %v1302
  %v1305 = vmul.f32 0.5, %v1304
  %v1306 = vsub.f32 1.5, %v1305
  %v1307 = vmul.f32 %v1302, %v1306
  %vm1308 = vweird.f32 %v1289
  %vm1309 = vweird.f32 %v1302
  %vm1310 = vmor %vm1308, %vm1309
  %v1311 = vsel %vm1310, %v1302, %v1307
  %v1312 = vmul.f32 %v1234, %v1301
  %v1313 = vmul.f32 %v1235, %v1311
  %v1314 = vld [vmem:[%s45] sm:$0x3]
  %v1316 = vperm.slane %v1314, 0
  %v1317 = vperm.slane %v1314, 1
  %v1320 = vmul.f32 %v1312, %v1316
  %v1321 = vmul.f32 %v1313, %v1317
  %v1322 = vld [vmem:[%s47] sm:$0x3]
  %v1324 = vperm.slane %v1322, 0
  %v1325 = vperm.slane %v1322, 1
  %v1328 = vadd.f32 %v1320, %v1324
  %v1329 = vadd.f32 %v1321, %v1325
  %v1330 = vld [vmem:[%s49] sm:$0xf]
  %v1331 = vld [vmem:[%s49 + $0x4] sm:$0xf]
  %v1332 = vld [vmem:[%s49 + $0x8] sm:$0xf]
  %v1333 = vld [vmem:[%s49 + $0xc] sm:$0xf]
  %v1334 = vld [vmem:[%s49 + $0x10] sm:$0xf]
  %v1335 = vld [vmem:[%s49 + $0x14] sm:$0xf]
  %v1336 = vpack.c.bf16 %v1328, %v1328
  %v1337 = vpack.c.bf16 %v1329, %v1329
  %v1344 = vunpack.c.l.b16 %v1330
  %v1345 = vunpack.c.l.b16 %v1331
  %v1346 = vunpack.c.l.b16 %v1332
  %v1347 = vunpack.c.l.b16 %v1333
  %v1348 = vunpack.c.l.b16 %v1334
  %v1349 = vunpack.c.l.b16 %v1335
  %v1350 = vpack.c.b16 %v1345, %v1344
  %v1351 = vpack.c.b16 %v1347, %v1346
  %v1352 = vpack.c.b16 %v1349, %v1348
  %v1354 = vsel %vm1143, %v1350, 0
  %v1357 = vsel %vm1143, %v1351, 0
  %v1360 = vsel %vm1143, %v1352, 0
  %v1363 = vsel %vm1147, %v1336, 0
  %v1366 = vsel %vm1147, %v1337, 0
  %1368 = vmatpush.bf16.msra.mxu0 0
  %1369 = vmatpush.bf16.msra.mxu0 0
  %1370 = vmatpush.bf16.msra.mxu0 0
  %1371 = vmatpush.bf16.msra.mxu0 0
  %1372 = vmatpush.bf16.msra.mxu0 0
  %1373 = vmatpush.bf16.msra.mxu0 0
  %1374 = vmatpush.bf16.msra.mxu0 0
  %1375 = vmatpush.bf16.msra.mxu0 %v1363
  %1376 = vmatmul.bf16.gmra.mxu0 %v1354
  %v1377 = vpop.f32.mrf.mxu0
  %v1378 = vadd.f32 0.0, %v1377
  %v1379 = vpop.f32.mrf.mxu0
  %v1380 = vadd.f32 0.0, %v1379
  %1381 = vmatmul.bf16.gmra.mxu0 %v1357
  %v1382 = vpop.f32.mrf.mxu0
  %v1383 = vadd.f32 0.0, %v1382
  %v1384 = vpop.f32.mrf.mxu0
  %v1385 = vadd.f32 0.0, %v1384
  %1386 = vmatmul.bf16.gmra.mxu0 %v1360
  %v1387 = vpop.f32.mrf.mxu0
  %v1388 = vadd.f32 0.0, %v1387
  %v1389 = vpop.f32.mrf.mxu0
  %v1390 = vadd.f32 0.0, %v1389
  %1391 = vdwg.mxu0
  %1392 = vmatpush.bf16.msra.mxu0 0
  %1393 = vmatpush.bf16.msra.mxu0 0
  %1394 = vmatpush.bf16.msra.mxu0 0
  %1395 = vmatpush.bf16.msra.mxu0 0
  %1396 = vmatpush.bf16.msra.mxu0 0
  %1397 = vmatpush.bf16.msra.mxu0 0
  %1398 = vmatpush.bf16.msra.mxu0 0
  %1399 = vmatpush.bf16.msra.mxu0 %v1366
  %1400 = vmatmul.bf16.gmra.mxu0 %v1354
  %v1401 = vpop.f32.mrf.mxu0
  %v1402 = vadd.f32 0.0, %v1401
  %v1403 = vpop.f32.mrf.mxu0
  %v1404 = vadd.f32 0.0, %v1403
  %1405 = vmatmul.bf16.gmra.mxu0 %v1357
  %v1406 = vpop.f32.mrf.mxu0
  %v1407 = vadd.f32 0.0, %v1406
  %v1408 = vpop.f32.mrf.mxu0
  %v1409 = vadd.f32 0.0, %v1408
  %1410 = vmatmul.bf16.gmra.mxu0 %v1360
  %v1411 = vpop.f32.mrf.mxu0
  %v1412 = vadd.f32 0.0, %v1411
  %v1413 = vpop.f32.mrf.mxu0
  %v1414 = vadd.f32 0.0, %v1413
  %1415 = vdwg.mxu0
  %v1416 = vld [vmem:[%s53] sm:$0x77]
  %v1417 = vld [vmem:[%s51] sm:$0xff]
  %v1418 = vld [vmem:[%s51 + $0x8] sm:$0xff]
  %v1419 = vld [vmem:[%s51 + $0x10] sm:$0xff]
  %v1420 = vld [vmem:[%s51 + $0x18] sm:$0xff]
  %v1421 = vld [vmem:[%s51 + $0x20] sm:$0xff]
  %v1422 = vld [vmem:[%s51 + $0x28] sm:$0xff]
  %v1423 = vld [vmem:[%s51 + $0x30] sm:$0xff]
  %v1424 = vld [vmem:[%s51 + $0x38] sm:$0xff]
  %v1425 = vld [vmem:[%s51 + $0x40] sm:$0xff]
  %v1426 = vld [vmem:[%s51 + $0x48] sm:$0xff]
  %v1427 = vld [vmem:[%s51 + $0x50] sm:$0xff]
  %v1428 = vld [vmem:[%s51 + $0x58] sm:$0xff]
  %v1429 = vld [vmem:[%s51 + $0x60] sm:$0xff]
  %v1430 = vld [vmem:[%s51 + $0x68] sm:$0xff]
  %v1431 = vld [vmem:[%s51 + $0x70] sm:$0xff]
  %v1432 = vld [vmem:[%s51 + $0x78] sm:$0xff]
  %v1433 = vld [vmem:[%s51 + $0x80] sm:$0xff]
  %v1434 = vld [vmem:[%s51 + $0x88] sm:$0xff]
  %v1435 = vld [vmem:[%s51 + $0x90] sm:$0xff]
  %v1436 = vld [vmem:[%s51 + $0x98] sm:$0xff]
  %v1437 = vld [vmem:[%s51 + $0xa0] sm:$0xff]
  %v1438 = vld [vmem:[%s51 + $0xa8] sm:$0xff]
  %v1439 = vld [vmem:[%s51 + $0xb0] sm:$0xff]
  %v1440 = vld [vmem:[%s51 + $0xb8] sm:$0xff]
  %v1441 = vld [vmem:[%s51 + $0xc0] sm:$0xff]
  %v1442 = vld [vmem:[%s51 + $0xc8] sm:$0xff]
  %v1443 = vld [vmem:[%s51 + $0xd0] sm:$0xff]
  %v1444 = vld [vmem:[%s51 + $0xd8] sm:$0xff]
  %v1445 = vld [vmem:[%s51 + $0xe0] sm:$0xff]
  %v1446 = vld [vmem:[%s51 + $0xe8] sm:$0xff]
  %v1447 = vld [vmem:[%s51 + $0xf0] sm:$0xff]
  %v1448 = vld [vmem:[%s51 + $0xf8] sm:$0xff]
  %v1449 = vpack.c.bf16 %v1380, %v1378
  %v1450 = vpack.c.bf16 %v1404, %v1402
  %v1452 = vperm.slane %v1416, 0
  %v1453 = vperm.slane %v1416, 4
  %v1456 = vperm.slane %v1452, 0
  %v1457 = vperm.slane %v1453, 0
  %v1490 = vunpack.c.l.b16 %v1417
  %v1491 = vunpack.c.h.b16 %v1417
  %v1492 = vunpack.c.l.b16 %v1418
  %v1493 = vunpack.c.h.b16 %v1418
  %v1494 = vunpack.c.l.b16 %v1419
  %v1495 = vunpack.c.h.b16 %v1419
  %v1496 = vunpack.c.l.b16 %v1420
  %v1497 = vunpack.c.h.b16 %v1420
  %v1498 = vunpack.c.l.b16 %v1421
  %v1499 = vunpack.c.h.b16 %v1421
  %v1500 = vunpack.c.l.b16 %v1422
  %v1501 = vunpack.c.h.b16 %v1422
  %v1502 = vunpack.c.l.b16 %v1423
  %v1503 = vunpack.c.h.b16 %v1423
  %v1504 = vunpack.c.l.b16 %v1424
  %v1505 = vunpack.c.h.b16 %v1424
  %v1506 = vunpack.c.l.b16 %v1425
  %v1507 = vunpack.c.h.b16 %v1425
  %v1508 = vunpack.c.l.b16 %v1426
  %v1509 = vunpack.c.h.b16 %v1426
  %v1510 = vunpack.c.l.b16 %v1427
  %v1511 = vunpack.c.h.b16 %v1427
  %v1512 = vunpack.c.l.b16 %v1428
  %v1513 = vunpack.c.h.b16 %v1428
  %v1514 = vunpack.c.l.b16 %v1429
  %v1515 = vunpack.c.h.b16 %v1429
  %v1516 = vunpack.c.l.b16 %v1430
  %v1517 = vunpack.c.h.b16 %v1430
  %v1518 = vunpack.c.l.b16 %v1431
  %v1519 = vunpack.c.h.b16 %v1431
  %v1520 = vunpack.c.l.b16 %v1432
  %v1521 = vunpack.c.h.b16 %v1432
  %v1522 = vunpack.c.l.b16 %v1433
  %v1523 = vunpack.c.h.b16 %v1433
  %v1524 = vunpack.c.l.b16 %v1434
  %v1525 = vunpack.c.h.b16 %v1434
  %v1526 = vunpack.c.l.b16 %v1435
  %v1527 = vunpack.c.h.b16 %v1435
  %v1528 = vunpack.c.l.b16 %v1436
  %v1529 = vunpack.c.h.b16 %v1436
  %v1530 = vunpack.c.l.b16 %v1437
  %v1531 = vunpack.c.h.b16 %v1437
  %v1532 = vunpack.c.l.b16 %v1438
  %v1533 = vunpack.c.h.b16 %v1438
  %v1534 = vunpack.c.l.b16 %v1439
  %v1535 = vunpack.c.h.b16 %v1439
  %v1536 = vunpack.c.l.b16 %v1440
  %v1537 = vunpack.c.h.b16 %v1440
  %v1538 = vunpack.c.l.b16 %v1441
  %v1539 = vunpack.c.h.b16 %v1441
  %v1540 = vunpack.c.l.b16 %v1442
  %v1541 = vunpack.c.h.b16 %v1442
  %v1542 = vunpack.c.l.b16 %v1443
  %v1543 = vunpack.c.h.b16 %v1443
  %v1544 = vunpack.c.l.b16 %v1444
  %v1545 = vunpack.c.h.b16 %v1444
  %v1546 = vunpack.c.l.b16 %v1445
  %v1547 = vunpack.c.h.b16 %v1445
  %v1548 = vunpack.c.l.b16 %v1446
  %v1549 = vunpack.c.h.b16 %v1446
  %v1550 = vunpack.c.l.b16 %v1447
  %v1551 = vunpack.c.h.b16 %v1447
  %v1552 = vunpack.c.l.b16 %v1448
  %v1553 = vunpack.c.h.b16 %v1448
  %v1554 = vpack.c.b16 %v1492, %v1490
  %v1555 = vpack.c.b16 %v1493, %v1491
  %v1556 = vpack.c.b16 %v1496, %v1494
  %v1557 = vpack.c.b16 %v1497, %v1495
  %v1558 = vpack.c.b16 %v1500, %v1498
  %v1559 = vpack.c.b16 %v1501, %v1499
  %v1560 = vpack.c.b16 %v1504, %v1502
  %v1561 = vpack.c.b16 %v1505, %v1503
  %v1562 = vpack.c.b16 %v1508, %v1506
  %v1563 = vpack.c.b16 %v1509, %v1507
  %v1564 = vpack.c.b16 %v1512, %v1510
  %v1565 = vpack.c.b16 %v1513, %v1511
  %v1566 = vpack.c.b16 %v1516, %v1514
  %v1567 = vpack.c.b16 %v1517, %v1515
  %v1568 = vpack.c.b16 %v1520, %v1518
  %v1569 = vpack.c.b16 %v1521, %v1519
  %v1570 = vpack.c.b16 %v1524, %v1522
  %v1571 = vpack.c.b16 %v1525, %v1523
  %v1572 = vpack.c.b16 %v1528, %v1526
  %v1573 = vpack.c.b16 %v1529, %v1527
  %v1574 = vpack.c.b16 %v1532, %v1530
  %v1575 = vpack.c.b16 %v1533, %v1531
  %v1576 = vpack.c.b16 %v1536, %v1534
  %v1577 = vpack.c.b16 %v1537, %v1535
  %v1578 = vpack.c.b16 %v1540, %v1538
  %v1579 = vpack.c.b16 %v1541, %v1539
  %v1580 = vpack.c.b16 %v1544, %v1542
  %v1581 = vpack.c.b16 %v1545, %v1543
  %v1582 = vpack.c.b16 %v1548, %v1546
  %v1583 = vpack.c.b16 %v1549, %v1547
  %v1584 = vpack.c.b16 %v1552, %v1550
  %v1585 = vpack.c.b16 %v1553, %v1551
  %1618 = vmatpush.bf16.msra.mxu0 %v1568
  %1619 = vmatpush.bf16.msra.mxu0 %v1566
  %1620 = vmatpush.bf16.msra.mxu0 %v1564
  %1621 = vmatpush.bf16.msra.mxu0 %v1562
  %1622 = vmatpush.bf16.msra.mxu0 %v1560
  %1623 = vmatpush.bf16.msra.mxu0 %v1558
  %1624 = vmatpush.bf16.msra.mxu0 %v1556
  %1625 = vmatpush.bf16.msra.mxu0 %v1554
  %1626 = vmatmul.bf16.gmra.mxu0 %v1449
  %v1627 = vpop.f32.mrf.mxu0
  %v1628 = vadd.f32 %v1456, %v1627
  %v1629 = vpop.f32.mrf.mxu0
  %v1630 = vadd.f32 %v1456, %v1629
  %1631 = vdwg.mxu0
  %1632 = vmatpush.bf16.msra.mxu0 %v1584
  %1633 = vmatpush.bf16.msra.mxu0 %v1582
  %1634 = vmatpush.bf16.msra.mxu0 %v1580
  %1635 = vmatpush.bf16.msra.mxu0 %v1578
  %1636 = vmatpush.bf16.msra.mxu0 %v1576
  %1637 = vmatpush.bf16.msra.mxu0 %v1574
  %1638 = vmatpush.bf16.msra.mxu0 %v1572
  %1639 = vmatpush.bf16.msra.mxu0 %v1570
  %1640 = vmatmul.bf16.gmra.mxu0 %v1450
  %v1641 = vpop.f32.mrf.mxu0
  %v1642 = vadd.f32 %v1628, %v1641
  %v1643 = vpop.f32.mrf.mxu0
  %v1644 = vadd.f32 %v1630, %v1643
  %1645 = vdwg.mxu0
  %1646 = vmatpush.bf16.msra.mxu0 %v1569
  %1647 = vmatpush.bf16.msra.mxu0 %v1567
  %1648 = vmatpush.bf16.msra.mxu0 %v1565
  %1649 = vmatpush.bf16.msra.mxu0 %v1563
  %1650 = vmatpush.bf16.msra.mxu0 %v1561
  %1651 = vmatpush.bf16.msra.mxu0 %v1559
  %1652 = vmatpush.bf16.msra.mxu0 %v1557
  %1653 = vmatpush.bf16.msra.mxu0 %v1555
  %1654 = vmatmul.bf16.gmra.mxu0 %v1449
  %v1655 = vpop.f32.mrf.mxu0
  %v1656 = vadd.f32 %v1457, %v1655
  %v1657 = vpop.f32.mrf.mxu0
  %v1658 = vadd.f32 %v1457, %v1657
  %1659 = vdwg.mxu0
  %1660 = vmatpush.bf16.msra.mxu0 %v1585
  %1661 = vmatpush.bf16.msra.mxu0 %v1583
  %1662 = vmatpush.bf16.msra.mxu0 %v1581
  %1663 = vmatpush.bf16.msra.mxu0 %v1579
  %1664 = vmatpush.bf16.msra.mxu0 %v1577
  %1665 = vmatpush.bf16.msra.mxu0 %v1575
  %1666 = vmatpush.bf16.msra.mxu0 %v1573
  %1667 = vmatpush.bf16.msra.mxu0 %v1571
  %1668 = vmatmul.bf16.gmra.mxu0 %v1450
  %v1669 = vpop.f32.mrf.mxu0
  %v1670 = vadd.f32 %v1656, %v1669
  %v1671 = vpop.f32.mrf.mxu0
  %v1672 = vadd.f32 %v1658, %v1671
  %1673 = vdwg.mxu0
  %v1674 = vmul.f32 %v1642, 0.5
  %v1675 = vmul.f32 %v1670, 0.5
  %v1676 = vmul.f32 %v1644, 0.5
  %v1677 = vmul.f32 %v1672, 0.5
  %s1678 = scalar_lea.vmem %s51, 256
  %v1679 = vld [vmem:[%s1678] sm:$0xff]
  %v1680 = vld [vmem:[%s1678 + $0x8] sm:$0xff]
  %v1681 = vld [vmem:[%s1678 + $0x10] sm:$0xff]
  %v1682 = vld [vmem:[%s1678 + $0x18] sm:$0xff]
  %v1683 = vld [vmem:[%s1678 + $0x20] sm:$0xff]
  %v1684 = vld [vmem:[%s1678 + $0x28] sm:$0xff]
  %v1685 = vld [vmem:[%s1678 + $0x30] sm:$0xff]
  %v1686 = vld [vmem:[%s1678 + $0x38] sm:$0xff]
  %v1687 = vld [vmem:[%s1678 + $0x40] sm:$0xff]
  %v1688 = vld [vmem:[%s1678 + $0x48] sm:$0xff]
  %v1689 = vld [vmem:[%s1678 + $0x50] sm:$0xff]
  %v1690 = vld [vmem:[%s1678 + $0x58] sm:$0xff]
  %v1691 = vld [vmem:[%s1678 + $0x60] sm:$0xff]
  %v1692 = vld [vmem:[%s1678 + $0x68] sm:$0xff]
  %v1693 = vld [vmem:[%s1678 + $0x70] sm:$0xff]
  %v1694 = vld [vmem:[%s1678 + $0x78] sm:$0xff]
  %v1695 = vld [vmem:[%s1678 + $0x80] sm:$0xff]
  %v1696 = vld [vmem:[%s1678 + $0x88] sm:$0xff]
  %v1697 = vld [vmem:[%s1678 + $0x90] sm:$0xff]
  %v1698 = vld [vmem:[%s1678 + $0x98] sm:$0xff]
  %v1699 = vld [vmem:[%s1678 + $0xa0] sm:$0xff]
  %v1700 = vld [vmem:[%s1678 + $0xa8] sm:$0xff]
  %v1701 = vld [vmem:[%s1678 + $0xb0] sm:$0xff]
  %v1702 = vld [vmem:[%s1678 + $0xb8] sm:$0xff]
  %v1703 = vld [vmem:[%s1678 + $0xc0] sm:$0xff]
  %v1704 = vld [vmem:[%s1678 + $0xc8] sm:$0xff]
  %v1705 = vld [vmem:[%s1678 + $0xd0] sm:$0xff]
  %v1706 = vld [vmem:[%s1678 + $0xd8] sm:$0xff]
  %v1707 = vld [vmem:[%s1678 + $0xe0] sm:$0xff]
  %v1708 = vld [vmem:[%s1678 + $0xe8] sm:$0xff]
  %v1709 = vld [vmem:[%s1678 + $0xf0] sm:$0xff]
  %v1710 = vld [vmem:[%s1678 + $0xf8] sm:$0xff]
  %v1711 = vpack.c.bf16 %v1385, %v1383
  %v1712 = vpack.c.bf16 %v1409, %v1407
  %v1713 = vperm.slane %v1416, 1
  %v1714 = vperm.slane %v1416, 5
  %v1717 = vperm.slane %v1713, 1
  %v1718 = vperm.slane %v1714, 1
  %v1751 = vunpack.c.l.b16 %v1679
  %v1752 = vunpack.c.h.b16 %v1679
  %v1753 = vunpack.c.l.b16 %v1680
  %v1754 = vunpack.c.h.b16 %v1680
  %v1755 = vunpack.c.l.b16 %v1681
  %v1756 = vunpack.c.h.b16 %v1681
  %v1757 = vunpack.c.l.b16 %v1682
  %v1758 = vunpack.c.h.b16 %v1682
  %v1759 = vunpack.c.l.b16 %v1683
  %v1760 = vunpack.c.h.b16 %v1683
  %v1761 = vunpack.c.l.b16 %v1684
  %v1762 = vunpack.c.h.b16 %v1684
  %v1763 = vunpack.c.l.b16 %v1685
  %v1764 = vunpack.c.h.b16 %v1685
  %v1765 = vunpack.c.l.b16 %v1686
  %v1766 = vunpack.c.h.b16 %v1686
  %v1767 = vunpack.c.l.b16 %v1687
  %v1768 = vunpack.c.h.b16 %v1687
  %v1769 = vunpack.c.l.b16 %v1688
  %v1770 = vunpack.c.h.b16 %v1688
  %v1771 = vunpack.c.l.b16 %v1689
  %v1772 = vunpack.c.h.b16 %v1689
  %v1773 = vunpack.c.l.b16 %v1690
  %v1774 = vunpack.c.h.b16 %v1690
  %v1775 = vunpack.c.l.b16 %v1691
  %v1776 = vunpack.c.h.b16 %v1691
  %v1777 = vunpack.c.l.b16 %v1692
  %v1778 = vunpack.c.h.b16 %v1692
  %v1779 = vunpack.c.l.b16 %v1693
  %v1780 = vunpack.c.h.b16 %v1693
  %v1781 = vunpack.c.l.b16 %v1694
  %v1782 = vunpack.c.h.b16 %v1694
  %v1783 = vunpack.c.l.b16 %v1695
  %v1784 = vunpack.c.h.b16 %v1695
  %v1785 = vunpack.c.l.b16 %v1696
  %v1786 = vunpack.c.h.b16 %v1696
  %v1787 = vunpack.c.l.b16 %v1697
  %v1788 = vunpack.c.h.b16 %v1697
  %v1789 = vunpack.c.l.b16 %v1698
  %v1790 = vunpack.c.h.b16 %v1698
  %v1791 = vunpack.c.l.b16 %v1699
  %v1792 = vunpack.c.h.b16 %v1699
  %v1793 = vunpack.c.l.b16 %v1700
  %v1794 = vunpack.c.h.b16 %v1700
  %v1795 = vunpack.c.l.b16 %v1701
  %v1796 = vunpack.c.h.b16 %v1701
  %v1797 = vunpack.c.l.b16 %v1702
  %v1798 = vunpack.c.h.b16 %v1702
  %v1799 = vunpack.c.l.b16 %v1703
  %v1800 = vunpack.c.h.b16 %v1703
  %v1801 = vunpack.c.l.b16 %v1704
  %v1802 = vunpack.c.h.b16 %v1704
  %v1803 = vunpack.c.l.b16 %v1705
  %v1804 = vunpack.c.h.b16 %v1705
  %v1805 = vunpack.c.l.b16 %v1706
  %v1806 = vunpack.c.h.b16 %v1706
  %v1807 = vunpack.c.l.b16 %v1707
  %v1808 = vunpack.c.h.b16 %v1707
  %v1809 = vunpack.c.l.b16 %v1708
  %v1810 = vunpack.c.h.b16 %v1708
  %v1811 = vunpack.c.l.b16 %v1709
  %v1812 = vunpack.c.h.b16 %v1709
  %v1813 = vunpack.c.l.b16 %v1710
  %v1814 = vunpack.c.h.b16 %v1710
  %v1815 = vpack.c.b16 %v1753, %v1751
  %v1816 = vpack.c.b16 %v1754, %v1752
  %v1817 = vpack.c.b16 %v1757, %v1755
  %v1818 = vpack.c.b16 %v1758, %v1756
  %v1819 = vpack.c.b16 %v1761, %v1759
  %v1820 = vpack.c.b16 %v1762, %v1760
  %v1821 = vpack.c.b16 %v1765, %v1763
  %v1822 = vpack.c.b16 %v1766, %v1764
  %v1823 = vpack.c.b16 %v1769, %v1767
  %v1824 = vpack.c.b16 %v1770, %v1768
  %v1825 = vpack.c.b16 %v1773, %v1771
  %v1826 = vpack.c.b16 %v1774, %v1772
  %v1827 = vpack.c.b16 %v1777, %v1775
  %v1828 = vpack.c.b16 %v1778, %v1776
  %v1829 = vpack.c.b16 %v1781, %v1779
  %v1830 = vpack.c.b16 %v1782, %v1780
  %v1831 = vpack.c.b16 %v1785, %v1783
  %v1832 = vpack.c.b16 %v1786, %v1784
  %v1833 = vpack.c.b16 %v1789, %v1787
  %v1834 = vpack.c.b16 %v1790, %v1788
  %v1835 = vpack.c.b16 %v1793, %v1791
  %v1836 = vpack.c.b16 %v1794, %v1792
  %v1837 = vpack.c.b16 %v1797, %v1795
  %v1838 = vpack.c.b16 %v1798, %v1796
  %v1839 = vpack.c.b16 %v1801, %v1799
  %v1840 = vpack.c.b16 %v1802, %v1800
  %v1841 = vpack.c.b16 %v1805, %v1803
  %v1842 = vpack.c.b16 %v1806, %v1804
  %v1843 = vpack.c.b16 %v1809, %v1807
  %v1844 = vpack.c.b16 %v1810, %v1808
  %v1845 = vpack.c.b16 %v1813, %v1811
  %v1846 = vpack.c.b16 %v1814, %v1812
  %1879 = vmatpush.bf16.msra.mxu0 %v1829
  %1880 = vmatpush.bf16.msra.mxu0 %v1827
  %1881 = vmatpush.bf16.msra.mxu0 %v1825
  %1882 = vmatpush.bf16.msra.mxu0 %v1823
  %1883 = vmatpush.bf16.msra.mxu0 %v1821
  %1884 = vmatpush.bf16.msra.mxu0 %v1819
  %1885 = vmatpush.bf16.msra.mxu0 %v1817
  %1886 = vmatpush.bf16.msra.mxu0 %v1815
  %1887 = vmatmul.bf16.gmra.mxu0 %v1711
  %v1888 = vpop.f32.mrf.mxu0
  %v1889 = vadd.f32 %v1717, %v1888
  %v1890 = vpop.f32.mrf.mxu0
  %v1891 = vadd.f32 %v1717, %v1890
  %1892 = vdwg.mxu0
  %1893 = vmatpush.bf16.msra.mxu0 %v1845
  %1894 = vmatpush.bf16.msra.mxu0 %v1843
  %1895 = vmatpush.bf16.msra.mxu0 %v1841
  %1896 = vmatpush.bf16.msra.mxu0 %v1839
  %1897 = vmatpush.bf16.msra.mxu0 %v1837
  %1898 = vmatpush.bf16.msra.mxu0 %v1835
  %1899 = vmatpush.bf16.msra.mxu0 %v1833
  %1900 = vmatpush.bf16.msra.mxu0 %v1831
  %1901 = vmatmul.bf16.gmra.mxu0 %v1712
  %v1902 = vpop.f32.mrf.mxu0
  %v1903 = vadd.f32 %v1889, %v1902
  %v1904 = vpop.f32.mrf.mxu0
  %v1905 = vadd.f32 %v1891, %v1904
  %1906 = vdwg.mxu0
  %1907 = vmatpush.bf16.msra.mxu0 %v1830
  %1908 = vmatpush.bf16.msra.mxu0 %v1828
  %1909 = vmatpush.bf16.msra.mxu0 %v1826
  %1910 = vmatpush.bf16.msra.mxu0 %v1824
  %1911 = vmatpush.bf16.msra.mxu0 %v1822
  %1912 = vmatpush.bf16.msra.mxu0 %v1820
  %1913 = vmatpush.bf16.msra.mxu0 %v1818
  %1914 = vmatpush.bf16.msra.mxu0 %v1816
  %1915 = vmatmul.bf16.gmra.mxu0 %v1711
  %v1916 = vpop.f32.mrf.mxu0
  %v1917 = vadd.f32 %v1718, %v1916
  %v1918 = vpop.f32.mrf.mxu0
  %v1919 = vadd.f32 %v1718, %v1918
  %1920 = vdwg.mxu0
  %1921 = vmatpush.bf16.msra.mxu0 %v1846
  %1922 = vmatpush.bf16.msra.mxu0 %v1844
  %1923 = vmatpush.bf16.msra.mxu0 %v1842
  %1924 = vmatpush.bf16.msra.mxu0 %v1840
  %1925 = vmatpush.bf16.msra.mxu0 %v1838
  %1926 = vmatpush.bf16.msra.mxu0 %v1836
  %1927 = vmatpush.bf16.msra.mxu0 %v1834
  %1928 = vmatpush.bf16.msra.mxu0 %v1832
  %1929 = vmatmul.bf16.gmra.mxu0 %v1712
  %v1930 = vpop.f32.mrf.mxu0
  %v1931 = vadd.f32 %v1917, %v1930
  %v1932 = vpop.f32.mrf.mxu0
  %v1933 = vadd.f32 %v1919, %v1932
  %1934 = vdwg.mxu0
  %s1935 = scalar_lea.vmem %s51, 512
  %v1936 = vld [vmem:[%s1935] sm:$0xff]
  %v1937 = vld [vmem:[%s1935 + $0x8] sm:$0xff]
  %v1938 = vld [vmem:[%s1935 + $0x10] sm:$0xff]
  %v1939 = vld [vmem:[%s1935 + $0x18] sm:$0xff]
  %v1940 = vld [vmem:[%s1935 + $0x20] sm:$0xff]
  %v1941 = vld [vmem:[%s1935 + $0x28] sm:$0xff]
  %v1942 = vld [vmem:[%s1935 + $0x30] sm:$0xff]
  %v1943 = vld [vmem:[%s1935 + $0x38] sm:$0xff]
  %v1944 = vld [vmem:[%s1935 + $0x40] sm:$0xff]
  %v1945 = vld [vmem:[%s1935 + $0x48] sm:$0xff]
  %v1946 = vld [vmem:[%s1935 + $0x50] sm:$0xff]
  %v1947 = vld [vmem:[%s1935 + $0x58] sm:$0xff]
  %v1948 = vld [vmem:[%s1935 + $0x60] sm:$0xff]
  %v1949 = vld [vmem:[%s1935 + $0x68] sm:$0xff]
  %v1950 = vld [vmem:[%s1935 + $0x70] sm:$0xff]
  %v1951 = vld [vmem:[%s1935 + $0x78] sm:$0xff]
  %v1952 = vld [vmem:[%s1935 + $0x80] sm:$0xff]
  %v1953 = vld [vmem:[%s1935 + $0x88] sm:$0xff]
  %v1954 = vld [vmem:[%s1935 + $0x90] sm:$0xff]
  %v1955 = vld [vmem:[%s1935 + $0x98] sm:$0xff]
  %v1956 = vld [vmem:[%s1935 + $0xa0] sm:$0xff]
  %v1957 = vld [vmem:[%s1935 + $0xa8] sm:$0xff]
  %v1958 = vld [vmem:[%s1935 + $0xb0] sm:$0xff]
  %v1959 = vld [vmem:[%s1935 + $0xb8] sm:$0xff]
  %v1960 = vld [vmem:[%s1935 + $0xc0] sm:$0xff]
  %v1961 = vld [vmem:[%s1935 + $0xc8] sm:$0xff]
  %v1962 = vld [vmem:[%s1935 + $0xd0] sm:$0xff]
  %v1963 = vld [vmem:[%s1935 + $0xd8] sm:$0xff]
  %v1964 = vld [vmem:[%s1935 + $0xe0] sm:$0xff]
  %v1965 = vld [vmem:[%s1935 + $0xe8] sm:$0xff]
  %v1966 = vld [vmem:[%s1935 + $0xf0] sm:$0xff]
  %v1967 = vld [vmem:[%s1935 + $0xf8] sm:$0xff]
  %v1968 = vpack.c.bf16 %v1390, %v1388
  %v1969 = vpack.c.bf16 %v1414, %v1412
  %v1970 = vperm.slane %v1416, 2
  %v1971 = vperm.slane %v1416, 6
  %v1974 = vperm.slane %v1970, 2
  %v1975 = vperm.slane %v1971, 2
  %v2008 = vunpack.c.l.b16 %v1936
  %v2009 = vunpack.c.h.b16 %v1936
  %v2010 = vunpack.c.l.b16 %v1937
  %v2011 = vunpack.c.h.b16 %v1937
  %v2012 = vunpack.c.l.b16 %v1938
  %v2013 = vunpack.c.h.b16 %v1938
  %v2014 = vunpack.c.l.b16 %v1939
  %v2015 = vunpack.c.h.b16 %v1939
  %v2016 = vunpack.c.l.b16 %v1940
  %v2017 = vunpack.c.h.b16 %v1940
  %v2018 = vunpack.c.l.b16 %v1941
  %v2019 = vunpack.c.h.b16 %v1941
  %v2020 = vunpack.c.l.b16 %v1942
  %v2021 = vunpack.c.h.b16 %v1942
  %v2022 = vunpack.c.l.b16 %v1943
  %v2023 = vunpack.c.h.b16 %v1943
  %v2024 = vunpack.c.l.b16 %v1944
  %v2025 = vunpack.c.h.b16 %v1944
  %v2026 = vunpack.c.l.b16 %v1945
  %v2027 = vunpack.c.h.b16 %v1945
  %v2028 = vunpack.c.l.b16 %v1946
  %v2029 = vunpack.c.h.b16 %v1946
  %v2030 = vunpack.c.l.b16 %v1947
  %v2031 = vunpack.c.h.b16 %v1947
  %v2032 = vunpack.c.l.b16 %v1948
  %v2033 = vunpack.c.h.b16 %v1948
  %v2034 = vunpack.c.l.b16 %v1949
  %v2035 = vunpack.c.h.b16 %v1949
  %v2036 = vunpack.c.l.b16 %v1950
  %v2037 = vunpack.c.h.b16 %v1950
  %v2038 = vunpack.c.l.b16 %v1951
  %v2039 = vunpack.c.h.b16 %v1951
  %v2040 = vunpack.c.l.b16 %v1952
  %v2041 = vunpack.c.h.b16 %v1952
  %v2042 = vunpack.c.l.b16 %v1953
  %v2043 = vunpack.c.h.b16 %v1953
  %v2044 = vunpack.c.l.b16 %v1954
  %v2045 = vunpack.c.h.b16 %v1954
  %v2046 = vunpack.c.l.b16 %v1955
  %v2047 = vunpack.c.h.b16 %v1955
  %v2048 = vunpack.c.l.b16 %v1956
  %v2049 = vunpack.c.h.b16 %v1956
  %v2050 = vunpack.c.l.b16 %v1957
  %v2051 = vunpack.c.h.b16 %v1957
  %v2052 = vunpack.c.l.b16 %v1958
  %v2053 = vunpack.c.h.b16 %v1958
  %v2054 = vunpack.c.l.b16 %v1959
  %v2055 = vunpack.c.h.b16 %v1959
  %v2056 = vunpack.c.l.b16 %v1960
  %v2057 = vunpack.c.h.b16 %v1960
  %v2058 = vunpack.c.l.b16 %v1961
  %v2059 = vunpack.c.h.b16 %v1961
  %v2060 = vunpack.c.l.b16 %v1962
  %v2061 = vunpack.c.h.b16 %v1962
  %v2062 = vunpack.c.l.b16 %v1963
  %v2063 = vunpack.c.h.b16 %v1963
  %v2064 = vunpack.c.l.b16 %v1964
  %v2065 = vunpack.c.h.b16 %v1964
  %v2066 = vunpack.c.l.b16 %v1965
  %v2067 = vunpack.c.h.b16 %v1965
  %v2068 = vunpack.c.l.b16 %v1966
  %v2069 = vunpack.c.h.b16 %v1966
  %v2070 = vunpack.c.l.b16 %v1967
  %v2071 = vunpack.c.h.b16 %v1967
  %v2072 = vpack.c.b16 %v2010, %v2008
  %v2073 = vpack.c.b16 %v2011, %v2009
  %v2074 = vpack.c.b16 %v2014, %v2012
  %v2075 = vpack.c.b16 %v2015, %v2013
  %v2076 = vpack.c.b16 %v2018, %v2016
  %v2077 = vpack.c.b16 %v2019, %v2017
  %v2078 = vpack.c.b16 %v2022, %v2020
  %v2079 = vpack.c.b16 %v2023, %v2021
  %v2080 = vpack.c.b16 %v2026, %v2024
  %v2081 = vpack.c.b16 %v2027, %v2025
  %v2082 = vpack.c.b16 %v2030, %v2028
  %v2083 = vpack.c.b16 %v2031, %v2029
  %v2084 = vpack.c.b16 %v2034, %v2032
  %v2085 = vpack.c.b16 %v2035, %v2033
  %v2086 = vpack.c.b16 %v2038, %v2036
  %v2087 = vpack.c.b16 %v2039, %v2037
  %v2088 = vpack.c.b16 %v2042, %v2040
  %v2089 = vpack.c.b16 %v2043, %v2041
  %v2090 = vpack.c.b16 %v2046, %v2044
  %v2091 = vpack.c.b16 %v2047, %v2045
  %v2092 = vpack.c.b16 %v2050, %v2048
  %v2093 = vpack.c.b16 %v2051, %v2049
  %v2094 = vpack.c.b16 %v2054, %v2052
  %v2095 = vpack.c.b16 %v2055, %v2053
  %v2096 = vpack.c.b16 %v2058, %v2056
  %v2097 = vpack.c.b16 %v2059, %v2057
  %v2098 = vpack.c.b16 %v2062, %v2060
  %v2099 = vpack.c.b16 %v2063, %v2061
  %v2100 = vpack.c.b16 %v2066, %v2064
  %v2101 = vpack.c.b16 %v2067, %v2065
  %v2102 = vpack.c.b16 %v2070, %v2068
  %v2103 = vpack.c.b16 %v2071, %v2069
  %2136 = vmatpush.bf16.msra.mxu0 %v2086
  %2137 = vmatpush.bf16.msra.mxu0 %v2084
  %2138 = vmatpush.bf16.msra.mxu0 %v2082
  %2139 = vmatpush.bf16.msra.mxu0 %v2080
  %2140 = vmatpush.bf16.msra.mxu0 %v2078
  %2141 = vmatpush.bf16.msra.mxu0 %v2076
  %2142 = vmatpush.bf16.msra.mxu0 %v2074
  %2143 = vmatpush.bf16.msra.mxu0 %v2072
  %2144 = vmatmul.bf16.gmra.mxu0 %v1968
  %v2145 = vpop.f32.mrf.mxu0
  %v2146 = vadd.f32 %v1974, %v2145
  %v2147 = vpop.f32.mrf.mxu0
  %v2148 = vadd.f32 %v1974, %v2147
  %2149 = vdwg.mxu0
  %2150 = vmatpush.bf16.msra.mxu0 %v2102
  %2151 = vmatpush.bf16.msra.mxu0 %v2100
  %2152 = vmatpush.bf16.msra.mxu0 %v2098
  %2153 = vmatpush.bf16.msra.mxu0 %v2096
  %2154 = vmatpush.bf16.msra.mxu0 %v2094
  %2155 = vmatpush.bf16.msra.mxu0 %v2092
  %2156 = vmatpush.bf16.msra.mxu0 %v2090
  %2157 = vmatpush.bf16.msra.mxu0 %v2088
  %2158 = vmatmul.bf16.gmra.mxu0 %v1969
  %v2159 = vpop.f32.mrf.mxu0
  %v2160 = vadd.f32 %v2146, %v2159
  %v2161 = vpop.f32.mrf.mxu0
  %v2162 = vadd.f32 %v2148, %v2161
  %2163 = vdwg.mxu0
  %2164 = vmatpush.bf16.msra.mxu0 %v2087
  %2165 = vmatpush.bf16.msra.mxu0 %v2085
  %2166 = vmatpush.bf16.msra.mxu0 %v2083
  %2167 = vmatpush.bf16.msra.mxu0 %v2081
  %2168 = vmatpush.bf16.msra.mxu0 %v2079
  %2169 = vmatpush.bf16.msra.mxu0 %v2077
  %2170 = vmatpush.bf16.msra.mxu0 %v2075
  %2171 = vmatpush.bf16.msra.mxu0 %v2073
  %2172 = vmatmul.bf16.gmra.mxu0 %v1968
  %v2173 = vpop.f32.mrf.mxu0
  %v2174 = vadd.f32 %v1975, %v2173
  %v2175 = vpop.f32.mrf.mxu0
  %v2176 = vadd.f32 %v1975, %v2175
  %2177 = vdwg.mxu0
  %2178 = vmatpush.bf16.msra.mxu0 %v2103
  %2179 = vmatpush.bf16.msra.mxu0 %v2101
  %2180 = vmatpush.bf16.msra.mxu0 %v2099
  %2181 = vmatpush.bf16.msra.mxu0 %v2097
  %2182 = vmatpush.bf16.msra.mxu0 %v2095
  %2183 = vmatpush.bf16.msra.mxu0 %v2093
  %2184 = vmatpush.bf16.msra.mxu0 %v2091
  %2185 = vmatpush.bf16.msra.mxu0 %v2089
  %2186 = vmatmul.bf16.gmra.mxu0 %v1969
  %v2187 = vpop.f32.mrf.mxu0
  %v2188 = vadd.f32 %v2174, %v2187
  %v2189 = vpop.f32.mrf.mxu0
  %v2190 = vadd.f32 %v2176, %v2189
  %2191 = vdwg.mxu0
  %v2192 = vpack.c.bf16 %v1675, %v1674
  %v2193 = vpack.c.bf16 %v1677, %v1676
  %v2194 = vpack.c.bf16 %v1931, %v1903
  %v2195 = vpack.c.bf16 %v1933, %v1905
  %v2198 = vrot.slane %v2192, 3
  %v2199 = vrot.slane %v2193, 3
  %vm2200 = vcmask 1040384
  %v2203 = vsel %vm2200, %v2192, %v2198
  %vm2205 = vcmask 1041409
  %v2206 = vsel %vm2205, %v2192, %v2198
  %v2208 = vrot.slane %v2206, 1
  %vm2209 = vcmask 1042434
  %v2210 = vsel %vm2209, %v2192, %v2198
  %v2212 = vrot.slane %v2210, 2
  %vm2213 = vcmask 1043459
  %v2214 = vsel %vm2213, %v2192, %v2198
  %v2216 = vrot.slane %v2214, 3
  %v2219 = vsel %vm2200, %v2193, %v2199
  %v2221 = vsel %vm2205, %v2193, %v2199
  %v2223 = vrot.slane %v2221, 1
  %v2224 = vsel %vm2209, %v2193, %v2199
  %v2226 = vrot.slane %v2224, 2
  %v2227 = vsel %vm2213, %v2193, %v2199
  %v2229 = vrot.slane %v2227, 3
  %v2230 = vunpack.i.l.s16 %v2203
  %v2231 = vunpack.i.h.s16 %v2203
  %v2232 = vunpack.i.l.s16 %v2208
  %v2233 = vunpack.i.h.s16 %v2208
  %v2234 = vunpack.i.l.s16 %v2212
  %v2235 = vunpack.i.h.s16 %v2212
  %v2236 = vunpack.i.l.s16 %v2216
  %v2237 = vunpack.i.h.s16 %v2216
  %v2238 = vunpack.i.l.s16 %v2219
  %v2239 = vunpack.i.h.s16 %v2219
  %v2240 = vunpack.i.l.s16 %v2223
  %v2241 = vunpack.i.h.s16 %v2223
  %v2242 = vunpack.i.l.s16 %v2226
  %v2243 = vunpack.i.h.s16 %v2226
  %v2244 = vunpack.i.l.s16 %v2229
  %v2245 = vunpack.i.h.s16 %v2229
  %v2246 = vpack.i.b16 %v2230, %v2230
  %v2247 = vpack.i.b16 %v2231, %v2231
  %v2248 = vpack.i.b16 %v2232, %v2232
  %v2249 = vpack.i.b16 %v2233, %v2233
  %v2250 = vpack.i.b16 %v2234, %v2234
  %v2251 = vpack.i.b16 %v2235, %v2235
  %v2252 = vpack.i.b16 %v2236, %v2236
  %v2253 = vpack.i.b16 %v2237, %v2237
  %v2254 = vpack.i.b16 %v2238, %v2238
  %v2255 = vpack.i.b16 %v2239, %v2239
  %v2256 = vpack.i.b16 %v2240, %v2240
  %v2257 = vpack.i.b16 %v2241, %v2241
  %v2258 = vpack.i.b16 %v2242, %v2242
  %v2259 = vpack.i.b16 %v2243, %v2243
  %v2260 = vpack.i.b16 %v2244, %v2244
  %v2261 = vpack.i.b16 %v2245, %v2245
  %v2262 = vperm.slane %v2246, 0
  %v2263 = vperm.slane %v2246, 1
  %v2264 = vperm.slane %v2247, 0
  %v2265 = vperm.slane %v2247, 1
  %v2266 = vperm.slane %v2248, 0
  %v2267 = vperm.slane %v2248, 1
  %v2268 = vperm.slane %v2249, 0
  %v2269 = vperm.slane %v2249, 1
  %v2270 = vperm.slane %v2250, 0
  %v2271 = vperm.slane %v2250, 1
  %v2272 = vperm.slane %v2251, 0
  %v2273 = vperm.slane %v2251, 1
  %v2274 = vperm.slane %v2252, 0
  %v2275 = vperm.slane %v2252, 1
  %v2276 = vperm.slane %v2253, 0
  %v2277 = vperm.slane %v2253, 1
  %v2278 = vperm.slane %v2254, 0
  %v2279 = vperm.slane %v2254, 1
  %v2280 = vperm.slane %v2255, 0
  %v2281 = vperm.slane %v2255, 1
  %v2282 = vperm.slane %v2256, 0
  %v2283 = vperm.slane %v2256, 1
  %v2284 = vperm.slane %v2257, 0
  %v2285 = vperm.slane %v2257, 1
  %v2286 = vperm.slane %v2258, 0
  %v2287 = vperm.slane %v2258, 1
  %v2288 = vperm.slane %v2259, 0
  %v2289 = vperm.slane %v2259, 1
  %v2290 = vperm.slane %v2260, 0
  %v2291 = vperm.slane %v2260, 1
  %v2292 = vperm.slane %v2261, 0
  %v2293 = vperm.slane %v2261, 1
  %v2295 = vpack.i.b16 %v2262, %v2262
  %v2297 = vperm.slane %v2295, 0
  %v2299 = vpack.i.b16 %v2263, %v2263
  %v2301 = vperm.slane %v2299, 0
  %v2303 = vpack.i.b16 %v2264, %v2264
  %v2305 = vperm.slane %v2303, 0
  %v2307 = vpack.i.b16 %v2265, %v2265
  %v2309 = vperm.slane %v2307, 0
  %v2311 = vpack.i.b16 %v2266, %v2266
  %v2313 = vperm.slane %v2311, 0
  %v2315 = vpack.i.b16 %v2267, %v2267
  %v2317 = vperm.slane %v2315, 0
  %v2319 = vpack.i.b16 %v2268, %v2268
  %v2321 = vperm.slane %v2319, 0
  %v2323 = vpack.i.b16 %v2269, %v2269
  %v2325 = vperm.slane %v2323, 0
  %v2327 = vpack.i.b16 %v2270, %v2270
  %v2329 = vperm.slane %v2327, 0
  %v2331 = vpack.i.b16 %v2271, %v2271
  %v2333 = vperm.slane %v2331, 0
  %v2335 = vpack.i.b16 %v2272, %v2272
  %v2337 = vperm.slane %v2335, 0
  %v2339 = vpack.i.b16 %v2273, %v2273
  %v2341 = vperm.slane %v2339, 0
  %v2343 = vpack.i.b16 %v2274, %v2274
  %v2345 = vperm.slane %v2343, 0
  %v2347 = vpack.i.b16 %v2275, %v2275
  %v2349 = vperm.slane %v2347, 0
  %v2351 = vpack.i.b16 %v2276, %v2276
  %v2353 = vperm.slane %v2351, 0
  %v2355 = vpack.i.b16 %v2277, %v2277
  %v2357 = vperm.slane %v2355, 0
  %v2359 = vpack.i.b16 %v2278, %v2278
  %v2361 = vperm.slane %v2359, 0
  %v2363 = vpack.i.b16 %v2279, %v2279
  %v2365 = vperm.slane %v2363, 0
  %v2367 = vpack.i.b16 %v2280, %v2280
  %v2369 = vperm.slane %v2367, 0
  %v2371 = vpack.i.b16 %v2281, %v2281
  %v2373 = vperm.slane %v2371, 0
  %v2375 = vpack.i.b16 %v2282, %v2282
  %v2377 = vperm.slane %v2375, 0
  %v2379 = vpack.i.b16 %v2283, %v2283
  %v2381 = vperm.slane %v2379, 0
  %v2383 = vpack.i.b16 %v2284, %v2284
  %v2385 = vperm.slane %v2383, 0
  %v2387 = vpack.i.b16 %v2285, %v2285
  %v2389 = vperm.slane %v2387, 0
  %v2391 = vpack.i.b16 %v2286, %v2286
  %v2393 = vperm.slane %v2391, 0
  %v2395 = vpack.i.b16 %v2287, %v2287
  %v2397 = vperm.slane %v2395, 0
  %v2399 = vpack.i.b16 %v2288, %v2288
  %v2401 = vperm.slane %v2399, 0
  %v2403 = vpack.i.b16 %v2289, %v2289
  %v2405 = vperm.slane %v2403, 0
  %v2407 = vpack.i.b16 %v2290, %v2290
  %v2409 = vperm.slane %v2407, 0
  %v2411 = vpack.i.b16 %v2291, %v2291
  %v2413 = vperm.slane %v2411, 0
  %v2415 = vpack.i.b16 %v2292, %v2292
  %v2417 = vperm.slane %v2415, 0
  %v2419 = vpack.i.b16 %v2293, %v2293
  %v2421 = vperm.slane %v2419, 0
  %v2422 = vunpack.c.l.bf16 %v2297
  %v2423 = vunpack.c.l.bf16 %v2301
  %v2424 = vunpack.c.l.bf16 %v2305
  %v2425 = vunpack.c.l.bf16 %v2309
  %v2426 = vunpack.c.l.bf16 %v2313
  %v2427 = vunpack.c.l.bf16 %v2317
  %v2428 = vunpack.c.l.bf16 %v2321
  %v2429 = vunpack.c.l.bf16 %v2325
  %v2430 = vunpack.c.l.bf16 %v2329
  %v2431 = vunpack.c.l.bf16 %v2333
  %v2432 = vunpack.c.l.bf16 %v2337
  %v2433 = vunpack.c.l.bf16 %v2341
  %v2434 = vunpack.c.l.bf16 %v2345
  %v2435 = vunpack.c.l.bf16 %v2349
  %v2436 = vunpack.c.l.bf16 %v2353
  %v2437 = vunpack.c.l.bf16 %v2357
  %v2438 = vunpack.c.l.bf16 %v2361
  %v2439 = vunpack.c.l.bf16 %v2365
  %v2440 = vunpack.c.l.bf16 %v2369
  %v2441 = vunpack.c.l.bf16 %v2373
  %v2442 = vunpack.c.l.bf16 %v2377
  %v2443 = vunpack.c.l.bf16 %v2381
  %v2444 = vunpack.c.l.bf16 %v2385
  %v2445 = vunpack.c.l.bf16 %v2389
  %v2446 = vunpack.c.l.bf16 %v2393
  %v2447 = vunpack.c.l.bf16 %v2397
  %v2448 = vunpack.c.l.bf16 %v2401
  %v2449 = vunpack.c.l.bf16 %v2405
  %v2450 = vunpack.c.l.bf16 %v2409
  %v2451 = vunpack.c.l.bf16 %v2413
  %v2452 = vunpack.c.l.bf16 %v2417
  %v2453 = vunpack.c.l.bf16 %v2421
  %v2454 = vunpack.c.l.bf16 %v2194
  %v2455 = vunpack.c.h.bf16 %v2194
  %v2456 = vunpack.c.l.bf16 %v2195
  %v2457 = vunpack.c.h.bf16 %v2195
  %v2458 = vmul.f32 %v2422, %v2454
  %v2459 = vmul.f32 %v2423, %v2455
  %v2460 = vmul.f32 %v2422, %v2456
  %v2461 = vmul.f32 %v2423, %v2457
  %v2462 = vmul.f32 %v2424, %v2454
  %v2463 = vmul.f32 %v2425, %v2455
  %v2464 = vmul.f32 %v2424, %v2456
  %v2465 = vmul.f32 %v2425, %v2457
  %v2466 = vmul.f32 %v2426, %v2454
  %v2467 = vmul.f32 %v2427, %v2455
  %v2468 = vmul.f32 %v2426, %v2456
  %v2469 = vmul.f32 %v2427, %v2457
  %v2470 = vmul.f32 %v2428, %v2454
  %v2471 = vmul.f32 %v2429, %v2455
  %v2472 = vmul.f32 %v2428, %v2456
  %v2473 = vmul.f32 %v2429, %v2457
  %v2474 = vmul.f32 %v2430, %v2454
  %v2475 = vmul.f32 %v2431, %v2455
  %v2476 = vmul.f32 %v2430, %v2456
  %v2477 = vmul.f32 %v2431, %v2457
  %v2478 = vmul.f32 %v2432, %v2454
  %v2479 = vmul.f32 %v2433, %v2455
  %v2480 = vmul.f32 %v2432, %v2456
  %v2481 = vmul.f32 %v2433, %v2457
  %v2482 = vmul.f32 %v2434, %v2454
  %v2483 = vmul.f32 %v2435, %v2455
  %v2484 = vmul.f32 %v2434, %v2456
  %v2485 = vmul.f32 %v2435, %v2457
  %v2486 = vmul.f32 %v2436, %v2454
  %v2487 = vmul.f32 %v2437, %v2455
  %v2488 = vmul.f32 %v2436, %v2456
  %v2489 = vmul.f32 %v2437, %v2457
  %v2490 = vmul.f32 %v2438, %v2454
  %v2491 = vmul.f32 %v2439, %v2455
  %v2492 = vmul.f32 %v2438, %v2456
  %v2493 = vmul.f32 %v2439, %v2457
  %v2494 = vmul.f32 %v2440, %v2454
  %v2495 = vmul.f32 %v2441, %v2455
  %v2496 = vmul.f32 %v2440, %v2456
  %v2497 = vmul.f32 %v2441, %v2457
  %v2498 = vmul.f32 %v2442, %v2454
  %v2499 = vmul.f32 %v2443, %v2455
  %v2500 = vmul.f32 %v2442, %v2456
  %v2501 = vmul.f32 %v2443, %v2457
  %v2502 = vmul.f32 %v2444, %v2454
  %v2503 = vmul.f32 %v2445, %v2455
  %v2504 = vmul.f32 %v2444, %v2456
  %v2505 = vmul.f32 %v2445, %v2457
  %v2506 = vmul.f32 %v2446, %v2454
  %v2507 = vmul.f32 %v2447, %v2455
  %v2508 = vmul.f32 %v2446, %v2456
  %v2509 = vmul.f32 %v2447, %v2457
  %v2510 = vmul.f32 %v2448, %v2454
  %v2511 = vmul.f32 %v2449, %v2455
  %v2512 = vmul.f32 %v2448, %v2456
  %v2513 = vmul.f32 %v2449, %v2457
  %v2514 = vmul.f32 %v2450, %v2454
  %v2515 = vmul.f32 %v2451, %v2455
  %v2516 = vmul.f32 %v2450, %v2456
  %v2517 = vmul.f32 %v2451, %v2457
  %v2518 = vmul.f32 %v2452, %v2454
  %v2519 = vmul.f32 %v2453, %v2455
  %v2520 = vmul.f32 %v2452, %v2456
  %v2521 = vmul.f32 %v2453, %v2457
  %v2522 = vpack.c.bf16 %v2459, %v2458
  %v2523 = vpack.c.bf16 %v2461, %v2460
  %v2524 = vpack.c.bf16 %v2463, %v2462
  %v2525 = vpack.c.bf16 %v2465, %v2464
  %v2526 = vpack.c.bf16 %v2467, %v2466
  %v2527 = vpack.c.bf16 %v2469, %v2468
  %v2528 = vpack.c.bf16 %v2471, %v2470
  %v2529 = vpack.c.bf16 %v2473, %v2472
  %v2530 = vpack.c.bf16 %v2475, %v2474
  %v2531 = vpack.c.bf16 %v2477, %v2476
  %v2532 = vpack.c.bf16 %v2479, %v2478
  %v2533 = vpack.c.bf16 %v2481, %v2480
  %v2534 = vpack.c.bf16 %v2483, %v2482
  %v2535 = vpack.c.bf16 %v2485, %v2484
  %v2536 = vpack.c.bf16 %v2487, %v2486
  %v2537 = vpack.c.bf16 %v2489, %v2488
  %v2538 = vpack.c.bf16 %v2491, %v2490
  %v2539 = vpack.c.bf16 %v2493, %v2492
  %v2540 = vpack.c.bf16 %v2495, %v2494
  %v2541 = vpack.c.bf16 %v2497, %v2496
  %v2542 = vpack.c.bf16 %v2499, %v2498
  %v2543 = vpack.c.bf16 %v2501, %v2500
  %v2544 = vpack.c.bf16 %v2503, %v2502
  %v2545 = vpack.c.bf16 %v2505, %v2504
  %v2546 = vpack.c.bf16 %v2507, %v2506
  %v2547 = vpack.c.bf16 %v2509, %v2508
  %v2548 = vpack.c.bf16 %v2511, %v2510
  %v2549 = vpack.c.bf16 %v2513, %v2512
  %v2550 = vpack.c.bf16 %v2515, %v2514
  %v2551 = vpack.c.bf16 %v2517, %v2516
  %v2552 = vpack.c.bf16 %v2519, %v2518
  %v2553 = vpack.c.bf16 %v2521, %v2520
  %v2554 = vld [vmem:[%s7] sm:$0xf]
  %v2555 = vld [vmem:[%s7 + $0x4] sm:$0xf]
  %v2556 = vld [vmem:[%s7 + $0x8] sm:$0xf]
  %v2557 = vld [vmem:[%s7 + $0xc] sm:$0xf]
  %v2558 = vld [vmem:[%s7 + $0x10] sm:$0xf]
  %v2559 = vld [vmem:[%s7 + $0x14] sm:$0xf]
  %v2560 = vld [vmem:[%s7 + $0x18] sm:$0xf]
  %v2561 = vld [vmem:[%s7 + $0x1c] sm:$0xf]
  %v2562 = vld [vmem:[%s7 + $0x20] sm:$0xf]
  %v2563 = vld [vmem:[%s7 + $0x24] sm:$0xf]
  %v2564 = vld [vmem:[%s7 + $0x28] sm:$0xf]
  %v2565 = vld [vmem:[%s7 + $0x2c] sm:$0xf]
  %v2566 = vld [vmem:[%s7 + $0x30] sm:$0xf]
  %v2567 = vld [vmem:[%s7 + $0x34] sm:$0xf]
  %v2568 = vld [vmem:[%s7 + $0x38] sm:$0xf]
  %v2569 = vld [vmem:[%s7 + $0x3c] sm:$0xf]
  %v2570 = vld [vmem:[%s7 + $0x40] sm:$0xf]
  %v2571 = vld [vmem:[%s7 + $0x44] sm:$0xf]
  %v2572 = vld [vmem:[%s7 + $0x48] sm:$0xf]
  %v2573 = vld [vmem:[%s7 + $0x4c] sm:$0xf]
  %v2574 = vld [vmem:[%s7 + $0x50] sm:$0xf]
  %v2575 = vld [vmem:[%s7 + $0x54] sm:$0xf]
  %v2576 = vld [vmem:[%s7 + $0x58] sm:$0xf]
  %v2577 = vld [vmem:[%s7 + $0x5c] sm:$0xf]
  %v2578 = vld [vmem:[%s7 + $0x60] sm:$0xf]
  %v2579 = vld [vmem:[%s7 + $0x64] sm:$0xf]
  %v2580 = vld [vmem:[%s7 + $0x68] sm:$0xf]
  %v2581 = vld [vmem:[%s7 + $0x6c] sm:$0xf]
  %v2582 = vld [vmem:[%s7 + $0x70] sm:$0xf]
  %v2583 = vld [vmem:[%s7 + $0x74] sm:$0xf]
  %v2584 = vld [vmem:[%s7 + $0x78] sm:$0xf]
  %v2585 = vld [vmem:[%s7 + $0x7c] sm:$0xf]
  %v2618 = vunpack.c.l.b16 %v2522
  %v2619 = vunpack.c.h.b16 %v2522
  %v2620 = vunpack.c.l.b16 %v2523
  %v2621 = vunpack.c.h.b16 %v2523
  %v2622 = vunpack.c.l.b16 %v2524
  %v2623 = vunpack.c.h.b16 %v2524
  %v2624 = vunpack.c.l.b16 %v2525
  %v2625 = vunpack.c.h.b16 %v2525
  %v2626 = vunpack.c.l.b16 %v2526
  %v2627 = vunpack.c.h.b16 %v2526
  %v2628 = vunpack.c.l.b16 %v2527
  %v2629 = vunpack.c.h.b16 %v2527
  %v2630 = vunpack.c.l.b16 %v2528
  %v2631 = vunpack.c.h.b16 %v2528
  %v2632 = vunpack.c.l.b16 %v2529
  %v2633 = vunpack.c.h.b16 %v2529
  %v2634 = vunpack.c.l.b16 %v2530
  %v2635 = vunpack.c.h.b16 %v2530
  %v2636 = vunpack.c.l.b16 %v2531
  %v2637 = vunpack.c.h.b16 %v2531
  %v2638 = vunpack.c.l.b16 %v2532
  %v2639 = vunpack.c.h.b16 %v2532
  %v2640 = vunpack.c.l.b16 %v2533
  %v2641 = vunpack.c.h.b16 %v2533
  %v2642 = vunpack.c.l.b16 %v2534
  %v2643 = vunpack.c.h.b16 %v2534
  %v2644 = vunpack.c.l.b16 %v2535
  %v2645 = vunpack.c.h.b16 %v2535
  %v2646 = vunpack.c.l.b16 %v2536
  %v2647 = vunpack.c.h.b16 %v2536
  %v2648 = vunpack.c.l.b16 %v2537
  %v2649 = vunpack.c.h.b16 %v2537
  %v2650 = vunpack.c.l.b16 %v2538
  %v2651 = vunpack.c.h.b16 %v2538
  %v2652 = vunpack.c.l.b16 %v2539
  %v2653 = vunpack.c.h.b16 %v2539
  %v2654 = vunpack.c.l.b16 %v2540
  %v2655 = vunpack.c.h.b16 %v2540
  %v2656 = vunpack.c.l.b16 %v2541
  %v2657 = vunpack.c.h.b16 %v2541
  %v2658 = vunpack.c.l.b16 %v2542
  %v2659 = vunpack.c.h.b16 %v2542
  %v2660 = vunpack.c.l.b16 %v2543
  %v2661 = vunpack.c.h.b16 %v2543
  %v2662 = vunpack.c.l.b16 %v2544
  %v2663 = vunpack.c.h.b16 %v2544
  %v2664 = vunpack.c.l.b16 %v2545
  %v2665 = vunpack.c.h.b16 %v2545
  %v2666 = vunpack.c.l.b16 %v2546
  %v2667 = vunpack.c.h.b16 %v2546
  %v2668 = vunpack.c.l.b16 %v2547
  %v2669 = vunpack.c.h.b16 %v2547
  %v2670 = vunpack.c.l.b16 %v2548
  %v2671 = vunpack.c.h.b16 %v2548
  %v2672 = vunpack.c.l.b16 %v2549
  %v2673 = vunpack.c.h.b16 %v2549
  %v2674 = vunpack.c.l.b16 %v2550
  %v2675 = vunpack.c.h.b16 %v2550
  %v2676 = vunpack.c.l.b16 %v2551
  %v2677 = vunpack.c.h.b16 %v2551
  %v2678 = vunpack.c.l.b16 %v2552
  %v2679 = vunpack.c.h.b16 %v2552
  %v2680 = vunpack.c.l.b16 %v2553
  %v2681 = vunpack.c.h.b16 %v2553
  %v2682 = vpack.c.b16 %v2620, %v2618
  %v2683 = vpack.c.b16 %v2621, %v2619
  %v2684 = vpack.c.b16 %v2624, %v2622
  %v2685 = vpack.c.b16 %v2625, %v2623
  %v2686 = vpack.c.b16 %v2628, %v2626
  %v2687 = vpack.c.b16 %v2629, %v2627
  %v2688 = vpack.c.b16 %v2632, %v2630
  %v2689 = vpack.c.b16 %v2633, %v2631
  %v2690 = vpack.c.b16 %v2636, %v2634
  %v2691 = vpack.c.b16 %v2637, %v2635
  %v2692 = vpack.c.b16 %v2640, %v2638
  %v2693 = vpack.c.b16 %v2641, %v2639
  %v2694 = vpack.c.b16 %v2644, %v2642
  %v2695 = vpack.c.b16 %v2645, %v2643
  %v2696 = vpack.c.b16 %v2648, %v2646
  %v2697 = vpack.c.b16 %v2649, %v2647
  %v2698 = vpack.c.b16 %v2652, %v2650
  %v2699 = vpack.c.b16 %v2653, %v2651
  %v2700 = vpack.c.b16 %v2656, %v2654
  %v2701 = vpack.c.b16 %v2657, %v2655
  %v2702 = vpack.c.b16 %v2660, %v2658
  %v2703 = vpack.c.b16 %v2661, %v2659
  %v2704 = vpack.c.b16 %v2664, %v2662
  %v2705 = vpack.c.b16 %v2665, %v2663
  %v2706 = vpack.c.b16 %v2668, %v2666
  %v2707 = vpack.c.b16 %v2669, %v2667
  %v2708 = vpack.c.b16 %v2672, %v2670
  %v2709 = vpack.c.b16 %v2673, %v2671
  %v2710 = vpack.c.b16 %v2676, %v2674
  %v2711 = vpack.c.b16 %v2677, %v2675
  %v2712 = vpack.c.b16 %v2680, %v2678
  %v2713 = vpack.c.b16 %v2681, %v2679
  %v2778 = vunpack.c.l.b16 %v2554
  %v2779 = vunpack.c.l.b16 %v2555
  %v2780 = vunpack.c.l.b16 %v2556
  %v2781 = vunpack.c.l.b16 %v2557
  %v2782 = vunpack.c.l.b16 %v2558
  %v2783 = vunpack.c.l.b16 %v2559
  %v2784 = vunpack.c.l.b16 %v2560
  %v2785 = vunpack.c.l.b16 %v2561
  %v2786 = vunpack.c.l.b16 %v2562
  %v2787 = vunpack.c.l.b16 %v2563
  %v2788 = vunpack.c.l.b16 %v2564
  %v2789 = vunpack.c.l.b16 %v2565
  %v2790 = vunpack.c.l.b16 %v2566
  %v2791 = vunpack.c.l.b16 %v2567
  %v2792 = vunpack.c.l.b16 %v2568
  %v2793 = vunpack.c.l.b16 %v2569
  %v2794 = vunpack.c.l.b16 %v2570
  %v2795 = vunpack.c.l.b16 %v2571
  %v2796 = vunpack.c.l.b16 %v2572
  %v2797 = vunpack.c.l.b16 %v2573
  %v2798 = vunpack.c.l.b16 %v2574
  %v2799 = vunpack.c.l.b16 %v2575
  %v2800 = vunpack.c.l.b16 %v2576
  %v2801 = vunpack.c.l.b16 %v2577
  %v2802 = vunpack.c.l.b16 %v2578
  %v2803 = vunpack.c.l.b16 %v2579
  %v2804 = vunpack.c.l.b16 %v2580
  %v2805 = vunpack.c.l.b16 %v2581
  %v2806 = vunpack.c.l.b16 %v2582
  %v2807 = vunpack.c.l.b16 %v2583
  %v2808 = vunpack.c.l.b16 %v2584
  %v2809 = vunpack.c.l.b16 %v2585
  %v2810 = vpack.c.b16 %v2779, %v2778
  %v2811 = vpack.c.b16 %v2781, %v2780
  %v2812 = vpack.c.b16 %v2783, %v2782
  %v2813 = vpack.c.b16 %v2785, %v2784
  %v2814 = vpack.c.b16 %v2787, %v2786
  %v2815 = vpack.c.b16 %v2789, %v2788
  %v2816 = vpack.c.b16 %v2791, %v2790
  %v2817 = vpack.c.b16 %v2793, %v2792
  %v2818 = vpack.c.b16 %v2795, %v2794
  %v2819 = vpack.c.b16 %v2797, %v2796
  %v2820 = vpack.c.b16 %v2799, %v2798
  %v2821 = vpack.c.b16 %v2801, %v2800
  %v2822 = vpack.c.b16 %v2803, %v2802
  %v2823 = vpack.c.b16 %v2805, %v2804
  %v2824 = vpack.c.b16 %v2807, %v2806
  %v2825 = vpack.c.b16 %v2809, %v2808
  %2842 = vmatpush.bf16.msra.mxu0 %v2817
  %2843 = vmatpush.bf16.msra.mxu0 %v2816
  %2844 = vmatpush.bf16.msra.mxu0 %v2815
  %2845 = vmatpush.bf16.msra.mxu0 %v2814
  %2846 = vmatpush.bf16.msra.mxu0 %v2813
  %2847 = vmatpush.bf16.msra.mxu0 %v2812
  %2848 = vmatpush.bf16.msra.mxu0 %v2811
  %2849 = vmatpush.bf16.msra.mxu0 %v2810
  %2850 = vmatmul.bf16.gmra.mxu0 %v2682
  %v2851 = vpop.f32.mrf.mxu0
  %v2852 = vadd.f32 0.0, %v2851
  %v2853 = vpop.f32.mrf.mxu0
  %v2854 = vadd.f32 0.0, %v2853
  %2855 = vmatmul.bf16.gmra.mxu0 %v2684
  %v2856 = vpop.f32.mrf.mxu0
  %v2857 = vadd.f32 0.0, %v2856
  %v2858 = vpop.f32.mrf.mxu0
  %v2859 = vadd.f32 0.0, %v2858
  %2860 = vmatmul.bf16.gmra.mxu0 %v2686
  %v2861 = vpop.f32.mrf.mxu0
  %v2862 = vadd.f32 0.0, %v2861
  %v2863 = vpop.f32.mrf.mxu0
  %v2864 = vadd.f32 0.0, %v2863
  %2865 = vmatmul.bf16.gmra.mxu0 %v2688
  %v2866 = vpop.f32.mrf.mxu0
  %v2867 = vadd.f32 0.0, %v2866
  %v2868 = vpop.f32.mrf.mxu0
  %v2869 = vadd.f32 0.0, %v2868
  %2870 = vmatmul.bf16.gmra.mxu0 %v2690
  %v2871 = vpop.f32.mrf.mxu0
  %v2872 = vadd.f32 0.0, %v2871
  %v2873 = vpop.f32.mrf.mxu0
  %v2874 = vadd.f32 0.0, %v2873
  %2875 = vmatmul.bf16.gmra.mxu0 %v2692
  %v2876 = vpop.f32.mrf.mxu0
  %v2877 = vadd.f32 0.0, %v2876
  %v2878 = vpop.f32.mrf.mxu0
  %v2879 = vadd.f32 0.0, %v2878
  %2880 = vmatmul.bf16.gmra.mxu0 %v2694
  %v2881 = vpop.f32.mrf.mxu0
  %v2882 = vadd.f32 0.0, %v2881
  %v2883 = vpop.f32.mrf.mxu0
  %v2884 = vadd.f32 0.0, %v2883
  %2885 = vmatmul.bf16.gmra.mxu0 %v2696
  %v2886 = vpop.f32.mrf.mxu0
  %v2887 = vadd.f32 0.0, %v2886
  %v2888 = vpop.f32.mrf.mxu0
  %v2889 = vadd.f32 0.0, %v2888
  %2890 = vmatmul.bf16.gmra.mxu0 %v2698
  %v2891 = vpop.f32.mrf.mxu0
  %v2892 = vadd.f32 0.0, %v2891
  %v2893 = vpop.f32.mrf.mxu0
  %v2894 = vadd.f32 0.0, %v2893
  %2895 = vmatmul.bf16.gmra.mxu0 %v2700
  %v2896 = vpop.f32.mrf.mxu0
  %v2897 = vadd.f32 0.0, %v2896
  %v2898 = vpop.f32.mrf.mxu0
  %v2899 = vadd.f32 0.0, %v2898
  %2900 = vmatmul.bf16.gmra.mxu0 %v2702
  %v2901 = vpop.f32.mrf.mxu0
  %v2902 = vadd.f32 0.0, %v2901
  %v2903 = vpop.f32.mrf.mxu0
  %v2904 = vadd.f32 0.0, %v2903
  %2905 = vmatmul.bf16.gmra.mxu0 %v2704
  %v2906 = vpop.f32.mrf.mxu0
  %v2907 = vadd.f32 0.0, %v2906
  %v2908 = vpop.f32.mrf.mxu0
  %v2909 = vadd.f32 0.0, %v2908
  %2910 = vmatmul.bf16.gmra.mxu0 %v2706
  %v2911 = vpop.f32.mrf.mxu0
  %v2912 = vadd.f32 0.0, %v2911
  %v2913 = vpop.f32.mrf.mxu0
  %v2914 = vadd.f32 0.0, %v2913
  %2915 = vmatmul.bf16.gmra.mxu0 %v2708
  %v2916 = vpop.f32.mrf.mxu0
  %v2917 = vadd.f32 0.0, %v2916
  %v2918 = vpop.f32.mrf.mxu0
  %v2919 = vadd.f32 0.0, %v2918
  %2920 = vmatmul.bf16.gmra.mxu0 %v2710
  %v2921 = vpop.f32.mrf.mxu0
  %v2922 = vadd.f32 0.0, %v2921
  %v2923 = vpop.f32.mrf.mxu0
  %v2924 = vadd.f32 0.0, %v2923
  %2925 = vmatmul.bf16.gmra.mxu0 %v2712
  %v2926 = vpop.f32.mrf.mxu0
  %v2927 = vadd.f32 0.0, %v2926
  %v2928 = vpop.f32.mrf.mxu0
  %v2929 = vadd.f32 0.0, %v2928
  %2930 = vdwg.mxu0
  %2931 = vmatpush.bf16.msra.mxu0 %v2825
  %2932 = vmatpush.bf16.msra.mxu0 %v2824
  %2933 = vmatpush.bf16.msra.mxu0 %v2823
  %2934 = vmatpush.bf16.msra.mxu0 %v2822
  %2935 = vmatpush.bf16.msra.mxu0 %v2821
  %2936 = vmatpush.bf16.msra.mxu0 %v2820
  %2937 = vmatpush.bf16.msra.mxu0 %v2819
  %2938 = vmatpush.bf16.msra.mxu0 %v2818
  %2939 = vmatmul.bf16.gmra.mxu0 %v2683
  %v2940 = vpop.f32.mrf.mxu0
  %v2941 = vadd.f32 %v2852, %v2940
  %v2942 = vpop.f32.mrf.mxu0
  %v2943 = vadd.f32 %v2854, %v2942
  %2944 = vmatmul.bf16.gmra.mxu0 %v2685
  %v2945 = vpop.f32.mrf.mxu0
  %v2946 = vadd.f32 %v2857, %v2945
  %v2947 = vpop.f32.mrf.mxu0
  %v2948 = vadd.f32 %v2859, %v2947
  %2949 = vmatmul.bf16.gmra.mxu0 %v2687
  %v2950 = vpop.f32.mrf.mxu0
  %v2951 = vadd.f32 %v2862, %v2950
  %v2952 = vpop.f32.mrf.mxu0
  %v2953 = vadd.f32 %v2864, %v2952
  %2954 = vmatmul.bf16.gmra.mxu0 %v2689
  %v2955 = vpop.f32.mrf.mxu0
  %v2956 = vadd.f32 %v2867, %v2955
  %v2957 = vpop.f32.mrf.mxu0
  %v2958 = vadd.f32 %v2869, %v2957
  %2959 = vmatmul.bf16.gmra.mxu0 %v2691
  %v2960 = vpop.f32.mrf.mxu0
  %v2961 = vadd.f32 %v2872, %v2960
  %v2962 = vpop.f32.mrf.mxu0
  %v2963 = vadd.f32 %v2874, %v2962
  %2964 = vmatmul.bf16.gmra.mxu0 %v2693
  %v2965 = vpop.f32.mrf.mxu0
  %v2966 = vadd.f32 %v2877, %v2965
  %v2967 = vpop.f32.mrf.mxu0
  %v2968 = vadd.f32 %v2879, %v2967
  %2969 = vmatmul.bf16.gmra.mxu0 %v2695
  %v2970 = vpop.f32.mrf.mxu0
  %v2971 = vadd.f32 %v2882, %v2970
  %v2972 = vpop.f32.mrf.mxu0
  %v2973 = vadd.f32 %v2884, %v2972
  %2974 = vmatmul.bf16.gmra.mxu0 %v2697
  %v2975 = vpop.f32.mrf.mxu0
  %v2976 = vadd.f32 %v2887, %v2975
  %v2977 = vpop.f32.mrf.mxu0
  %v2978 = vadd.f32 %v2889, %v2977
  %2979 = vmatmul.bf16.gmra.mxu0 %v2699
  %v2980 = vpop.f32.mrf.mxu0
  %v2981 = vadd.f32 %v2892, %v2980
  %v2982 = vpop.f32.mrf.mxu0
  %v2983 = vadd.f32 %v2894, %v2982
  %2984 = vmatmul.bf16.gmra.mxu0 %v2701
  %v2985 = vpop.f32.mrf.mxu0
  %v2986 = vadd.f32 %v2897, %v2985
  %v2987 = vpop.f32.mrf.mxu0
  %v2988 = vadd.f32 %v2899, %v2987
  %2989 = vmatmul.bf16.gmra.mxu0 %v2703
  %v2990 = vpop.f32.mrf.mxu0
  %v2991 = vadd.f32 %v2902, %v2990
  %v2992 = vpop.f32.mrf.mxu0
  %v2993 = vadd.f32 %v2904, %v2992
  %2994 = vmatmul.bf16.gmra.mxu0 %v2705
  %v2995 = vpop.f32.mrf.mxu0
  %v2996 = vadd.f32 %v2907, %v2995
  %v2997 = vpop.f32.mrf.mxu0
  %v2998 = vadd.f32 %v2909, %v2997
  %2999 = vmatmul.bf16.gmra.mxu0 %v2707
  %v3000 = vpop.f32.mrf.mxu0
  %v3001 = vadd.f32 %v2912, %v3000
  %v3002 = vpop.f32.mrf.mxu0
  %v3003 = vadd.f32 %v2914, %v3002
  %3004 = vmatmul.bf16.gmra.mxu0 %v2709
  %v3005 = vpop.f32.mrf.mxu0
  %v3006 = vadd.f32 %v2917, %v3005
  %v3007 = vpop.f32.mrf.mxu0
  %v3008 = vadd.f32 %v2919, %v3007
  %3009 = vmatmul.bf16.gmra.mxu0 %v2711
  %v3010 = vpop.f32.mrf.mxu0
  %v3011 = vadd.f32 %v2922, %v3010
  %v3012 = vpop.f32.mrf.mxu0
  %v3013 = vadd.f32 %v2924, %v3012
  %3014 = vmatmul.bf16.gmra.mxu0 %v2713
  %v3015 = vpop.f32.mrf.mxu0
  %v3016 = vadd.f32 %v2927, %v3015
  %v3017 = vpop.f32.mrf.mxu0
  %v3018 = vadd.f32 %v2929, %v3017
  %3019 = vdwg.mxu0
  %v3020 = vsel %vm223, %v2941, -inf
  %v3021 = vsel %vm223, %v2943, -inf
  %v3022 = vmax.f32 %v3020, %v3021
  %v3023 = vrot.slane %v3022, 4
  %v3024 = vmax.f32 %v3022, %v3023
  %v3025 = vrot.slane %v3024, 2
  %v3026 = vmax.f32 %v3024, %v3025
  %v3027 = vrot.slane %v3026, 1
  %v3028 = vmax.f32 %v3026, %v3027
  %v3029 = vsel %vm223, %v2946, -inf
  %v3030 = vsel %vm223, %v2948, -inf
  %v3031 = vmax.f32 %v3029, %v3030
  %v3032 = vrot.slane %v3031, 4
  %v3033 = vmax.f32 %v3031, %v3032
  %v3034 = vrot.slane %v3033, 2
  %v3035 = vmax.f32 %v3033, %v3034
  %v3036 = vrot.slane %v3035, 1
  %v3037 = vmax.f32 %v3035, %v3036
  %v3038 = vsel %vm223, %v2951, -inf
  %v3039 = vsel %vm223, %v2953, -inf
  %v3040 = vmax.f32 %v3038, %v3039
  %v3041 = vrot.slane %v3040, 4
  %v3042 = vmax.f32 %v3040, %v3041
  %v3043 = vrot.slane %v3042, 2
  %v3044 = vmax.f32 %v3042, %v3043
  %v3045 = vrot.slane %v3044, 1
  %v3046 = vmax.f32 %v3044, %v3045
  %v3047 = vsel %vm223, %v2956, -inf
  %v3048 = vsel %vm223, %v2958, -inf
  %v3049 = vmax.f32 %v3047, %v3048
  %v3050 = vrot.slane %v3049, 4
  %v3051 = vmax.f32 %v3049, %v3050
  %v3052 = vrot.slane %v3051, 2
  %v3053 = vmax.f32 %v3051, %v3052
  %v3054 = vrot.slane %v3053, 1
  %v3055 = vmax.f32 %v3053, %v3054
  %v3056 = vsel %vm223, %v2961, -inf
  %v3057 = vsel %vm223, %v2963, -inf
  %v3058 = vmax.f32 %v3056, %v3057
  %v3059 = vrot.slane %v3058, 4
  %v3060 = vmax.f32 %v3058, %v3059
  %v3061 = vrot.slane %v3060, 2
  %v3062 = vmax.f32 %v3060, %v3061
  %v3063 = vrot.slane %v3062, 1
  %v3064 = vmax.f32 %v3062, %v3063
  %v3065 = vsel %vm223, %v2966, -inf
  %v3066 = vsel %vm223, %v2968, -inf
  %v3067 = vmax.f32 %v3065, %v3066
  %v3068 = vrot.slane %v3067, 4
  %v3069 = vmax.f32 %v3067, %v3068
  %v3070 = vrot.slane %v3069, 2
  %v3071 = vmax.f32 %v3069, %v3070
  %v3072 = vrot.slane %v3071, 1
  %v3073 = vmax.f32 %v3071, %v3072
  %v3074 = vsel %vm223, %v2971, -inf
  %v3075 = vsel %vm223, %v2973, -inf
  %v3076 = vmax.f32 %v3074, %v3075
  %v3077 = vrot.slane %v3076, 4
  %v3078 = vmax.f32 %v3076, %v3077
  %v3079 = vrot.slane %v3078, 2
  %v3080 = vmax.f32 %v3078, %v3079
  %v3081 = vrot.slane %v3080, 1
  %v3082 = vmax.f32 %v3080, %v3081
  %v3083 = vsel %vm223, %v2976, -inf
  %v3084 = vsel %vm223, %v2978, -inf
  %v3085 = vmax.f32 %v3083, %v3084
  %v3086 = vrot.slane %v3085, 4
  %v3087 = vmax.f32 %v3085, %v3086
  %v3088 = vrot.slane %v3087, 2
  %v3089 = vmax.f32 %v3087, %v3088
  %v3090 = vrot.slane %v3089, 1
  %v3091 = vmax.f32 %v3089, %v3090
  %v3092 = vsel %vm223, %v2981, -inf
  %v3093 = vsel %vm223, %v2983, -inf
  %v3094 = vmax.f32 %v3092, %v3093
  %v3095 = vrot.slane %v3094, 4
  %v3096 = vmax.f32 %v3094, %v3095
  %v3097 = vrot.slane %v3096, 2
  %v3098 = vmax.f32 %v3096, %v3097
  %v3099 = vrot.slane %v3098, 1
  %v3100 = vmax.f32 %v3098, %v3099
  %v3101 = vsel %vm223, %v2986, -inf
  %v3102 = vsel %vm223, %v2988, -inf
  %v3103 = vmax.f32 %v3101, %v3102
  %v3104 = vrot.slane %v3103, 4
  %v3105 = vmax.f32 %v3103, %v3104
  %v3106 = vrot.slane %v3105, 2
  %v3107 = vmax.f32 %v3105, %v3106
  %v3108 = vrot.slane %v3107, 1
  %v3109 = vmax.f32 %v3107, %v3108
  %v3110 = vsel %vm223, %v2991, -inf
  %v3111 = vsel %vm223, %v2993, -inf
  %v3112 = vmax.f32 %v3110, %v3111
  %v3113 = vrot.slane %v3112, 4
  %v3114 = vmax.f32 %v3112, %v3113
  %v3115 = vrot.slane %v3114, 2
  %v3116 = vmax.f32 %v3114, %v3115
  %v3117 = vrot.slane %v3116, 1
  %v3118 = vmax.f32 %v3116, %v3117
  %v3119 = vsel %vm223, %v2996, -inf
  %v3120 = vsel %vm223, %v2998, -inf
  %v3121 = vmax.f32 %v3119, %v3120
  %v3122 = vrot.slane %v3121, 4
  %v3123 = vmax.f32 %v3121, %v3122
  %v3124 = vrot.slane %v3123, 2
  %v3125 = vmax.f32 %v3123, %v3124
  %v3126 = vrot.slane %v3125, 1
  %v3127 = vmax.f32 %v3125, %v3126
  %v3128 = vsel %vm223, %v3001, -inf
  %v3129 = vsel %vm223, %v3003, -inf
  %v3130 = vmax.f32 %v3128, %v3129
  %v3131 = vrot.slane %v3130, 4
  %v3132 = vmax.f32 %v3130, %v3131
  %v3133 = vrot.slane %v3132, 2
  %v3134 = vmax.f32 %v3132, %v3133
  %v3135 = vrot.slane %v3134, 1
  %v3136 = vmax.f32 %v3134, %v3135
  %v3137 = vsel %vm223, %v3006, -inf
  %v3138 = vsel %vm223, %v3008, -inf
  %v3139 = vmax.f32 %v3137, %v3138
  %v3140 = vrot.slane %v3139, 4
  %v3141 = vmax.f32 %v3139, %v3140
  %v3142 = vrot.slane %v3141, 2
  %v3143 = vmax.f32 %v3141, %v3142
  %v3144 = vrot.slane %v3143, 1
  %v3145 = vmax.f32 %v3143, %v3144
  %v3146 = vsel %vm223, %v3011, -inf
  %v3147 = vsel %vm223, %v3013, -inf
  %v3148 = vmax.f32 %v3146, %v3147
  %v3149 = vrot.slane %v3148, 4
  %v3150 = vmax.f32 %v3148, %v3149
  %v3151 = vrot.slane %v3150, 2
  %v3152 = vmax.f32 %v3150, %v3151
  %v3153 = vrot.slane %v3152, 1
  %v3154 = vmax.f32 %v3152, %v3153
  %v3155 = vsel %vm223, %v3016, -inf
  %v3156 = vsel %vm223, %v3018, -inf
  %v3157 = vmax.f32 %v3155, %v3156
  %v3158 = vrot.slane %v3157, 4
  %v3159 = vmax.f32 %v3157, %v3158
  %v3160 = vrot.slane %v3159, 2
  %v3161 = vmax.f32 %v3159, %v3160
  %v3162 = vrot.slane %v3161, 1
  %v3163 = vmax.f32 %v3161, %v3162
  %v3164 = vsub.f32 %v2941, %v3028
  %v3165 = vsub.f32 %v2943, %v3028
  %v3166 = vsub.f32 %v2946, %v3037
  %v3167 = vsub.f32 %v2948, %v3037
  %v3168 = vsub.f32 %v2951, %v3046
  %v3169 = vsub.f32 %v2953, %v3046
  %v3170 = vsub.f32 %v2956, %v3055
  %v3171 = vsub.f32 %v2958, %v3055
  %v3172 = vsub.f32 %v2961, %v3064
  %v3173 = vsub.f32 %v2963, %v3064
  %v3174 = vsub.f32 %v2966, %v3073
  %v3175 = vsub.f32 %v2968, %v3073
  %v3176 = vsub.f32 %v2971, %v3082
  %v3177 = vsub.f32 %v2973, %v3082
  %v3178 = vsub.f32 %v2976, %v3091
  %v3179 = vsub.f32 %v2978, %v3091
  %v3180 = vsub.f32 %v2981, %v3100
  %v3181 = vsub.f32 %v2983, %v3100
  %v3182 = vsub.f32 %v2986, %v3109
  %v3183 = vsub.f32 %v2988, %v3109
  %v3184 = vsub.f32 %v2991, %v3118
  %v3185 = vsub.f32 %v2993, %v3118
  %v3186 = vsub.f32 %v2996, %v3127
  %v3187 = vsub.f32 %v2998, %v3127
  %v3188 = vsub.f32 %v3001, %v3136
  %v3189 = vsub.f32 %v3003, %v3136
  %v3190 = vsub.f32 %v3006, %v3145
  %v3191 = vsub.f32 %v3008, %v3145
  %v3192 = vsub.f32 %v3011, %v3154
  %v3193 = vsub.f32 %v3013, %v3154
  %v3194 = vsub.f32 %v3016, %v3163
  %v3195 = vsub.f32 %v3018, %v3163
  %v3196 = vmul.f32 %v3164, 1.442695
  %v3197 = vpow.pop %v3196
  %v3198 = vmul.f32 %v3165, 1.442695
  %v3199 = vpow.pop %v3198
  %v3200 = vmul.f32 %v3166, 1.442695
  %v3201 = vpow.pop %v3200
  %v3202 = vmul.f32 %v3167, 1.442695
  %v3203 = vpow.pop %v3202
  %v3204 = vmul.f32 %v3168, 1.442695
  %v3205 = vpow.pop %v3204
  %v3206 = vmul.f32 %v3169, 1.442695
  %v3207 = vpow.pop %v3206
  %v3208 = vmul.f32 %v3170, 1.442695
  %v3209 = vpow.pop %v3208
  %v3210 = vmul.f32 %v3171, 1.442695
  %v3211 = vpow.pop %v3210
  %v3212 = vmul.f32 %v3172, 1.442695
  %v3213 = vpow.pop %v3212
  %v3214 = vmul.f32 %v3173, 1.442695
  %v3215 = vpow.pop %v3214
  %v3216 = vmul.f32 %v3174, 1.442695
  %v3217 = vpow.pop %v3216
  %v3218 = vmul.f32 %v3175, 1.442695
  %v3219 = vpow.pop %v3218
  %v3220 = vmul.f32 %v3176, 1.442695
  %v3221 = vpow.pop %v3220
  %v3222 = vmul.f32 %v3177, 1.442695
  %v3223 = vpow.pop %v3222
  %v3224 = vmul.f32 %v3178, 1.442695
  %v3225 = vpow.pop %v3224
  %v3226 = vmul.f32 %v3179, 1.442695
  %v3227 = vpow.pop %v3226
  %v3228 = vmul.f32 %v3180, 1.442695
  %v3229 = vpow.pop %v3228
  %v3230 = vmul.f32 %v3181, 1.442695
  %v3231 = vpow.pop %v3230
  %v3232 = vmul.f32 %v3182, 1.442695
  %v3233 = vpow.pop %v3232
  %v3234 = vmul.f32 %v3183, 1.442695
  %v3235 = vpow.pop %v3234
  %v3236 = vmul.f32 %v3184, 1.442695
  %v3237 = vpow.pop %v3236
  %v3238 = vmul.f32 %v3185, 1.442695
  %v3239 = vpow.pop %v3238
  %v3240 = vmul.f32 %v3186, 1.442695
  %v3241 = vpow.pop %v3240
  %v3242 = vmul.f32 %v3187, 1.442695
  %v3243 = vpow.pop %v3242
  %v3244 = vmul.f32 %v3188, 1.442695
  %v3245 = vpow.pop %v3244
  %v3246 = vmul.f32 %v3189, 1.442695
  %v3247 = vpow.pop %v3246
  %v3248 = vmul.f32 %v3190, 1.442695
  %v3249 = vpow.pop %v3248
  %v3250 = vmul.f32 %v3191, 1.442695
  %v3251 = vpow.pop %v3250
  %v3252 = vmul.f32 %v3192, 1.442695
  %v3253 = vpow.pop %v3252
  %v3254 = vmul.f32 %v3193, 1.442695
  %v3255 = vpow.pop %v3254
  %v3256 = vmul.f32 %v3194, 1.442695
  %v3257 = vpow.pop %v3256
  %v3258 = vmul.f32 %v3195, 1.442695
  %v3259 = vpow.pop %v3258
  %v3260 = vsel %vm223, %v3197, 0.0
  %v3261 = vsel %vm223, %v3199, 0.0
  %v3262 = vadd.f32 %v3260, %v3261
  %v3263 = vrot.slane %v3262, 4
  %v3264 = vadd.f32 %v3262, %v3263
  %v3265 = vrot.slane %v3264, 2
  %v3266 = vadd.f32 %v3264, %v3265
  %v3267 = vrot.slane %v3266, 1
  %v3268 = vadd.f32 %v3266, %v3267
  %v3269 = vsel %vm223, %v3201, 0.0
  %v3270 = vsel %vm223, %v3203, 0.0
  %v3271 = vadd.f32 %v3269, %v3270
  %v3272 = vrot.slane %v3271, 4
  %v3273 = vadd.f32 %v3271, %v3272
  %v3274 = vrot.slane %v3273, 2
  %v3275 = vadd.f32 %v3273, %v3274
  %v3276 = vrot.slane %v3275, 1
  %v3277 = vadd.f32 %v3275, %v3276
  %v3278 = vsel %vm223, %v3205, 0.0
  %v3279 = vsel %vm223, %v3207, 0.0
  %v3280 = vadd.f32 %v3278, %v3279
  %v3281 = vrot.slane %v3280, 4
  %v3282 = vadd.f32 %v3280, %v3281
  %v3283 = vrot.slane %v3282, 2
  %v3284 = vadd.f32 %v3282, %v3283
  %v3285 = vrot.slane %v3284, 1
  %v3286 = vadd.f32 %v3284, %v3285
  %v3287 = vsel %vm223, %v3209, 0.0
  %v3288 = vsel %vm223, %v3211, 0.0
  %v3289 = vadd.f32 %v3287, %v3288
  %v3290 = vrot.slane %v3289, 4
  %v3291 = vadd.f32 %v3289, %v3290
  %v3292 = vrot.slane %v3291, 2
  %v3293 = vadd.f32 %v3291, %v3292
  %v3294 = vrot.slane %v3293, 1
  %v3295 = vadd.f32 %v3293, %v3294
  %v3296 = vsel %vm223, %v3213, 0.0
  %v3297 = vsel %vm223, %v3215, 0.0
  %v3298 = vadd.f32 %v3296, %v3297
  %v3299 = vrot.slane %v3298, 4
  %v3300 = vadd.f32 %v3298, %v3299
  %v3301 = vrot.slane %v3300, 2
  %v3302 = vadd.f32 %v3300, %v3301
  %v3303 = vrot.slane %v3302, 1
  %v3304 = vadd.f32 %v3302, %v3303
  %v3305 = vsel %vm223, %v3217, 0.0
  %v3306 = vsel %vm223, %v3219, 0.0
  %v3307 = vadd.f32 %v3305, %v3306
  %v3308 = vrot.slane %v3307, 4
  %v3309 = vadd.f32 %v3307, %v3308
  %v3310 = vrot.slane %v3309, 2
  %v3311 = vadd.f32 %v3309, %v3310
  %v3312 = vrot.slane %v3311, 1
  %v3313 = vadd.f32 %v3311, %v3312
  %v3314 = vsel %vm223, %v3221, 0.0
  %v3315 = vsel %vm223, %v3223, 0.0
  %v3316 = vadd.f32 %v3314, %v3315
  %v3317 = vrot.slane %v3316, 4
  %v3318 = vadd.f32 %v3316, %v3317
  %v3319 = vrot.slane %v3318, 2
  %v3320 = vadd.f32 %v3318, %v3319
  %v3321 = vrot.slane %v3320, 1
  %v3322 = vadd.f32 %v3320, %v3321
  %v3323 = vsel %vm223, %v3225, 0.0
  %v3324 = vsel %vm223, %v3227, 0.0
  %v3325 = vadd.f32 %v3323, %v3324
  %v3326 = vrot.slane %v3325, 4
  %v3327 = vadd.f32 %v3325, %v3326
  %v3328 = vrot.slane %v3327, 2
  %v3329 = vadd.f32 %v3327, %v3328
  %v3330 = vrot.slane %v3329, 1
  %v3331 = vadd.f32 %v3329, %v3330
  %v3332 = vsel %vm223, %v3229, 0.0
  %v3333 = vsel %vm223, %v3231, 0.0
  %v3334 = vadd.f32 %v3332, %v3333
  %v3335 = vrot.slane %v3334, 4
  %v3336 = vadd.f32 %v3334, %v3335
  %v3337 = vrot.slane %v3336, 2
  %v3338 = vadd.f32 %v3336, %v3337
  %v3339 = vrot.slane %v3338, 1
  %v3340 = vadd.f32 %v3338, %v3339
  %v3341 = vsel %vm223, %v3233, 0.0
  %v3342 = vsel %vm223, %v3235, 0.0
  %v3343 = vadd.f32 %v3341, %v3342
  %v3344 = vrot.slane %v3343, 4
  %v3345 = vadd.f32 %v3343, %v3344
  %v3346 = vrot.slane %v3345, 2
  %v3347 = vadd.f32 %v3345, %v3346
  %v3348 = vrot.slane %v3347, 1
  %v3349 = vadd.f32 %v3347, %v3348
  %v3350 = vsel %vm223, %v3237, 0.0
  %v3351 = vsel %vm223, %v3239, 0.0
  %v3352 = vadd.f32 %v3350, %v3351
  %v3353 = vrot.slane %v3352, 4
  %v3354 = vadd.f32 %v3352, %v3353
  %v3355 = vrot.slane %v3354, 2
  %v3356 = vadd.f32 %v3354, %v3355
  %v3357 = vrot.slane %v3356, 1
  %v3358 = vadd.f32 %v3356, %v3357
  %v3359 = vsel %vm223, %v3241, 0.0
  %v3360 = vsel %vm223, %v3243, 0.0
  %v3361 = vadd.f32 %v3359, %v3360
  %v3362 = vrot.slane %v3361, 4
  %v3363 = vadd.f32 %v3361, %v3362
  %v3364 = vrot.slane %v3363, 2
  %v3365 = vadd.f32 %v3363, %v3364
  %v3366 = vrot.slane %v3365, 1
  %v3367 = vadd.f32 %v3365, %v3366
  %v3368 = vsel %vm223, %v3245, 0.0
  %v3369 = vsel %vm223, %v3247, 0.0
  %v3370 = vadd.f32 %v3368, %v3369
  %v3371 = vrot.slane %v3370, 4
  %v3372 = vadd.f32 %v3370, %v3371
  %v3373 = vrot.slane %v3372, 2
  %v3374 = vadd.f32 %v3372, %v3373
  %v3375 = vrot.slane %v3374, 1
  %v3376 = vadd.f32 %v3374, %v3375
  %v3377 = vsel %vm223, %v3249, 0.0
  %v3378 = vsel %vm223, %v3251, 0.0
  %v3379 = vadd.f32 %v3377, %v3378
  %v3380 = vrot.slane %v3379, 4
  %v3381 = vadd.f32 %v3379, %v3380
  %v3382 = vrot.slane %v3381, 2
  %v3383 = vadd.f32 %v3381, %v3382
  %v3384 = vrot.slane %v3383, 1
  %v3385 = vadd.f32 %v3383, %v3384
  %v3386 = vsel %vm223, %v3253, 0.0
  %v3387 = vsel %vm223, %v3255, 0.0
  %v3388 = vadd.f32 %v3386, %v3387
  %v3389 = vrot.slane %v3388, 4
  %v3390 = vadd.f32 %v3388, %v3389
  %v3391 = vrot.slane %v3390, 2
  %v3392 = vadd.f32 %v3390, %v3391
  %v3393 = vrot.slane %v3392, 1
  %v3394 = vadd.f32 %v3392, %v3393
  %v3395 = vsel %vm223, %v3257, 0.0
  %v3396 = vsel %vm223, %v3259, 0.0
  %v3397 = vadd.f32 %v3395, %v3396
  %v3398 = vrot.slane %v3397, 4
  %v3399 = vadd.f32 %v3397, %v3398
  %v3400 = vrot.slane %v3399, 2
  %v3401 = vadd.f32 %v3399, %v3400
  %v3402 = vrot.slane %v3401, 1
  %v3403 = vadd.f32 %v3401, %v3402
  %v3404 = vrcp.pop %v3268
  %v3405 = vrcp.pop %v3277
  %v3406 = vrcp.pop %v3286
  %v3407 = vrcp.pop %v3295
  %v3408 = vrcp.pop %v3304
  %v3409 = vrcp.pop %v3313
  %v3410 = vrcp.pop %v3322
  %v3411 = vrcp.pop %v3331
  %v3412 = vrcp.pop %v3340
  %v3413 = vrcp.pop %v3349
  %v3414 = vrcp.pop %v3358
  %v3415 = vrcp.pop %v3367
  %v3416 = vrcp.pop %v3376
  %v3417 = vrcp.pop %v3385
  %v3418 = vrcp.pop %v3394
  %v3419 = vrcp.pop %v3403
  %v3420 = vmul.f32 %v3197, %v3404
  %v3421 = vmul.f32 %v3199, %v3404
  %v3422 = vmul.f32 %v3201, %v3405
  %v3423 = vmul.f32 %v3203, %v3405
  %v3424 = vmul.f32 %v3205, %v3406
  %v3425 = vmul.f32 %v3207, %v3406
  %v3426 = vmul.f32 %v3209, %v3407
  %v3427 = vmul.f32 %v3211, %v3407
  %v3428 = vmul.f32 %v3213, %v3408
  %v3429 = vmul.f32 %v3215, %v3408
  %v3430 = vmul.f32 %v3217, %v3409
  %v3431 = vmul.f32 %v3219, %v3409
  %v3432 = vmul.f32 %v3221, %v3410
  %v3433 = vmul.f32 %v3223, %v3410
  %v3434 = vmul.f32 %v3225, %v3411
  %v3435 = vmul.f32 %v3227, %v3411
  %v3436 = vmul.f32 %v3229, %v3412
  %v3437 = vmul.f32 %v3231, %v3412
  %v3438 = vmul.f32 %v3233, %v3413
  %v3439 = vmul.f32 %v3235, %v3413
  %v3440 = vmul.f32 %v3237, %v3414
  %v3441 = vmul.f32 %v3239, %v3414
  %v3442 = vmul.f32 %v3241, %v3415
  %v3443 = vmul.f32 %v3243, %v3415
  %v3444 = vmul.f32 %v3245, %v3416
  %v3445 = vmul.f32 %v3247, %v3416
  %v3446 = vmul.f32 %v3249, %v3417
  %v3447 = vmul.f32 %v3251, %v3417
  %v3448 = vmul.f32 %v3253, %v3418
  %v3449 = vmul.f32 %v3255, %v3418
  %v3450 = vmul.f32 %v3257, %v3419
  %v3451 = vmul.f32 %v3259, %v3419
  %v3452 = vld [vmem:[%s9] sm:$0xff]
  %v3453 = vld [vmem:[%s9 + $0x8] sm:$0xff]
  %v3454 = vld [vmem:[%s9 + $0x10] sm:$0xff]
  %v3455 = vld [vmem:[%s9 + $0x18] sm:$0xff]
  %v3456 = vld [vmem:[%s9 + $0x20] sm:$0xff]
  %v3457 = vld [vmem:[%s9 + $0x28] sm:$0xff]
  %v3458 = vld [vmem:[%s9 + $0x30] sm:$0xff]
  %v3459 = vld [vmem:[%s9 + $0x38] sm:$0xff]
  %v3460 = vpack.c.bf16 %v3421, %v3420
  %v3461 = vpack.c.bf16 %v3423, %v3422
  %v3462 = vpack.c.bf16 %v3425, %v3424
  %v3463 = vpack.c.bf16 %v3427, %v3426
  %v3464 = vpack.c.bf16 %v3429, %v3428
  %v3465 = vpack.c.bf16 %v3431, %v3430
  %v3466 = vpack.c.bf16 %v3433, %v3432
  %v3467 = vpack.c.bf16 %v3435, %v3434
  %v3468 = vpack.c.bf16 %v3437, %v3436
  %v3469 = vpack.c.bf16 %v3439, %v3438
  %v3470 = vpack.c.bf16 %v3441, %v3440
  %v3471 = vpack.c.bf16 %v3443, %v3442
  %v3472 = vpack.c.bf16 %v3445, %v3444
  %v3473 = vpack.c.bf16 %v3447, %v3446
  %v3474 = vpack.c.bf16 %v3449, %v3448
  %v3475 = vpack.c.bf16 %v3451, %v3450
  %v3484 = vunpack.c.l.b16 %v3452
  %v3485 = vunpack.c.h.b16 %v3452
  %v3486 = vunpack.c.l.b16 %v3453
  %v3487 = vunpack.c.h.b16 %v3453
  %v3488 = vunpack.c.l.b16 %v3454
  %v3489 = vunpack.c.h.b16 %v3454
  %v3490 = vunpack.c.l.b16 %v3455
  %v3491 = vunpack.c.h.b16 %v3455
  %v3492 = vunpack.c.l.b16 %v3456
  %v3493 = vunpack.c.h.b16 %v3456
  %v3494 = vunpack.c.l.b16 %v3457
  %v3495 = vunpack.c.h.b16 %v3457
  %v3496 = vunpack.c.l.b16 %v3458
  %v3497 = vunpack.c.h.b16 %v3458
  %v3498 = vunpack.c.l.b16 %v3459
  %v3499 = vunpack.c.h.b16 %v3459
  %v3500 = vpack.c.b16 %v3486, %v3484
  %v3501 = vpack.c.b16 %v3487, %v3485
  %v3502 = vpack.c.b16 %v3490, %v3488
  %v3503 = vpack.c.b16 %v3491, %v3489
  %v3504 = vpack.c.b16 %v3494, %v3492
  %v3505 = vpack.c.b16 %v3495, %v3493
  %v3506 = vpack.c.b16 %v3498, %v3496
  %v3507 = vpack.c.b16 %v3499, %v3497
  %v3517 = vsel %vm223, %v3460, 0
  %v3520 = vsel %vm223, %v3461, 0
  %v3523 = vsel %vm223, %v3462, 0
  %v3526 = vsel %vm223, %v3463, 0
  %v3529 = vsel %vm223, %v3464, 0
  %v3532 = vsel %vm223, %v3465, 0
  %v3535 = vsel %vm223, %v3466, 0
  %v3538 = vsel %vm223, %v3467, 0
  %v3541 = vsel %vm223, %v3468, 0
  %v3544 = vsel %vm223, %v3469, 0
  %v3547 = vsel %vm223, %v3470, 0
  %v3550 = vsel %vm223, %v3471, 0
  %v3553 = vsel %vm223, %v3472, 0
  %v3556 = vsel %vm223, %v3473, 0
  %v3559 = vsel %vm223, %v3474, 0
  %v3562 = vsel %vm223, %v3475, 0
  %3564 = vmatpush.bf16.msra.mxu0 0
  %3565 = vmatpush.bf16.msra.mxu0 0
  %3566 = vmatpush.bf16.msra.mxu0 0
  %3567 = vmatpush.bf16.msra.mxu0 0
  %3568 = vmatpush.bf16.msra.mxu0 %v3506
  %3569 = vmatpush.bf16.msra.mxu0 %v3504
  %3570 = vmatpush.bf16.msra.mxu0 %v3502
  %3571 = vmatpush.bf16.msra.mxu0 %v3500
  %3572 = vmatmul.bf16.gmra.mxu0 %v3517
  %v3573 = vpop.f32.mrf.mxu0
  %v3574 = vadd.f32 0.0, %v3573
  %v3575 = vpop.f32.mrf.mxu0
  %v3576 = vadd.f32 0.0, %v3575
  %3577 = vmatmul.bf16.gmra.mxu0 %v3520
  %v3578 = vpop.f32.mrf.mxu0
  %v3579 = vadd.f32 0.0, %v3578
  %v3580 = vpop.f32.mrf.mxu0
  %v3581 = vadd.f32 0.0, %v3580
  %3582 = vmatmul.bf16.gmra.mxu0 %v3523
  %v3583 = vpop.f32.mrf.mxu0
  %v3584 = vadd.f32 0.0, %v3583
  %v3585 = vpop.f32.mrf.mxu0
  %v3586 = vadd.f32 0.0, %v3585
  %3587 = vmatmul.bf16.gmra.mxu0 %v3526
  %v3588 = vpop.f32.mrf.mxu0
  %v3589 = vadd.f32 0.0, %v3588
  %v3590 = vpop.f32.mrf.mxu0
  %v3591 = vadd.f32 0.0, %v3590
  %3592 = vmatmul.bf16.gmra.mxu0 %v3529
  %v3593 = vpop.f32.mrf.mxu0
  %v3594 = vadd.f32 0.0, %v3593
  %v3595 = vpop.f32.mrf.mxu0
  %v3596 = vadd.f32 0.0, %v3595
  %3597 = vmatmul.bf16.gmra.mxu0 %v3532
  %v3598 = vpop.f32.mrf.mxu0
  %v3599 = vadd.f32 0.0, %v3598
  %v3600 = vpop.f32.mrf.mxu0
  %v3601 = vadd.f32 0.0, %v3600
  %3602 = vmatmul.bf16.gmra.mxu0 %v3535
  %v3603 = vpop.f32.mrf.mxu0
  %v3604 = vadd.f32 0.0, %v3603
  %v3605 = vpop.f32.mrf.mxu0
  %v3606 = vadd.f32 0.0, %v3605
  %3607 = vmatmul.bf16.gmra.mxu0 %v3538
  %v3608 = vpop.f32.mrf.mxu0
  %v3609 = vadd.f32 0.0, %v3608
  %v3610 = vpop.f32.mrf.mxu0
  %v3611 = vadd.f32 0.0, %v3610
  %3612 = vmatmul.bf16.gmra.mxu0 %v3541
  %v3613 = vpop.f32.mrf.mxu0
  %v3614 = vadd.f32 0.0, %v3613
  %v3615 = vpop.f32.mrf.mxu0
  %v3616 = vadd.f32 0.0, %v3615
  %3617 = vmatmul.bf16.gmra.mxu0 %v3544
  %v3618 = vpop.f32.mrf.mxu0
  %v3619 = vadd.f32 0.0, %v3618
  %v3620 = vpop.f32.mrf.mxu0
  %v3621 = vadd.f32 0.0, %v3620
  %3622 = vmatmul.bf16.gmra.mxu0 %v3547
  %v3623 = vpop.f32.mrf.mxu0
  %v3624 = vadd.f32 0.0, %v3623
  %v3625 = vpop.f32.mrf.mxu0
  %v3626 = vadd.f32 0.0, %v3625
  %3627 = vmatmul.bf16.gmra.mxu0 %v3550
  %v3628 = vpop.f32.mrf.mxu0
  %v3629 = vadd.f32 0.0, %v3628
  %v3630 = vpop.f32.mrf.mxu0
  %v3631 = vadd.f32 0.0, %v3630
  %3632 = vmatmul.bf16.gmra.mxu0 %v3553
  %v3633 = vpop.f32.mrf.mxu0
  %v3634 = vadd.f32 0.0, %v3633
  %v3635 = vpop.f32.mrf.mxu0
  %v3636 = vadd.f32 0.0, %v3635
  %3637 = vmatmul.bf16.gmra.mxu0 %v3556
  %v3638 = vpop.f32.mrf.mxu0
  %v3639 = vadd.f32 0.0, %v3638
  %v3640 = vpop.f32.mrf.mxu0
  %v3641 = vadd.f32 0.0, %v3640
  %3642 = vmatmul.bf16.gmra.mxu0 %v3559
  %v3643 = vpop.f32.mrf.mxu0
  %v3644 = vadd.f32 0.0, %v3643
  %v3645 = vpop.f32.mrf.mxu0
  %v3646 = vadd.f32 0.0, %v3645
  %3647 = vmatmul.bf16.gmra.mxu0 %v3562
  %v3648 = vpop.f32.mrf.mxu0
  %v3649 = vadd.f32 0.0, %v3648
  %v3650 = vpop.f32.mrf.mxu0
  %v3651 = vadd.f32 0.0, %v3650
  %3652 = vdwg.mxu0
  %3653 = vmatpush.bf16.msra.mxu0 0
  %3654 = vmatpush.bf16.msra.mxu0 0
  %3655 = vmatpush.bf16.msra.mxu0 0
  %3656 = vmatpush.bf16.msra.mxu0 0
  %3657 = vmatpush.bf16.msra.mxu0 %v3507
  %3658 = vmatpush.bf16.msra.mxu0 %v3505
  %3659 = vmatpush.bf16.msra.mxu0 %v3503
  %3660 = vmatpush.bf16.msra.mxu0 %v3501
  %3661 = vmatmul.bf16.gmra.mxu0 %v3517
  %v3662 = vpop.f32.mrf.mxu0
  %v3663 = vadd.f32 0.0, %v3662
  %v3664 = vpop.f32.mrf.mxu0
  %v3665 = vadd.f32 0.0, %v3664
  %3666 = vmatmul.bf16.gmra.mxu0 %v3520
  %v3667 = vpop.f32.mrf.mxu0
  %v3668 = vadd.f32 0.0, %v3667
  %v3669 = vpop.f32.mrf.mxu0
  %v3670 = vadd.f32 0.0, %v3669
  %3671 = vmatmul.bf16.gmra.mxu0 %v3523
  %v3672 = vpop.f32.mrf.mxu0
  %v3673 = vadd.f32 0.0, %v3672
  %v3674 = vpop.f32.mrf.mxu0
  %v3675 = vadd.f32 0.0, %v3674
  %3676 = vmatmul.bf16.gmra.mxu0 %v3526
  %v3677 = vpop.f32.mrf.mxu0
  %v3678 = vadd.f32 0.0, %v3677
  %v3679 = vpop.f32.mrf.mxu0
  %v3680 = vadd.f32 0.0, %v3679
  %3681 = vmatmul.bf16.gmra.mxu0 %v3529
  %v3682 = vpop.f32.mrf.mxu0
  %v3683 = vadd.f32 0.0, %v3682
  %v3684 = vpop.f32.mrf.mxu0
  %v3685 = vadd.f32 0.0, %v3684
  %3686 = vmatmul.bf16.gmra.mxu0 %v3532
  %v3687 = vpop.f32.mrf.mxu0
  %v3688 = vadd.f32 0.0, %v3687
  %v3689 = vpop.f32.mrf.mxu0
  %v3690 = vadd.f32 0.0, %v3689
  %3691 = vmatmul.bf16.gmra.mxu0 %v3535
  %v3692 = vpop.f32.mrf.mxu0
  %v3693 = vadd.f32 0.0, %v3692
  %v3694 = vpop.f32.mrf.mxu0
  %v3695 = vadd.f32 0.0, %v3694
  %3696 = vmatmul.bf16.gmra.mxu0 %v3538
  %v3697 = vpop.f32.mrf.mxu0
  %v3698 = vadd.f32 0.0, %v3697
  %v3699 = vpop.f32.mrf.mxu0
  %v3700 = vadd.f32 0.0, %v3699
  %3701 = vmatmul.bf16.gmra.mxu0 %v3541
  %v3702 = vpop.f32.mrf.mxu0
  %v3703 = vadd.f32 0.0, %v3702
  %v3704 = vpop.f32.mrf.mxu0
  %v3705 = vadd.f32 0.0, %v3704
  %3706 = vmatmul.bf16.gmra.mxu0 %v3544
  %v3707 = vpop.f32.mrf.mxu0
  %v3708 = vadd.f32 0.0, %v3707
  %v3709 = vpop.f32.mrf.mxu0
  %v3710 = vadd.f32 0.0, %v3709
  %3711 = vmatmul.bf16.gmra.mxu0 %v3547
  %v3712 = vpop.f32.mrf.mxu0
  %v3713 = vadd.f32 0.0, %v3712
  %v3714 = vpop.f32.mrf.mxu0
  %v3715 = vadd.f32 0.0, %v3714
  %3716 = vmatmul.bf16.gmra.mxu0 %v3550
  %v3717 = vpop.f32.mrf.mxu0
  %v3718 = vadd.f32 0.0, %v3717
  %v3719 = vpop.f32.mrf.mxu0
  %v3720 = vadd.f32 0.0, %v3719
  %3721 = vmatmul.bf16.gmra.mxu0 %v3553
  %v3722 = vpop.f32.mrf.mxu0
  %v3723 = vadd.f32 0.0, %v3722
  %v3724 = vpop.f32.mrf.mxu0
  %v3725 = vadd.f32 0.0, %v3724
  %3726 = vmatmul.bf16.gmra.mxu0 %v3556
  %v3727 = vpop.f32.mrf.mxu0
  %v3728 = vadd.f32 0.0, %v3727
  %v3729 = vpop.f32.mrf.mxu0
  %v3730 = vadd.f32 0.0, %v3729
  %3731 = vmatmul.bf16.gmra.mxu0 %v3559
  %v3732 = vpop.f32.mrf.mxu0
  %v3733 = vadd.f32 0.0, %v3732
  %v3734 = vpop.f32.mrf.mxu0
  %v3735 = vadd.f32 0.0, %v3734
  %3736 = vmatmul.bf16.gmra.mxu0 %v3562
  %v3737 = vpop.f32.mrf.mxu0
  %v3738 = vadd.f32 0.0, %v3737
  %v3739 = vpop.f32.mrf.mxu0
  %v3740 = vadd.f32 0.0, %v3739
  %3741 = vdwg.mxu0
  %v3742 = vpack.c.bf16 %v3663, %v3574
  %v3743 = vpack.c.bf16 %v3665, %v3576
  %v3744 = vpack.c.bf16 %v3668, %v3579
  %v3745 = vpack.c.bf16 %v3670, %v3581
  %v3746 = vpack.c.bf16 %v3673, %v3584
  %v3747 = vpack.c.bf16 %v3675, %v3586
  %v3748 = vpack.c.bf16 %v3678, %v3589
  %v3749 = vpack.c.bf16 %v3680, %v3591
  %v3750 = vpack.c.bf16 %v3683, %v3594
  %v3751 = vpack.c.bf16 %v3685, %v3596
  %v3752 = vpack.c.bf16 %v3688, %v3599
  %v3753 = vpack.c.bf16 %v3690, %v3601
  %v3754 = vpack.c.bf16 %v3693, %v3604
  %v3755 = vpack.c.bf16 %v3695, %v3606
  %v3756 = vpack.c.bf16 %v3698, %v3609
  %v3757 = vpack.c.bf16 %v3700, %v3611
  %v3758 = vpack.c.bf16 %v3703, %v3614
  %v3759 = vpack.c.bf16 %v3705, %v3616
  %v3760 = vpack.c.bf16 %v3708, %v3619
  %v3761 = vpack.c.bf16 %v3710, %v3621
  %v3762 = vpack.c.bf16 %v3713, %v3624
  %v3763 = vpack.c.bf16 %v3715, %v3626
  %v3764 = vpack.c.bf16 %v3718, %v3629
  %v3765 = vpack.c.bf16 %v3720, %v3631
  %v3766 = vpack.c.bf16 %v3723, %v3634
  %v3767 = vpack.c.bf16 %v3725, %v3636
  %v3768 = vpack.c.bf16 %v3728, %v3639
  %v3769 = vpack.c.bf16 %v3730, %v3641
  %v3770 = vpack.c.bf16 %v3733, %v3644
  %v3771 = vpack.c.bf16 %v3735, %v3646
  %v3772 = vpack.c.bf16 %v3738, %v3649
  %v3773 = vpack.c.bf16 %v3740, %v3651
  %v3774 = vunpack.c.l.bf16 %v3742
  %v3775 = vunpack.c.h.bf16 %v3742
  %v3776 = vunpack.c.l.bf16 %v3743
  %v3777 = vunpack.c.h.bf16 %v3743
  %v3778 = vunpack.c.l.bf16 %v3744
  %v3779 = vunpack.c.h.bf16 %v3744
  %v3780 = vunpack.c.l.bf16 %v3745
  %v3781 = vunpack.c.h.bf16 %v3745
  %v3782 = vunpack.c.l.bf16 %v3746
  %v3783 = vunpack.c.h.bf16 %v3746
  %v3784 = vunpack.c.l.bf16 %v3747
  %v3785 = vunpack.c.h.bf16 %v3747
  %v3786 = vunpack.c.l.bf16 %v3748
  %v3787 = vunpack.c.h.bf16 %v3748
  %v3788 = vunpack.c.l.bf16 %v3749
  %v3789 = vunpack.c.h.bf16 %v3749
  %v3790 = vunpack.c.l.bf16 %v3750
  %v3791 = vunpack.c.h.bf16 %v3750
  %v3792 = vunpack.c.l.bf16 %v3751
  %v3793 = vunpack.c.h.bf16 %v3751
  %v3794 = vunpack.c.l.bf16 %v3752
  %v3795 = vunpack.c.h.bf16 %v3752
  %v3796 = vunpack.c.l.bf16 %v3753
  %v3797 = vunpack.c.h.bf16 %v3753
  %v3798 = vunpack.c.l.bf16 %v3754
  %v3799 = vunpack.c.h.bf16 %v3754
  %v3800 = vunpack.c.l.bf16 %v3755
  %v3801 = vunpack.c.h.bf16 %v3755
  %v3802 = vunpack.c.l.bf16 %v3756
  %v3803 = vunpack.c.h.bf16 %v3756
  %v3804 = vunpack.c.l.bf16 %v3757
  %v3805 = vunpack.c.h.bf16 %v3757
  %v3806 = vunpack.c.l.bf16 %v3758
  %v3807 = vunpack.c.h.bf16 %v3758
  %v3808 = vunpack.c.l.bf16 %v3759
  %v3809 = vunpack.c.h.bf16 %v3759
  %v3810 = vunpack.c.l.bf16 %v3760
  %v3811 = vunpack.c.h.bf16 %v3760
  %v3812 = vunpack.c.l.bf16 %v3761
  %v3813 = vunpack.c.h.bf16 %v3761
  %v3814 = vunpack.c.l.bf16 %v3762
  %v3815 = vunpack.c.h.bf16 %v3762
  %v3816 = vunpack.c.l.bf16 %v3763
  %v3817 = vunpack.c.h.bf16 %v3763
  %v3818 = vunpack.c.l.bf16 %v3764
  %v3819 = vunpack.c.h.bf16 %v3764
  %v3820 = vunpack.c.l.bf16 %v3765
  %v3821 = vunpack.c.h.bf16 %v3765
  %v3822 = vunpack.c.l.bf16 %v3766
  %v3823 = vunpack.c.h.bf16 %v3766
  %v3824 = vunpack.c.l.bf16 %v3767
  %v3825 = vunpack.c.h.bf16 %v3767
  %v3826 = vunpack.c.l.bf16 %v3768
  %v3827 = vunpack.c.h.bf16 %v3768
  %v3828 = vunpack.c.l.bf16 %v3769
  %v3829 = vunpack.c.h.bf16 %v3769
  %v3830 = vunpack.c.l.bf16 %v3770
  %v3831 = vunpack.c.h.bf16 %v3770
  %v3832 = vunpack.c.l.bf16 %v3771
  %v3833 = vunpack.c.h.bf16 %v3771
  %v3834 = vunpack.c.l.bf16 %v3772
  %v3835 = vunpack.c.h.bf16 %v3772
  %v3836 = vunpack.c.l.bf16 %v3773
  %v3837 = vunpack.c.h.bf16 %v3773
  %v3838 = vmul.f32 %v3774, %v2160
  %v3839 = vmul.f32 %v3775, %v2188
  %v3840 = vmul.f32 %v3776, %v2162
  %v3841 = vmul.f32 %v3777, %v2190
  %v3842 = vmul.f32 %v3778, %v2160
  %v3843 = vmul.f32 %v3779, %v2188
  %v3844 = vmul.f32 %v3780, %v2162
  %v3845 = vmul.f32 %v3781, %v2190
  %v3846 = vmul.f32 %v3782, %v2160
  %v3847 = vmul.f32 %v3783, %v2188
  %v3848 = vmul.f32 %v3784, %v2162
  %v3849 = vmul.f32 %v3785, %v2190
  %v3850 = vmul.f32 %v3786, %v2160
  %v3851 = vmul.f32 %v3787, %v2188
  %v3852 = vmul.f32 %v3788, %v2162
  %v3853 = vmul.f32 %v3789, %v2190
  %v3854 = vmul.f32 %v3790, %v2160
  %v3855 = vmul.f32 %v3791, %v2188
  %v3856 = vmul.f32 %v3792, %v2162
  %v3857 = vmul.f32 %v3793, %v2190
  %v3858 = vmul.f32 %v3794, %v2160
  %v3859 = vmul.f32 %v3795, %v2188
  %v3860 = vmul.f32 %v3796, %v2162
  %v3861 = vmul.f32 %v3797, %v2190
  %v3862 = vmul.f32 %v3798, %v2160
  %v3863 = vmul.f32 %v3799, %v2188
  %v3864 = vmul.f32 %v3800, %v2162
  %v3865 = vmul.f32 %v3801, %v2190
  %v3866 = vmul.f32 %v3802, %v2160
  %v3867 = vmul.f32 %v3803, %v2188
  %v3868 = vmul.f32 %v3804, %v2162
  %v3869 = vmul.f32 %v3805, %v2190
  %v3870 = vmul.f32 %v3806, %v2160
  %v3871 = vmul.f32 %v3807, %v2188
  %v3872 = vmul.f32 %v3808, %v2162
  %v3873 = vmul.f32 %v3809, %v2190
  %v3874 = vmul.f32 %v3810, %v2160
  %v3875 = vmul.f32 %v3811, %v2188
  %v3876 = vmul.f32 %v3812, %v2162
  %v3877 = vmul.f32 %v3813, %v2190
  %v3878 = vmul.f32 %v3814, %v2160
  %v3879 = vmul.f32 %v3815, %v2188
  %v3880 = vmul.f32 %v3816, %v2162
  %v3881 = vmul.f32 %v3817, %v2190
  %v3882 = vmul.f32 %v3818, %v2160
  %v3883 = vmul.f32 %v3819, %v2188
  %v3884 = vmul.f32 %v3820, %v2162
  %v3885 = vmul.f32 %v3821, %v2190
  %v3886 = vmul.f32 %v3822, %v2160
  %v3887 = vmul.f32 %v3823, %v2188
  %v3888 = vmul.f32 %v3824, %v2162
  %v3889 = vmul.f32 %v3825, %v2190
  %v3890 = vmul.f32 %v3826, %v2160
  %v3891 = vmul.f32 %v3827, %v2188
  %v3892 = vmul.f32 %v3828, %v2162
  %v3893 = vmul.f32 %v3829, %v2190
  %v3894 = vmul.f32 %v3830, %v2160
  %v3895 = vmul.f32 %v3831, %v2188
  %v3896 = vmul.f32 %v3832, %v2162
  %v3897 = vmul.f32 %v3833, %v2190
  %v3898 = vmul.f32 %v3834, %v2160
  %v3899 = vmul.f32 %v3835, %v2188
  %v3900 = vmul.f32 %v3836, %v2162
  %v3901 = vmul.f32 %v3837, %v2190
  %v3902 = vadd.f32 %v3838, %v3840
  %v3903 = vrot.slane %v3902, 4
  %v3904 = vadd.f32 %v3902, %v3903
  %v3905 = vrot.slane %v3904, 2
  %v3906 = vadd.f32 %v3904, %v3905
  %v3907 = vrot.slane %v3906, 1
  %v3908 = vadd.f32 %v3906, %v3907
  %v3909 = vadd.f32 %v3839, %v3841
  %v3910 = vrot.slane %v3909, 4
  %v3911 = vadd.f32 %v3909, %v3910
  %v3912 = vrot.slane %v3911, 2
  %v3913 = vadd.f32 %v3911, %v3912
  %v3914 = vrot.slane %v3913, 1
  %v3915 = vadd.f32 %v3913, %v3914
  %v3916 = vadd.f32 %v3842, %v3844
  %v3917 = vrot.slane %v3916, 4
  %v3918 = vadd.f32 %v3916, %v3917
  %v3919 = vrot.slane %v3918, 2
  %v3920 = vadd.f32 %v3918, %v3919
  %v3921 = vrot.slane %v3920, 1
  %v3922 = vadd.f32 %v3920, %v3921
  %v3923 = vadd.f32 %v3843, %v3845
  %v3924 = vrot.slane %v3923, 4
  %v3925 = vadd.f32 %v3923, %v3924
  %v3926 = vrot.slane %v3925, 2
  %v3927 = vadd.f32 %v3925, %v3926
  %v3928 = vrot.slane %v3927, 1
  %v3929 = vadd.f32 %v3927, %v3928
  %v3930 = vadd.f32 %v3846, %v3848
  %v3931 = vrot.slane %v3930, 4
  %v3932 = vadd.f32 %v3930, %v3931
  %v3933 = vrot.slane %v3932, 2
  %v3934 = vadd.f32 %v3932, %v3933
  %v3935 = vrot.slane %v3934, 1
  %v3936 = vadd.f32 %v3934, %v3935
  %v3937 = vadd.f32 %v3847, %v3849
  %v3938 = vrot.slane %v3937, 4
  %v3939 = vadd.f32 %v3937, %v3938
  %v3940 = vrot.slane %v3939, 2
  %v3941 = vadd.f32 %v3939, %v3940
  %v3942 = vrot.slane %v3941, 1
  %v3943 = vadd.f32 %v3941, %v3942
  %v3944 = vadd.f32 %v3850, %v3852
  %v3945 = vrot.slane %v3944, 4
  %v3946 = vadd.f32 %v3944, %v3945
  %v3947 = vrot.slane %v3946, 2
  %v3948 = vadd.f32 %v3946, %v3947
  %v3949 = vrot.slane %v3948, 1
  %v3950 = vadd.f32 %v3948, %v3949
  %v3951 = vadd.f32 %v3851, %v3853
  %v3952 = vrot.slane %v3951, 4
  %v3953 = vadd.f32 %v3951, %v3952
  %v3954 = vrot.slane %v3953, 2
  %v3955 = vadd.f32 %v3953, %v3954
  %v3956 = vrot.slane %v3955, 1
  %v3957 = vadd.f32 %v3955, %v3956
  %v3958 = vadd.f32 %v3854, %v3856
  %v3959 = vrot.slane %v3958, 4
  %v3960 = vadd.f32 %v3958, %v3959
  %v3961 = vrot.slane %v3960, 2
  %v3962 = vadd.f32 %v3960, %v3961
  %v3963 = vrot.slane %v3962, 1
  %v3964 = vadd.f32 %v3962, %v3963
  %v3965 = vadd.f32 %v3855, %v3857
  %v3966 = vrot.slane %v3965, 4
  %v3967 = vadd.f32 %v3965, %v3966
  %v3968 = vrot.slane %v3967, 2
  %v3969 = vadd.f32 %v3967, %v3968
  %v3970 = vrot.slane %v3969, 1
  %v3971 = vadd.f32 %v3969, %v3970
  %v3972 = vadd.f32 %v3858, %v3860
  %v3973 = vrot.slane %v3972, 4
  %v3974 = vadd.f32 %v3972, %v3973
  %v3975 = vrot.slane %v3974, 2
  %v3976 = vadd.f32 %v3974, %v3975
  %v3977 = vrot.slane %v3976, 1
  %v3978 = vadd.f32 %v3976, %v3977
  %v3979 = vadd.f32 %v3859, %v3861
  %v3980 = vrot.slane %v3979, 4
  %v3981 = vadd.f32 %v3979, %v3980
  %v3982 = vrot.slane %v3981, 2
  %v3983 = vadd.f32 %v3981, %v3982
  %v3984 = vrot.slane %v3983, 1
  %v3985 = vadd.f32 %v3983, %v3984
  %v3986 = vadd.f32 %v3862, %v3864
  %v3987 = vrot.slane %v3986, 4
  %v3988 = vadd.f32 %v3986, %v3987
  %v3989 = vrot.slane %v3988, 2
  %v3990 = vadd.f32 %v3988, %v3989
  %v3991 = vrot.slane %v3990, 1
  %v3992 = vadd.f32 %v3990, %v3991
  %v3993 = vadd.f32 %v3863, %v3865
  %v3994 = vrot.slane %v3993, 4
  %v3995 = vadd.f32 %v3993, %v3994
  %v3996 = vrot.slane %v3995, 2
  %v3997 = vadd.f32 %v3995, %v3996
  %v3998 = vrot.slane %v3997, 1
  %v3999 = vadd.f32 %v3997, %v3998
  %v4000 = vadd.f32 %v3866, %v3868
  %v4001 = vrot.slane %v4000, 4
  %v4002 = vadd.f32 %v4000, %v4001
  %v4003 = vrot.slane %v4002, 2
  %v4004 = vadd.f32 %v4002, %v4003
  %v4005 = vrot.slane %v4004, 1
  %v4006 = vadd.f32 %v4004, %v4005
  %v4007 = vadd.f32 %v3867, %v3869
  %v4008 = vrot.slane %v4007, 4
  %v4009 = vadd.f32 %v4007, %v4008
  %v4010 = vrot.slane %v4009, 2
  %v4011 = vadd.f32 %v4009, %v4010
  %v4012 = vrot.slane %v4011, 1
  %v4013 = vadd.f32 %v4011, %v4012
  %v4014 = vadd.f32 %v3870, %v3872
  %v4015 = vrot.slane %v4014, 4
  %v4016 = vadd.f32 %v4014, %v4015
  %v4017 = vrot.slane %v4016, 2
  %v4018 = vadd.f32 %v4016, %v4017
  %v4019 = vrot.slane %v4018, 1
  %v4020 = vadd.f32 %v4018, %v4019
  %v4021 = vadd.f32 %v3871, %v3873
  %v4022 = vrot.slane %v4021, 4
  %v4023 = vadd.f32 %v4021, %v4022
  %v4024 = vrot.slane %v4023, 2
  %v4025 = vadd.f32 %v4023, %v4024
  %v4026 = vrot.slane %v4025, 1
  %v4027 = vadd.f32 %v4025, %v4026
  %v4028 = vadd.f32 %v3874, %v3876
  %v4029 = vrot.slane %v4028, 4
  %v4030 = vadd.f32 %v4028, %v4029
  %v4031 = vrot.slane %v4030, 2
  %v4032 = vadd.f32 %v4030, %v4031
  %v4033 = vrot.slane %v4032, 1
  %v4034 = vadd.f32 %v4032, %v4033
  %v4035 = vadd.f32 %v3875, %v3877
  %v4036 = vrot.slane %v4035, 4
  %v4037 = vadd.f32 %v4035, %v4036
  %v4038 = vrot.slane %v4037, 2
  %v4039 = vadd.f32 %v4037, %v4038
  %v4040 = vrot.slane %v4039, 1
  %v4041 = vadd.f32 %v4039, %v4040
  %v4042 = vadd.f32 %v3878, %v3880
  %v4043 = vrot.slane %v4042, 4
  %v4044 = vadd.f32 %v4042, %v4043
  %v4045 = vrot.slane %v4044, 2
  %v4046 = vadd.f32 %v4044, %v4045
  %v4047 = vrot.slane %v4046, 1
  %v4048 = vadd.f32 %v4046, %v4047
  %v4049 = vadd.f32 %v3879, %v3881
  %v4050 = vrot.slane %v4049, 4
  %v4051 = vadd.f32 %v4049, %v4050
  %v4052 = vrot.slane %v4051, 2
  %v4053 = vadd.f32 %v4051, %v4052
  %v4054 = vrot.slane %v4053, 1
  %v4055 = vadd.f32 %v4053, %v4054
  %v4056 = vadd.f32 %v3882, %v3884
  %v4057 = vrot.slane %v4056, 4
  %v4058 = vadd.f32 %v4056, %v4057
  %v4059 = vrot.slane %v4058, 2
  %v4060 = vadd.f32 %v4058, %v4059
  %v4061 = vrot.slane %v4060, 1
  %v4062 = vadd.f32 %v4060, %v4061
  %v4063 = vadd.f32 %v3883, %v3885
  %v4064 = vrot.slane %v4063, 4
  %v4065 = vadd.f32 %v4063, %v4064
  %v4066 = vrot.slane %v4065, 2
  %v4067 = vadd.f32 %v4065, %v4066
  %v4068 = vrot.slane %v4067, 1
  %v4069 = vadd.f32 %v4067, %v4068
  %v4070 = vadd.f32 %v3886, %v3888
  %v4071 = vrot.slane %v4070, 4
  %v4072 = vadd.f32 %v4070, %v4071
  %v4073 = vrot.slane %v4072, 2
  %v4074 = vadd.f32 %v4072, %v4073
  %v4075 = vrot.slane %v4074, 1
  %v4076 = vadd.f32 %v4074, %v4075
  %v4077 = vadd.f32 %v3887, %v3889
  %v4078 = vrot.slane %v4077, 4
  %v4079 = vadd.f32 %v4077, %v4078
  %v4080 = vrot.slane %v4079, 2
  %v4081 = vadd.f32 %v4079, %v4080
  %v4082 = vrot.slane %v4081, 1
  %v4083 = vadd.f32 %v4081, %v4082
  %v4084 = vadd.f32 %v3890, %v3892
  %v4085 = vrot.slane %v4084, 4
  %v4086 = vadd.f32 %v4084, %v4085
  %v4087 = vrot.slane %v4086, 2
  %v4088 = vadd.f32 %v4086, %v4087
  %v4089 = vrot.slane %v4088, 1
  %v4090 = vadd.f32 %v4088, %v4089
  %v4091 = vadd.f32 %v3891, %v3893
  %v4092 = vrot.slane %v4091, 4
  %v4093 = vadd.f32 %v4091, %v4092
  %v4094 = vrot.slane %v4093, 2
  %v4095 = vadd.f32 %v4093, %v4094
  %v4096 = vrot.slane %v4095, 1
  %v4097 = vadd.f32 %v4095, %v4096
  %v4098 = vadd.f32 %v3894, %v3896
  %v4099 = vrot.slane %v4098, 4
  %v4100 = vadd.f32 %v4098, %v4099
  %v4101 = vrot.slane %v4100, 2
  %v4102 = vadd.f32 %v4100, %v4101
  %v4103 = vrot.slane %v4102, 1
  %v4104 = vadd.f32 %v4102, %v4103
  %v4105 = vadd.f32 %v3895, %v3897
  %v4106 = vrot.slane %v4105, 4
  %v4107 = vadd.f32 %v4105, %v4106
  %v4108 = vrot.slane %v4107, 2
  %v4109 = vadd.f32 %v4107, %v4108
  %v4110 = vrot.slane %v4109, 1
  %v4111 = vadd.f32 %v4109, %v4110
  %v4112 = vadd.f32 %v3898, %v3900
  %v4113 = vrot.slane %v4112, 4
  %v4114 = vadd.f32 %v4112, %v4113
  %v4115 = vrot.slane %v4114, 2
  %v4116 = vadd.f32 %v4114, %v4115
  %v4117 = vrot.slane %v4116, 1
  %v4118 = vadd.f32 %v4116, %v4117
  %v4119 = vadd.f32 %v3899, %v3901
  %v4120 = vrot.slane %v4119, 4
  %v4121 = vadd.f32 %v4119, %v4120
  %v4122 = vrot.slane %v4121, 2
  %v4123 = vadd.f32 %v4121, %v4122
  %v4124 = vrot.slane %v4123, 1
  %v4125 = vadd.f32 %v4123, %v4124
  %v4126 = vld [vmem:[%s59] sm:$0x7]
  %v4127 = vpack.c.bf16 %v3908, %v3908
  %v4128 = vpack.c.bf16 %v3915, %v3915
  %v4129 = vpack.c.bf16 %v3922, %v3922
  %v4130 = vpack.c.bf16 %v3929, %v3929
  %v4131 = vpack.c.bf16 %v3936, %v3936
  %v4132 = vpack.c.bf16 %v3943, %v3943
  %v4133 = vpack.c.bf16 %v3950, %v3950
  %v4134 = vpack.c.bf16 %v3957, %v3957
  %v4135 = vpack.c.bf16 %v3964, %v3964
  %v4136 = vpack.c.bf16 %v3971, %v3971
  %v4137 = vpack.c.bf16 %v3978, %v3978
  %v4138 = vpack.c.bf16 %v3985, %v3985
  %v4139 = vpack.c.bf16 %v3992, %v3992
  %v4140 = vpack.c.bf16 %v3999, %v3999
  %v4141 = vpack.c.bf16 %v4006, %v4006
  %v4142 = vpack.c.bf16 %v4013, %v4013
  %v4143 = vpack.c.bf16 %v4020, %v4020
  %v4144 = vpack.c.bf16 %v4027, %v4027
  %v4145 = vpack.c.bf16 %v4034, %v4034
  %v4146 = vpack.c.bf16 %v4041, %v4041
  %v4147 = vpack.c.bf16 %v4048, %v4048
  %v4148 = vpack.c.bf16 %v4055, %v4055
  %v4149 = vpack.c.bf16 %v4062, %v4062
  %v4150 = vpack.c.bf16 %v4069, %v4069
  %v4151 = vpack.c.bf16 %v4076, %v4076
  %v4152 = vpack.c.bf16 %v4083, %v4083
  %v4153 = vpack.c.bf16 %v4090, %v4090
  %v4154 = vpack.c.bf16 %v4097, %v4097
  %v4155 = vpack.c.bf16 %v4104, %v4104
  %v4156 = vpack.c.bf16 %v4111, %v4111
  %v4157 = vpack.c.bf16 %v4118, %v4118
  %v4158 = vpack.c.bf16 %v4125, %v4125
  %v4191 = vunpack.c.l.b16 %v4127
  %v4192 = vunpack.c.l.b16 %v4128
  %v4193 = vunpack.c.l.b16 %v4129
  %v4194 = vunpack.c.l.b16 %v4130
  %v4195 = vunpack.c.l.b16 %v4131
  %v4196 = vunpack.c.l.b16 %v4132
  %v4197 = vunpack.c.l.b16 %v4133
  %v4198 = vunpack.c.l.b16 %v4134
  %v4199 = vunpack.c.l.b16 %v4135
  %v4200 = vunpack.c.l.b16 %v4136
  %v4201 = vunpack.c.l.b16 %v4137
  %v4202 = vunpack.c.l.b16 %v4138
  %v4203 = vunpack.c.l.b16 %v4139
  %v4204 = vunpack.c.l.b16 %v4140
  %v4205 = vunpack.c.l.b16 %v4141
  %v4206 = vunpack.c.l.b16 %v4142
  %v4207 = vunpack.c.l.b16 %v4143
  %v4208 = vunpack.c.l.b16 %v4144
  %v4209 = vunpack.c.l.b16 %v4145
  %v4210 = vunpack.c.l.b16 %v4146
  %v4211 = vunpack.c.l.b16 %v4147
  %v4212 = vunpack.c.l.b16 %v4148
  %v4213 = vunpack.c.l.b16 %v4149
  %v4214 = vunpack.c.l.b16 %v4150
  %v4215 = vunpack.c.l.b16 %v4151
  %v4216 = vunpack.c.l.b16 %v4152
  %v4217 = vunpack.c.l.b16 %v4153
  %v4218 = vunpack.c.l.b16 %v4154
  %v4219 = vunpack.c.l.b16 %v4155
  %v4220 = vunpack.c.l.b16 %v4156
  %v4221 = vunpack.c.l.b16 %v4157
  %v4222 = vunpack.c.l.b16 %v4158
  %v4223 = vsel %vm2205, %v4193, %v4191
  %v4224 = vsel %vm2209, %v4195, %v4223
  %v4225 = vsel %vm2213, %v4197, %v4224
  %vm4226 = vcmask 1044484
  %v4227 = vsel %vm4226, %v4199, %v4225
  %vm4228 = vcmask 1045509
  %v4229 = vsel %vm4228, %v4201, %v4227
  %vm4230 = vcmask 1046534
  %v4231 = vsel %vm4230, %v4203, %v4229
  %vm4232 = vcmask 1047559
  %v4233 = vsel %vm4232, %v4205, %v4231
  %v4234 = vsel %vm2205, %v4194, %v4192
  %v4235 = vsel %vm2209, %v4196, %v4234
  %v4236 = vsel %vm2213, %v4198, %v4235
  %v4237 = vsel %vm4226, %v4200, %v4236
  %v4238 = vsel %vm4228, %v4202, %v4237
  %v4239 = vsel %vm4230, %v4204, %v4238
  %v4240 = vsel %vm4232, %v4206, %v4239
  %v4241 = vsel %vm2205, %v4209, %v4207
  %v4242 = vsel %vm2209, %v4211, %v4241
  %v4243 = vsel %vm2213, %v4213, %v4242
  %v4244 = vsel %vm4226, %v4215, %v4243
  %v4245 = vsel %vm4228, %v4217, %v4244
  %v4246 = vsel %vm4230, %v4219, %v4245
  %v4247 = vsel %vm4232, %v4221, %v4246
  %v4248 = vsel %vm2205, %v4210, %v4208
  %v4249 = vsel %vm2209, %v4212, %v4248
  %v4250 = vsel %vm2213, %v4214, %v4249
  %v4251 = vsel %vm4226, %v4216, %v4250
  %v4252 = vsel %vm4228, %v4218, %v4251
  %v4253 = vsel %vm4230, %v4220, %v4252
  %v4254 = vsel %vm4232, %v4222, %v4253
  %v4255 = vpack.c.b16 %v4247, %v4233
  %v4256 = vpack.c.b16 %v4254, %v4240
  %v4260 = vsel %vm357, %v4126, 0
  %4262 = vmatpush.bf16.msra.mxu0 0
  %4263 = vmatpush.bf16.msra.mxu0 0
  %4264 = vmatpush.bf16.msra.mxu0 0
  %4265 = vmatpush.bf16.msra.mxu0 0
  %4266 = vmatpush.bf16.msra.mxu0 0
  %4267 = vmatpush.bf16.msra.mxu0 0
  %4268 = vmatpush.bf16.msra.mxu0 0
  %4269 = vmatpush.bf16.msra.mxu0 %v4255
  %4270 = vmatmul.bf16.gmra.mxu0 %v4260
  %v4271 = vpop.f32.mrf.mxu0
  %v4272 = vadd.f32 0.0, %v4271
  %v4273 = vpop.f32.mrf.mxu0
  %4274 = vdwg.mxu0
  %4275 = vmatpush.bf16.msra.mxu0 0
  %4276 = vmatpush.bf16.msra.mxu0 0
  %4277 = vmatpush.bf16.msra.mxu0 0
  %4278 = vmatpush.bf16.msra.mxu0 0
  %4279 = vmatpush.bf16.msra.mxu0 0
  %4280 = vmatpush.bf16.msra.mxu0 0
  %4281 = vmatpush.bf16.msra.mxu0 0
  %4282 = vmatpush.bf16.msra.mxu0 %v4256
  %4283 = vmatmul.bf16.gmra.mxu0 %v4260
  %v4284 = vpop.f32.mrf.mxu0
  %v4285 = vadd.f32 0.0, %v4284
  %v4286 = vpop.f32.mrf.mxu0
  %4287 = vdwg.mxu0
  %v4288 = vld [vmem:[%s55] sm:$0xff]
  %v4289 = vld [vmem:[%s55 + $0x8] sm:$0xff]
  %v4290 = vld [vmem:[%s55 + $0x10] sm:$0xff]
  %v4291 = vld [vmem:[%s55 + $0x18] sm:$0xff]
  %v4292 = vld [vmem:[%s55 + $0x20] sm:$0xff]
  %v4293 = vld [vmem:[%s55 + $0x28] sm:$0xff]
  %v4294 = vld [vmem:[%s55 + $0x30] sm:$0xff]
  %v4295 = vld [vmem:[%s55 + $0x38] sm:$0xff]
  %v4296 = vld [vmem:[%s55 + $0x40] sm:$0xff]
  %v4297 = vld [vmem:[%s55 + $0x48] sm:$0xff]
  %v4298 = vld [vmem:[%s55 + $0x50] sm:$0xff]
  %v4299 = vld [vmem:[%s55 + $0x58] sm:$0xff]
  %v4300 = vld [vmem:[%s55 + $0x60] sm:$0xff]
  %v4301 = vld [vmem:[%s55 + $0x68] sm:$0xff]
  %v4302 = vld [vmem:[%s55 + $0x70] sm:$0xff]
  %v4303 = vld [vmem:[%s55 + $0x78] sm:$0xff]
  %v4304 = vld [vmem:[%s55 + $0x80] sm:$0xff]
  %v4305 = vld [vmem:[%s55 + $0x88] sm:$0xff]
  %v4306 = vld [vmem:[%s55 + $0x90] sm:$0xff]
  %v4307 = vld [vmem:[%s55 + $0x98] sm:$0xff]
  %v4308 = vld [vmem:[%s55 + $0xa0] sm:$0xff]
  %v4309 = vld [vmem:[%s55 + $0xa8] sm:$0xff]
  %v4310 = vld [vmem:[%s55 + $0xb0] sm:$0xff]
  %v4311 = vld [vmem:[%s55 + $0xb8] sm:$0xff]
  %v4312 = vld [vmem:[%s55 + $0xc0] sm:$0xff]
  %v4313 = vld [vmem:[%s55 + $0xc8] sm:$0xff]
  %v4314 = vld [vmem:[%s55 + $0xd0] sm:$0xff]
  %v4315 = vld [vmem:[%s55 + $0xd8] sm:$0xff]
  %v4316 = vld [vmem:[%s55 + $0xe0] sm:$0xff]
  %v4317 = vld [vmem:[%s55 + $0xe8] sm:$0xff]
  %v4318 = vld [vmem:[%s55 + $0xf0] sm:$0xff]
  %v4319 = vld [vmem:[%s55 + $0xf8] sm:$0xff]
  %v4320 = vpack.c.bf16 %v4272, %v4272
  %v4321 = vpack.c.bf16 %v4285, %v4285
  %v4322 = vld [vmem:[%s57] sm:$0x3f]
  %v4323 = vld [vmem:[%s57 + $0x8] sm:$0x3f]
  %v4356 = vunpack.c.l.b16 %v4288
  %v4357 = vunpack.c.h.b16 %v4288
  %v4358 = vunpack.c.l.b16 %v4289
  %v4359 = vunpack.c.h.b16 %v4289
  %v4360 = vunpack.c.l.b16 %v4290
  %v4361 = vunpack.c.h.b16 %v4290
  %v4362 = vunpack.c.l.b16 %v4291
  %v4363 = vunpack.c.h.b16 %v4291
  %v4364 = vunpack.c.l.b16 %v4292
  %v4365 = vunpack.c.h.b16 %v4292
  %v4366 = vunpack.c.l.b16 %v4293
  %v4367 = vunpack.c.h.b16 %v4293
  %v4368 = vunpack.c.l.b16 %v4294
  %v4369 = vunpack.c.h.b16 %v4294
  %v4370 = vunpack.c.l.b16 %v4295
  %v4371 = vunpack.c.h.b16 %v4295
  %v4372 = vunpack.c.l.b16 %v4296
  %v4373 = vunpack.c.h.b16 %v4296
  %v4374 = vunpack.c.l.b16 %v4297
  %v4375 = vunpack.c.h.b16 %v4297
  %v4376 = vunpack.c.l.b16 %v4298
  %v4377 = vunpack.c.h.b16 %v4298
  %v4378 = vunpack.c.l.b16 %v4299
  %v4379 = vunpack.c.h.b16 %v4299
  %v4380 = vunpack.c.l.b16 %v4300
  %v4381 = vunpack.c.h.b16 %v4300
  %v4382 = vunpack.c.l.b16 %v4301
  %v4383 = vunpack.c.h.b16 %v4301
  %v4384 = vunpack.c.l.b16 %v4302
  %v4385 = vunpack.c.h.b16 %v4302
  %v4386 = vunpack.c.l.b16 %v4303
  %v4387 = vunpack.c.h.b16 %v4303
  %v4388 = vunpack.c.l.b16 %v4304
  %v4389 = vunpack.c.h.b16 %v4304
  %v4390 = vunpack.c.l.b16 %v4305
  %v4391 = vunpack.c.h.b16 %v4305
  %v4392 = vunpack.c.l.b16 %v4306
  %v4393 = vunpack.c.h.b16 %v4306
  %v4394 = vunpack.c.l.b16 %v4307
  %v4395 = vunpack.c.h.b16 %v4307
  %v4396 = vunpack.c.l.b16 %v4308
  %v4397 = vunpack.c.h.b16 %v4308
  %v4398 = vunpack.c.l.b16 %v4309
  %v4399 = vunpack.c.h.b16 %v4309
  %v4400 = vunpack.c.l.b16 %v4310
  %v4401 = vunpack.c.h.b16 %v4310
  %v4402 = vunpack.c.l.b16 %v4311
  %v4403 = vunpack.c.h.b16 %v4311
  %v4404 = vunpack.c.l.b16 %v4312
  %v4405 = vunpack.c.h.b16 %v4312
  %v4406 = vunpack.c.l.b16 %v4313
  %v4407 = vunpack.c.h.b16 %v4313
  %v4408 = vunpack.c.l.b16 %v4314
  %v4409 = vunpack.c.h.b16 %v4314
  %v4410 = vunpack.c.l.b16 %v4315
  %v4411 = vunpack.c.h.b16 %v4315
  %v4412 = vunpack.c.l.b16 %v4316
  %v4413 = vunpack.c.h.b16 %v4316
  %v4414 = vunpack.c.l.b16 %v4317
  %v4415 = vunpack.c.h.b16 %v4317
  %v4416 = vunpack.c.l.b16 %v4318
  %v4417 = vunpack.c.h.b16 %v4318
  %v4418 = vunpack.c.l.b16 %v4319
  %v4419 = vunpack.c.h.b16 %v4319
  %v4420 = vpack.c.b16 %v4358, %v4356
  %v4421 = vpack.c.b16 %v4359, %v4357
  %v4422 = vpack.c.b16 %v4362, %v4360
  %v4423 = vpack.c.b16 %v4363, %v4361
  %v4424 = vpack.c.b16 %v4366, %v4364
  %v4425 = vpack.c.b16 %v4367, %v4365
  %v4426 = vpack.c.b16 %v4370, %v4368
  %v4427 = vpack.c.b16 %v4371, %v4369
  %v4428 = vpack.c.b16 %v4374, %v4372
  %v4429 = vpack.c.b16 %v4375, %v4373
  %v4430 = vpack.c.b16 %v4378, %v4376
  %v4431 = vpack.c.b16 %v4379, %v4377
  %v4432 = vpack.c.b16 %v4382, %v4380
  %v4433 = vpack.c.b16 %v4383, %v4381
  %v4434 = vpack.c.b16 %v4386, %v4384
  %v4435 = vpack.c.b16 %v4387, %v4385
  %v4436 = vpack.c.b16 %v4390, %v4388
  %v4437 = vpack.c.b16 %v4391, %v4389
  %v4438 = vpack.c.b16 %v4394, %v4392
  %v4439 = vpack.c.b16 %v4395, %v4393
  %v4440 = vpack.c.b16 %v4398, %v4396
  %v4441 = vpack.c.b16 %v4399, %v4397
  %v4442 = vpack.c.b16 %v4402, %v4400
  %v4443 = vpack.c.b16 %v4403, %v4401
  %v4444 = vpack.c.b16 %v4406, %v4404
  %v4445 = vpack.c.b16 %v4407, %v4405
  %v4446 = vpack.c.b16 %v4410, %v4408
  %v4447 = vpack.c.b16 %v4411, %v4409
  %v4448 = vpack.c.b16 %v4414, %v4412
  %v4449 = vpack.c.b16 %v4415, %v4413
  %v4450 = vpack.c.b16 %v4418, %v4416
  %v4451 = vpack.c.b16 %v4419, %v4417
  %4484 = vmatpush.bf16.msra.mxu0 %v4434
  %4485 = vmatpush.bf16.msra.mxu0 %v4432
  %4486 = vmatpush.bf16.msra.mxu0 %v4430
  %4487 = vmatpush.bf16.msra.mxu0 %v4428
  %4488 = vmatpush.bf16.msra.mxu0 %v4426
  %4489 = vmatpush.bf16.msra.mxu0 %v4424
  %4490 = vmatpush.bf16.msra.mxu0 %v4422
  %4491 = vmatpush.bf16.msra.mxu0 %v4420
  %4492 = vmatmul.bf16.gmra.mxu0 %v4320
  %v4493 = vpop.f32.mrf.mxu0
  %v4494 = vadd.f32 %v4322, %v4493
  %v4495 = vpop.f32.mrf.mxu0
  %4496 = vdwg.mxu0
  %4497 = vmatpush.bf16.msra.mxu0 %v4450
  %4498 = vmatpush.bf16.msra.mxu0 %v4448
  %4499 = vmatpush.bf16.msra.mxu0 %v4446
  %4500 = vmatpush.bf16.msra.mxu0 %v4444
  %4501 = vmatpush.bf16.msra.mxu0 %v4442
  %4502 = vmatpush.bf16.msra.mxu0 %v4440
  %4503 = vmatpush.bf16.msra.mxu0 %v4438
  %4504 = vmatpush.bf16.msra.mxu0 %v4436
  %4505 = vmatmul.bf16.gmra.mxu0 %v4321
  %v4506 = vpop.f32.mrf.mxu0
  %v4507 = vadd.f32 %v4494, %v4506
  %v4508 = vpop.f32.mrf.mxu0
  %4509 = vdwg.mxu0
  %4510 = vmatpush.bf16.msra.mxu0 %v4435
  %4511 = vmatpush.bf16.msra.mxu0 %v4433
  %4512 = vmatpush.bf16.msra.mxu0 %v4431
  %4513 = vmatpush.bf16.msra.mxu0 %v4429
  %4514 = vmatpush.bf16.msra.mxu0 %v4427
  %4515 = vmatpush.bf16.msra.mxu0 %v4425
  %4516 = vmatpush.bf16.msra.mxu0 %v4423
  %4517 = vmatpush.bf16.msra.mxu0 %v4421
  %4518 = vmatmul.bf16.gmra.mxu0 %v4320
  %v4519 = vpop.f32.mrf.mxu0
  %v4520 = vadd.f32 %v4323, %v4519
  %v4521 = vpop.f32.mrf.mxu0
  %4522 = vdwg.mxu0
  %4523 = vmatpush.bf16.msra.mxu0 %v4451
  %4524 = vmatpush.bf16.msra.mxu0 %v4449
  %4525 = vmatpush.bf16.msra.mxu0 %v4447
  %4526 = vmatpush.bf16.msra.mxu0 %v4445
  %4527 = vmatpush.bf16.msra.mxu0 %v4443
  %4528 = vmatpush.bf16.msra.mxu0 %v4441
  %4529 = vmatpush.bf16.msra.mxu0 %v4439
  %4530 = vmatpush.bf16.msra.mxu0 %v4437
  %4531 = vmatmul.bf16.gmra.mxu0 %v4321
  %v4532 = vpop.f32.mrf.mxu0
  %v4533 = vadd.f32 %v4520, %v4532
  %v4534 = vpop.f32.mrf.mxu0
  %4535 = vdwg.mxu0
  %v4536 = vadd.f32 %v4507, %v1164
  %v4537 = vadd.f32 %v4533, %v1177
  %s4538 = scalar_lea.vmem %s61, 8
  %v4539 = vld [vmem:[%s4538] sm:$0x7]
  %v4540 = vpack.c.bf16 %v4536, %v4536
  %v4541 = vpack.c.bf16 %v4537, %v4537
  %4542 = vrot.lane.b32.xlu0 %v4536, 2
  %v4543 = vpop.permute.xlu0 %4542
  %4544 = vrot.lane.b32.xlu0 %v4537, 2
  %v4545 = vpop.permute.xlu0 %4544
  %v4546 = vsel %vm545, %v4543, %v4545
  %v4547 = vsel %vm545, %v4545, %v4543
  %v4548 = vmul.f32 %v4547, %v548
  %v4549 = vmul.f32 %v4546, %v549
  %v4550 = vld [vmem:[%s61] sm:$0x7]
  %v4551 = vpack.c.bf16 %v4548, %v4548
  %v4552 = vpack.c.bf16 %v4549, %v4549
  %v4554 = vsel %vm1143, %v4550, 0
  %v4557 = vsel %vm1147, %v4551, 0
  %v4560 = vsel %vm1147, %v4552, 0
  %4562 = vmatpush.bf16.msra.mxu0 0
  %4563 = vmatpush.bf16.msra.mxu0 0
  %4564 = vmatpush.bf16.msra.mxu0 0
  %4565 = vmatpush.bf16.msra.mxu0 0
  %4566 = vmatpush.bf16.msra.mxu0 0
  %4567 = vmatpush.bf16.msra.mxu0 0
  %4568 = vmatpush.bf16.msra.mxu0 0
  %4569 = vmatpush.bf16.msra.mxu0 %v4557
  %4570 = vmatmul.bf16.gmra.mxu0 %v4554
  %v4571 = vpop.f32.mrf.mxu0
  %v4572 = vadd.f32 0.0, %v4571
  %v4573 = vpop.f32.mrf.mxu0
  %4574 = vdwg.mxu0
  %4575 = vmatpush.bf16.msra.mxu0 0
  %4576 = vmatpush.bf16.msra.mxu0 0
  %4577 = vmatpush.bf16.msra.mxu0 0
  %4578 = vmatpush.bf16.msra.mxu0 0
  %4579 = vmatpush.bf16.msra.mxu0 0
  %4580 = vmatpush.bf16.msra.mxu0 0
  %4581 = vmatpush.bf16.msra.mxu0 0
  %4582 = vmatpush.bf16.msra.mxu0 %v4560
  %4583 = vmatmul.bf16.gmra.mxu0 %v4554
  %v4584 = vpop.f32.mrf.mxu0
  %v4585 = vadd.f32 0.0, %v4584
  %v4586 = vpop.f32.mrf.mxu0
  %4587 = vdwg.mxu0
  %v4589 = vsel %vm1143, %v4539, 0
  %v4592 = vsel %vm1147, %v4540, 0
  %v4595 = vsel %vm1147, %v4541, 0
  %4597 = vmatpush.bf16.msra.mxu0 0
  %4598 = vmatpush.bf16.msra.mxu0 0
  %4599 = vmatpush.bf16.msra.mxu0 0
  %4600 = vmatpush.bf16.msra.mxu0 0
  %4601 = vmatpush.bf16.msra.mxu0 0
  %4602 = vmatpush.bf16.msra.mxu0 0
  %4603 = vmatpush.bf16.msra.mxu0 0
  %4604 = vmatpush.bf16.msra.mxu0 %v4592
  %4605 = vmatmul.bf16.gmra.mxu0 %v4589
  %v4606 = vpop.f32.mrf.mxu0
  %v4607 = vadd.f32 %v4572, %v4606
  %v4608 = vpop.f32.mrf.mxu0
  %4609 = vdwg.mxu0
  %4610 = vmatpush.bf16.msra.mxu0 0
  %4611 = vmatpush.bf16.msra.mxu0 0
  %4612 = vmatpush.bf16.msra.mxu0 0
  %4613 = vmatpush.bf16.msra.mxu0 0
  %4614 = vmatpush.bf16.msra.mxu0 0
  %4615 = vmatpush.bf16.msra.mxu0 0
  %4616 = vmatpush.bf16.msra.mxu0 0
  %4617 = vmatpush.bf16.msra.mxu0 %v4595
  %4618 = vmatmul.bf16.gmra.mxu0 %v4589
  %v4619 = vpop.f32.mrf.mxu0
  %v4620 = vadd.f32 %v4585, %v4619
  %v4621 = vpop.f32.mrf.mxu0
  %4622 = vdwg.mxu0
  %4623 = vrot.lane.b32.xlu0 %v4536, 1
  %v4624 = vpop.permute.xlu0 %4623
  %4625 = vrot.lane.b32.xlu0 %v4537, 1
  %v4626 = vpop.permute.xlu0 %4625
  %v4627 = vsel %vm634, %v4624, %v4626
  %v4628 = vsel %vm634, %v4626, %v4624
  %v4629 = vmul.f32 %v4628, %v637
  %v4630 = vmul.f32 %v4627, %v638
  %s4631 = scalar_lea.vmem %s61, 4
  %v4632 = vld [vmem:[%s4631] sm:$0x7]
  %v4633 = vpack.c.bf16 %v4629, %v4629
  %v4634 = vpack.c.bf16 %v4630, %v4630
  %v4636 = vsel %vm1143, %v4632, 0
  %v4639 = vsel %vm1147, %v4633, 0
  %v4642 = vsel %vm1147, %v4634, 0
  %4644 = vmatpush.bf16.msra.mxu0 0
  %4645 = vmatpush.bf16.msra.mxu0 0
  %4646 = vmatpush.bf16.msra.mxu0 0
  %4647 = vmatpush.bf16.msra.mxu0 0
  %4648 = vmatpush.bf16.msra.mxu0 0
  %4649 = vmatpush.bf16.msra.mxu0 0
  %4650 = vmatpush.bf16.msra.mxu0 0
  %4651 = vmatpush.bf16.msra.mxu0 %v4639
  %4652 = vmatmul.bf16.gmra.mxu0 %v4636
  %v4653 = vpop.f32.mrf.mxu0
  %v4654 = vadd.f32 0.0, %v4653
  %v4655 = vpop.f32.mrf.mxu0
  %4656 = vdwg.mxu0
  %4657 = vmatpush.bf16.msra.mxu0 0
  %4658 = vmatpush.bf16.msra.mxu0 0
  %4659 = vmatpush.bf16.msra.mxu0 0
  %4660 = vmatpush.bf16.msra.mxu0 0
  %4661 = vmatpush.bf16.msra.mxu0 0
  %4662 = vmatpush.bf16.msra.mxu0 0
  %4663 = vmatpush.bf16.msra.mxu0 0
  %4664 = vmatpush.bf16.msra.mxu0 %v4642
  %4665 = vmatmul.bf16.gmra.mxu0 %v4636
  %v4666 = vpop.f32.mrf.mxu0
  %v4667 = vadd.f32 0.0, %v4666
  %v4668 = vpop.f32.mrf.mxu0
  %4669 = vdwg.mxu0
  %v4670 = vadd.f32 %v4607, %v4654
  %v4671 = vadd.f32 %v4620, %v4667
  %4672 = vrot.lane.b32.xlu0 %v4536, 127
  %v4673 = vpop.permute.xlu0 %4672
  %4674 = vrot.lane.b32.xlu0 %v4537, 127
  %v4675 = vpop.permute.xlu0 %4674
  %v4676 = vsel %vm691, %v4673, %v4675
  %v4677 = vsel %vm691, %v4675, %v4673
  %v4678 = vmul.f32 %v4676, %v694
  %v4679 = vmul.f32 %v4677, %v695
  %s4680 = scalar_lea.vmem %s61, 12
  %v4681 = vld [vmem:[%s4680] sm:$0x7]
  %v4682 = vpack.c.bf16 %v4678, %v4678
  %v4683 = vpack.c.bf16 %v4679, %v4679
  %v4685 = vsel %vm1143, %v4681, 0
  %v4688 = vsel %vm1147, %v4682, 0
  %v4691 = vsel %vm1147, %v4683, 0
  %4693 = vmatpush.bf16.msra.mxu0 0
  %4694 = vmatpush.bf16.msra.mxu0 0
  %4695 = vmatpush.bf16.msra.mxu0 0
  %4696 = vmatpush.bf16.msra.mxu0 0
  %4697 = vmatpush.bf16.msra.mxu0 0
  %4698 = vmatpush.bf16.msra.mxu0 0
  %4699 = vmatpush.bf16.msra.mxu0 0
  %4700 = vmatpush.bf16.msra.mxu0 %v4688
  %4701 = vmatmul.bf16.gmra.mxu0 %v4685
  %v4702 = vpop.f32.mrf.mxu0
  %v4703 = vadd.f32 0.0, %v4702
  %v4704 = vpop.f32.mrf.mxu0
  %4705 = vdwg.mxu0
  %4706 = vmatpush.bf16.msra.mxu0 0
  %4707 = vmatpush.bf16.msra.mxu0 0
  %4708 = vmatpush.bf16.msra.mxu0 0
  %4709 = vmatpush.bf16.msra.mxu0 0
  %4710 = vmatpush.bf16.msra.mxu0 0
  %4711 = vmatpush.bf16.msra.mxu0 0
  %4712 = vmatpush.bf16.msra.mxu0 0
  %4713 = vmatpush.bf16.msra.mxu0 %v4691
  %4714 = vmatmul.bf16.gmra.mxu0 %v4685
  %v4715 = vpop.f32.mrf.mxu0
  %v4716 = vadd.f32 0.0, %v4715
  %v4717 = vpop.f32.mrf.mxu0
  %4718 = vdwg.mxu0
  %v4719 = vadd.f32 %v4670, %v4703
  %v4720 = vadd.f32 %v4671, %v4716
  %4721 = vrot.lane.b32.xlu0 %v4536, 126
  %v4722 = vpop.permute.xlu0 %4721
  %4723 = vrot.lane.b32.xlu0 %v4537, 126
  %v4724 = vpop.permute.xlu0 %4723
  %v4725 = vsel %vm748, %v4722, %v4724
  %v4726 = vsel %vm748, %v4724, %v4722
  %v4727 = vmul.f32 %v4725, %v751
  %v4728 = vmul.f32 %v4726, %v752
  %s4729 = scalar_lea.vmem %s61, 16
  %v4730 = vld [vmem:[%s4729] sm:$0x7]
  %v4731 = vpack.c.bf16 %v4727, %v4727
  %v4732 = vpack.c.bf16 %v4728, %v4728
  %v4734 = vsel %vm1143, %v4730, 0
  %v4737 = vsel %vm1147, %v4731, 0
  %v4740 = vsel %vm1147, %v4732, 0
  %4742 = vmatpush.bf16.msra.mxu0 0
  %4743 = vmatpush.bf16.msra.mxu0 0
  %4744 = vmatpush.bf16.msra.mxu0 0
  %4745 = vmatpush.bf16.msra.mxu0 0
  %4746 = vmatpush.bf16.msra.mxu0 0
  %4747 = vmatpush.bf16.msra.mxu0 0
  %4748 = vmatpush.bf16.msra.mxu0 0
  %4749 = vmatpush.bf16.msra.mxu0 %v4737
  %4750 = vmatmul.bf16.gmra.mxu0 %v4734
  %v4751 = vpop.f32.mrf.mxu0
  %v4752 = vadd.f32 0.0, %v4751
  %v4753 = vpop.f32.mrf.mxu0
  %4754 = vdwg.mxu0
  %4755 = vmatpush.bf16.msra.mxu0 0
  %4756 = vmatpush.bf16.msra.mxu0 0
  %4757 = vmatpush.bf16.msra.mxu0 0
  %4758 = vmatpush.bf16.msra.mxu0 0
  %4759 = vmatpush.bf16.msra.mxu0 0
  %4760 = vmatpush.bf16.msra.mxu0 0
  %4761 = vmatpush.bf16.msra.mxu0 0
  %4762 = vmatpush.bf16.msra.mxu0 %v4740
  %4763 = vmatmul.bf16.gmra.mxu0 %v4734
  %v4764 = vpop.f32.mrf.mxu0
  %v4765 = vadd.f32 0.0, %v4764
  %v4766 = vpop.f32.mrf.mxu0
  %4767 = vdwg.mxu0
  %v4768 = vadd.f32 %v4719, %v4752
  %v4769 = vadd.f32 %v4720, %v4765
  %v4770 = vld [vmem:[%s63] sm:$0x3f]
  %4772 = vset.pattern.permute.xlu0 0
  %4773 = vperm.xlu0 %4772, %v4770
  %v4774 = vpop.permute.xlu0 %4773
  %v4776 = vadd.f32 %v4768, %v4774
  %v4777 = vadd.f32 %v4769, %v4774
  %v4778 = vpack.c.bf16 %v4776, %v4776
  %v4779 = vpack.c.bf16 %v4777, %v4777
  %4780 = vmatpush.bf16.msra.mxu0 %v916
  %4781 = vmatpush.bf16.msra.mxu0 %v914
  %4782 = vmatpush.bf16.msra.mxu0 %v912
  %4783 = vmatpush.bf16.msra.mxu0 %v910
  %4784 = vmatpush.bf16.msra.mxu0 %v908
  %4785 = vmatpush.bf16.msra.mxu0 %v906
  %4786 = vmatpush.bf16.msra.mxu0 %v904
  %4787 = vmatpush.bf16.msra.mxu0 %v902
  %4788 = vmatmul.bf16.gmra.mxu0 %v4778
  %v4789 = vpop.f32.mrf.mxu0
  %v4790 = vadd.f32 0.0, %v4789
  %v4791 = vpop.f32.mrf.mxu0
  %4792 = vdwg.mxu0
  %4793 = vmatpush.bf16.msra.mxu0 %v932
  %4794 = vmatpush.bf16.msra.mxu0 %v930
  %4795 = vmatpush.bf16.msra.mxu0 %v928
  %4796 = vmatpush.bf16.msra.mxu0 %v926
  %4797 = vmatpush.bf16.msra.mxu0 %v924
  %4798 = vmatpush.bf16.msra.mxu0 %v922
  %4799 = vmatpush.bf16.msra.mxu0 %v920
  %4800 = vmatpush.bf16.msra.mxu0 %v918
  %4801 = vmatmul.bf16.gmra.mxu0 %v4779
  %v4802 = vpop.f32.mrf.mxu0
  %v4803 = vadd.f32 %v4790, %v4802
  %v4804 = vpop.f32.mrf.mxu0
  %4805 = vdwg.mxu0
  %4806 = vmatpush.bf16.msra.mxu0 %v917
  %4807 = vmatpush.bf16.msra.mxu0 %v915
  %4808 = vmatpush.bf16.msra.mxu0 %v913
  %4809 = vmatpush.bf16.msra.mxu0 %v911
  %4810 = vmatpush.bf16.msra.mxu0 %v909
  %4811 = vmatpush.bf16.msra.mxu0 %v907
  %4812 = vmatpush.bf16.msra.mxu0 %v905
  %4813 = vmatpush.bf16.msra.mxu0 %v903
  %4814 = vmatmul.bf16.gmra.mxu0 %v4778
  %v4815 = vpop.f32.mrf.mxu0
  %v4816 = vadd.f32 0.0, %v4815
  %v4817 = vpop.f32.mrf.mxu0
  %4818 = vdwg.mxu0
  %4819 = vmatpush.bf16.msra.mxu0 %v933
  %4820 = vmatpush.bf16.msra.mxu0 %v931
  %4821 = vmatpush.bf16.msra.mxu0 %v929
  %4822 = vmatpush.bf16.msra.mxu0 %v927
  %4823 = vmatpush.bf16.msra.mxu0 %v925
  %4824 = vmatpush.bf16.msra.mxu0 %v923
  %4825 = vmatpush.bf16.msra.mxu0 %v921
  %4826 = vmatpush.bf16.msra.mxu0 %v919
  %4827 = vmatmul.bf16.gmra.mxu0 %v4779
  %v4828 = vpop.f32.mrf.mxu0
  %v4829 = vadd.f32 %v4816, %v4828
  %v4830 = vpop.f32.mrf.mxu0
  %4831 = vdwg.mxu0
  %v4832 = vsub.f32 %v4776, %v4803
  %v4833 = vsub.f32 %v4777, %v4829
  %v4834 = vmul.f32 %v4832, %v4832
  %v4835 = vmul.f32 %v4833, %v4833
  %v4836 = vpack.c.bf16 %v4834, %v4834
  %v4837 = vpack.c.bf16 %v4835, %v4835
  %4838 = vmatpush.bf16.msra.mxu0 %v916
  %4839 = vmatpush.bf16.msra.mxu0 %v914
  %4840 = vmatpush.bf16.msra.mxu0 %v912
  %4841 = vmatpush.bf16.msra.mxu0 %v910
  %4842 = vmatpush.bf16.msra.mxu0 %v908
  %4843 = vmatpush.bf16.msra.mxu0 %v906
  %4844 = vmatpush.bf16.msra.mxu0 %v904
  %4845 = vmatpush.bf16.msra.mxu0 %v902
  %4846 = vmatmul.bf16.gmra.mxu0 %v4836
  %v4847 = vpop.f32.mrf.mxu0
  %v4848 = vadd.f32 1e-05, %v4847
  %v4849 = vpop.f32.mrf.mxu0
  %4850 = vdwg.mxu0
  %4851 = vmatpush.bf16.msra.mxu0 %v932
  %4852 = vmatpush.bf16.msra.mxu0 %v930
  %4853 = vmatpush.bf16.msra.mxu0 %v928
  %4854 = vmatpush.bf16.msra.mxu0 %v926
  %4855 = vmatpush.bf16.msra.mxu0 %v924
  %4856 = vmatpush.bf16.msra.mxu0 %v922
  %4857 = vmatpush.bf16.msra.mxu0 %v920
  %4858 = vmatpush.bf16.msra.mxu0 %v918
  %4859 = vmatmul.bf16.gmra.mxu0 %v4837
  %v4860 = vpop.f32.mrf.mxu0
  %v4861 = vadd.f32 %v4848, %v4860
  %v4862 = vpop.f32.mrf.mxu0
  %4863 = vdwg.mxu0
  %4864 = vmatpush.bf16.msra.mxu0 %v917
  %4865 = vmatpush.bf16.msra.mxu0 %v915
  %4866 = vmatpush.bf16.msra.mxu0 %v913
  %4867 = vmatpush.bf16.msra.mxu0 %v911
  %4868 = vmatpush.bf16.msra.mxu0 %v909
  %4869 = vmatpush.bf16.msra.mxu0 %v907
  %4870 = vmatpush.bf16.msra.mxu0 %v905
  %4871 = vmatpush.bf16.msra.mxu0 %v903
  %4872 = vmatmul.bf16.gmra.mxu0 %v4836
  %v4873 = vpop.f32.mrf.mxu0
  %v4874 = vadd.f32 1e-05, %v4873
  %v4875 = vpop.f32.mrf.mxu0
  %4876 = vdwg.mxu0
  %4877 = vmatpush.bf16.msra.mxu0 %v933
  %4878 = vmatpush.bf16.msra.mxu0 %v931
  %4879 = vmatpush.bf16.msra.mxu0 %v929
  %4880 = vmatpush.bf16.msra.mxu0 %v927
  %4881 = vmatpush.bf16.msra.mxu0 %v925
  %4882 = vmatpush.bf16.msra.mxu0 %v923
  %4883 = vmatpush.bf16.msra.mxu0 %v921
  %4884 = vmatpush.bf16.msra.mxu0 %v919
  %4885 = vmatmul.bf16.gmra.mxu0 %v4837
  %v4886 = vpop.f32.mrf.mxu0
  %v4887 = vadd.f32 %v4874, %v4886
  %v4888 = vpop.f32.mrf.mxu0
  %4889 = vdwg.mxu0
  %v4890 = vrsqrt.pop %v4861
  %v4891 = vmul.f32 %v4890, %v4861
  %v4892 = vmul.f32 %v4891, %v4890
  %v4893 = vmul.f32 0.5, %v4892
  %v4894 = vsub.f32 1.5, %v4893
  %v4895 = vmul.f32 %v4890, %v4894
  %vm4896 = vweird.f32 %v4861
  %vm4897 = vweird.f32 %v4890
  %vm4898 = vmor %vm4896, %vm4897
  %v4899 = vsel %vm4898, %v4890, %v4895
  %v4900 = vrsqrt.pop %v4887
  %v4901 = vmul.f32 %v4900, %v4887
  %v4902 = vmul.f32 %v4901, %v4900
  %v4903 = vmul.f32 0.5, %v4902
  %v4904 = vsub.f32 1.5, %v4903
  %v4905 = vmul.f32 %v4900, %v4904
  %vm4906 = vweird.f32 %v4887
  %vm4907 = vweird.f32 %v4900
  %vm4908 = vmor %vm4906, %vm4907
  %v4909 = vsel %vm4908, %v4900, %v4905
  %v4910 = vmul.f32 %v4832, %v4899
  %v4911 = vmul.f32 %v4833, %v4909
  %v4912 = vld [vmem:[%s65] sm:$0x3]
  %v4914 = vperm.slane %v4912, 0
  %v4915 = vperm.slane %v4912, 1
  %v4918 = vmul.f32 %v4910, %v4914
  %v4919 = vmul.f32 %v4911, %v4915
  %v4920 = vld [vmem:[%s67] sm:$0x3]
  %v4922 = vperm.slane %v4920, 0
  %v4923 = vperm.slane %v4920, 1
  %v4926 = vadd.f32 %v4918, %v4922
  %v4927 = vadd.f32 %v4919, %v4923
  %v4928 = vmin.f32 %v4926, 25.0
  %v4929 = vmin.f32 %v4927, 25.0
  %v4930 = vmul.f32 %v4928, 1.442695
  %v4931 = vpow.pop %v4930
  %v4932 = vmul.f32 %v4929, 1.442695
  %v4933 = vpow.pop %v4932
  %v4934 = vadd.f32 %v4931, 1.0
  %v4935 = vadd.f32 %v4933, 1.0
  %v4936 = vmul.f32 %v4934, %v4934
  %v4937 = vmul.f32 %v4935, %v4935
  %v4938 = vadd.f32 %v4936, 1.0
  %v4939 = vadd.f32 %v4937, 1.0
  %v4940 = vrcp.pop %v4938
  %v4941 = vrcp.pop %v4939
  %v4942 = vmul.f32 %v4940, 2.0
  %v4943 = vmul.f32 %v4941, 2.0
  %v4944 = vsub.f32 1.0, %v4942
  %v4945 = vsub.f32 1.0, %v4943
  %v4946 = vmul.f32 %v4926, %v4944
  %v4947 = vmul.f32 %v4927, %v4945
  %v4948 = vld [vmem:[%s69] sm:$0x7]
  %4950 = vst [vmem:[#allocation1] ss:$2 sm:$0xff] %v151
  %v4951 = vld.sshfl [vmem:[#allocation1] sm:$0xff pattern:$0x75316420]
  %v4952 = vld.sshfl [vmem:[#allocation1 + $0x8] sm:$0xff pattern:$0x75316420]
  %v4955 = vpack.c.bf16 %v4951, %v4951
  %v4956 = vpack.c.bf16 %v4952, %v4952
  %v4958 = vsel %vm478, %v4948, 0
  %v4961 = vsel %vm482, %v4955, 0
  %v4964 = vsel %vm482, %v4956, 0
  %4966 = vmatpush.bf16.msra.mxu0 0
  %4967 = vmatpush.bf16.msra.mxu0 0
  %4968 = vmatpush.bf16.msra.mxu0 0
  %4969 = vmatpush.bf16.msra.mxu0 0
  %4970 = vmatpush.bf16.msra.mxu0 0
  %4971 = vmatpush.bf16.msra.mxu0 0
  %4972 = vmatpush.bf16.msra.mxu0 0
  %4973 = vmatpush.bf16.msra.mxu0 %v4961
  %4974 = vmatmul.bf16.gmra.mxu0 %v4958
  %v4975 = vpop.f32.mrf.mxu0
  %v4976 = vadd.f32 0.0, %v4975
  %v4977 = vpop.f32.mrf.mxu0
  %4978 = vdwg.mxu0
  %4979 = vmatpush.bf16.msra.mxu0 0
  %4980 = vmatpush.bf16.msra.mxu0 0
  %4981 = vmatpush.bf16.msra.mxu0 0
  %4982 = vmatpush.bf16.msra.mxu0 0
  %4983 = vmatpush.bf16.msra.mxu0 0
  %4984 = vmatpush.bf16.msra.mxu0 0
  %4985 = vmatpush.bf16.msra.mxu0 0
  %4986 = vmatpush.bf16.msra.mxu0 %v4964
  %4987 = vmatmul.bf16.gmra.mxu0 %v4958
  %v4988 = vpop.f32.mrf.mxu0
  %v4989 = vadd.f32 0.0, %v4988
  %v4990 = vpop.f32.mrf.mxu0
  %4991 = vdwg.mxu0
  %v4992 = vadd.f32 %v4946, %v4976
  %v4993 = vadd.f32 %v4947, %v4989
  %v4994 = vld [vmem:[%s71] sm:$0x3f]
  %4996 = vset.pattern.permute.xlu0 0
  %4997 = vperm.xlu0 %4996, %v4994
  %v4998 = vpop.permute.xlu0 %4997
  %v5000 = vadd.f32 %v4992, %v4998
  %v5001 = vadd.f32 %v4993, %v4998
  %5002 = vst [vmem:[%s73] sm:$0x3f] %v5000
  %5003 = vst [vmem:[%s73 + $0x8] sm:$0x3f] %v5001
  // Predicated region
  $region146: #{_block_forward_impl.1} parent=0 // pred_check
    _
  $region147: #{_block_forward_impl.1} parent=0 // pred_check_branch
    %5005 = sbr.rel (0) target = $region149
  $region148: #{_block_forward_impl.1} parent=0 // pred_region
    _
  $region149: #{_block_forward_impl.1} parent=0 // pred_fallthru
    _
  // Predicated region
  $region150: #{_block_forward_impl.1} parent=0 // pred_check
    _
  $region151: #{_block_forward_impl.1} parent=0 // pred_check_branch
    %5007 = sbr.rel (0) target = $region153
  $region152: #{_block_forward_impl.1} parent=0 // pred_region
    _
  $region153: #{_block_forward_impl.1} parent=0 // pred_fallthru
    _

</llo_original>
